<compile_context>
chip_gen: v6e
topology: v6e:2x2x1
jax: 0.10.0
libtpu: 0.0.40
codegen_flags: <defaults>
</compile_context>

<pallas_src>
import functools

import jax
import jax.numpy as jnp
from jax.experimental import pallas as pl
from jax.experimental.pallas import tpu as pltpu


# ---------------------------------------------------------------------------
# Fused residual-block kernel (one batch element per grid step)
# ---------------------------------------------------------------------------
def _fused_block_kernel(*refs, K, D, L, pad_front, decoder, has_downsample):
    """Fused TCN residual block.

    refs (has_downsample=True):
      x_ref   (1, L, C_in)       input slab
      w1_ref  (K, C_in, C_mid)   conv1 taps (weight-normed; flipped for convT)
      w2_ref  (K, C_mid, C_out)  conv2 taps
      dsw_ref (C_in, C_out)      1x1 downsample weight
      dsb_ref (1, C_out)         1x1 downsample bias
      o_ref   (1, L, C_out)
      s1_ref / s2_ref            VMEM scratch: padded stage-1 / stage-2 sequences
    """
    if has_downsample:
        x_ref, w1_ref, w2_ref, dsw_ref, dsb_ref, o_ref, s1_ref, s2_ref = refs
    else:
        x_ref, w1_ref, w2_ref, o_ref, s1_ref, s2_ref = refs
        dsw_ref = dsb_ref = None

    P = D * (K - 1)
    x = x_ref[0].astype(jnp.float32)                        # (L, C_in)

    def conv_stage(a, s_ref, w_ref):
        """One weight-normed dilated conv over the padded sequence of `a`."""
        # Assemble the padded sequence in VMEM scratch (8-aligned stores only),
        # read it back once, then take the K dilation-shifted tap windows.
        c = a.shape[1]
        if decoder:
            # Pad1d: append the last P timesteps (replicate tail).
            s_ref[pl.ds(0, L), :] = a
            if P > 0:
                s_ref[pl.ds(L, P), :] = a[L - P:, :]
            base = 0
        else:
            # Conv1d(pad=P) + Chomp1d(P)  ==  causal conv: P zeros in front.
            # pad_front = P rounded up to a multiple of 8 so both stores are
            # sublane-aligned; extra leading zeros are never read.
            if pad_front > 0:
                s_ref[pl.ds(0, pad_front), :] = jnp.zeros((pad_front, c),
                                                          jnp.float32)
            s_ref[pl.ds(pad_front, L), :] = a
            base = pad_front - P
        s = s_ref[...]
        acc = jnp.zeros((L, w_ref.shape[2]), jnp.float32)
        for k in range(K):                                  # K tiny (2) -> unrolled
            win = s[base + k * D: base + k * D + L, :]
            acc = acc + jnp.dot(win, w_ref[k],
                                preferred_element_type=jnp.float32)
        return acc

    # ---- main branch (Dropout = identity at inference) ----
    if decoder:       # relu -> pad -> convT, twice (no relu after conv2 in net)
        h1 = conv_stage(jnp.maximum(x, 0.0), s1_ref, w1_ref)
        out = conv_stage(jnp.maximum(h1, 0.0), s2_ref, w2_ref)
    else:             # (causal conv -> chomp -> relu), twice
        h1 = jnp.maximum(conv_stage(x, s1_ref, w1_ref), 0.0)
        out = jnp.maximum(conv_stage(h1, s2_ref, w2_ref), 0.0)

    # ---- residual branch: 1x1 conv computed in-kernel (no extra HBM pass) ----
    if has_downsample:
        res = jnp.dot(x, dsw_ref[...], preferred_element_type=jnp.float32)
        res = res + dsb_ref[...].astype(jnp.float32)
    else:
        res = x

    o_ref[0] = jnp.maximum(out + res, 0.0).astype(o_ref.dtype)


# ---------------------------------------------------------------------------
# Pallas wrapper: one fused residual block == one pallas_call
# ---------------------------------------------------------------------------
def fused_tcn_block(x_nlc, w1_k, w2_k, ds_w, ds_b, *, dilation, decoder):
    """Fused TcnResidualBlock (decoder=False) / TcnResidualBlockTranspose (True).

    x_nlc : (N, L, C_in)
    w*_k  : (K, C_in, C_out) prepped taps (weight-normed, flipped for convT)
    ds_w  : (C_in, C_out) 1x1 downsample weight, or None for identity residual
    ds_b  : (C_out,) downsample bias, or None
    """
    N, L, C_in = x_nlc.shape
    K, _, C_mid = w1_k.shape
    C_out = w2_k.shape[2]
    P = dilation * (K - 1)
    has_ds = ds_w is not None
    if not has_ds:
        assert C_in == C_out, "identity residual needs C_in == C_out"
    if decoder:
        assert L >= P, "Pad1d replication requires L >= (K-1)*dilation"

    pad_front = 0 if decoder else ((P + 7) // 8) * 8        # 8-aligned front pad
    s_rows = L + (P if decoder else pad_front)

    kernel = functools.partial(_fused_block_kernel, K=K, D=dilation, L=L,
                               pad_front=pad_front, decoder=decoder,
                               has_downsample=has_ds)

    in_specs = [
        pl.BlockSpec((1, L, C_in), lambda n: (n, 0, 0)),
        pl.BlockSpec((K, C_in, C_mid), lambda n: (0, 0, 0)),
        pl.BlockSpec((K, C_mid, C_out), lambda n: (0, 0, 0)),
    ]
    args = [x_nlc, w1_k, w2_k]
    if has_ds:
        in_specs += [pl.BlockSpec((C_in, C_out), lambda n: (0, 0)),
                     pl.BlockSpec((1, C_out), lambda n: (0, 0))]
        args += [ds_w, ds_b.reshape(1, C_out)]

    # Advisory scheduler hint: total flops / bytes for the whole grid.
    flops = N * (2 * L * K * C_in * C_mid + 2 * L * K * C_mid * C_out
                 + (2 * L * C_in * C_out if has_ds else 0))
    bytes_accessed = 4 * (N * L * C_in + K * C_in * C_mid + K * C_mid * C_out
                          + (C_in * C_out + C_out if has_ds else 0)
                          + N * L * C_out)
    cost = pl.CostEstimate(flops=flops, transcendentals=0,
                           bytes_accessed=bytes_accessed)

    return pl.pallas_call(
        kernel,
        out_shape=jax.ShapeDtypeStruct((N, L, C_out), x_nlc.dtype),
        grid=(N,),
        in_specs=in_specs,
        out_specs=pl.BlockSpec((1, L, C_out), lambda n: (n, 0, 0)),
        scratch_shapes=[pltpu.VMEM((s_rows, C_in), jnp.float32),
                        pltpu.VMEM((s_rows, C_mid), jnp.float32)],
        compiler_params=pltpu.CompilerParams(
            dimension_semantics=("parallel",)),
        cost_estimate=cost,
    )(*args)


# ---------------------------------------------------------------------------
# TcnAE forward (all hot math inside the fused block kernels)
# ---------------------------------------------------------------------------
def tcn_ae_forward(x_nlf, enc_layers, dec_layers):
    """TcnAE.forward.  x_nlf: (N, L, n_features) — the layout PyTorch receives.
    Returns (dec, enc), both (N, L, C) — matching the module's output permutes."""
    h = x_nlf
    for lyr in enc_layers:
        h = fused_tcn_block(h, lyr["w1_k"], lyr["w2_k"], lyr["ds_w"], lyr["ds_b"],
                            dilation=lyr["dilation"], decoder=False)
    enc = h
    for lyr in dec_layers:
        h = fused_tcn_block(h, lyr["w1_k"], lyr["w2_k"], lyr["ds_w"], lyr["ds_b"],
                            dilation=lyr["dilation"], decoder=True)
    return h, enc


# ---------------------------------------------------------------------------
# One-time (hoisted) parameter preparation
# ---------------------------------------------------------------------------
def _weight_norm(v, g):
    """torch.nn.utils.weight_norm, dim=0: w = g * v / ||v||, norm over dims (1,2)."""
    return g * v / jnp.sqrt(jnp.sum(v * v, axis=(1, 2), keepdims=True))


def prep_encoder_block(raw):
    """TcnResidualBlock params: Conv1d weight (C_out, C_in, K) -> taps (K, C_in, C_out)."""
    w1 = _weight_norm(raw["conv1_v"], raw["conv1_g"])
    w2 = _weight_norm(raw["conv2_v"], raw["conv2_g"])
    lyr = {"w1_k": jnp.transpose(w1, (2, 1, 0)),
           "w2_k": jnp.transpose(w2, (2, 1, 0)),
           "dilation": raw["dilation"], "ds_w": None, "ds_b": None}
    if raw["ds_w"] is not None:
        lyr["ds_w"] = jnp.transpose(raw["ds_w"][:, :, 0])   # (C_in, C_out)
        lyr["ds_b"] = raw["ds_b"]
    return lyr


def prep_decoder_block(raw):
    """TcnResidualBlockTranspose params: ConvTranspose1d weight (C_in, C_out, K)
    -> tap-flipped (K, C_in, C_out)."""
    w1 = _weight_norm(raw["conv1_v"], raw["conv1_g"])
    w2 = _weight_norm(raw["conv2_v"], raw["conv2_g"])
    lyr = {"w1_k": jnp.transpose(w1[:, :, ::-1], (2, 0, 1)),
           "w2_k": jnp.transpose(w2[:, :, ::-1], (2, 0, 1)),
           "dilation": raw["dilation"], "ds_w": None, "ds_b": None}
    if raw["ds_w"] is not None:
        lyr["ds_w"] = raw["ds_w"][:, :, 0]                  # (C_in, C_out)
        lyr["ds_b"] = raw["ds_b"]
    return lyr


def init_tcn_ae_params(key, n_features, n_hidden, n_emb, kernel_size):
    """Random parameters matching TcnAE's layer structure (eval mode)."""
    num_layers = len(n_hidden)
    keys = jax.random.split(key, 2 * (num_layers + 1))

    def conv_params(k, c0, c1, K, transposed):
        k0, k1 = jax.random.split(k)
        shape = (c0, c1, K) if transposed else (c1, c0, K)  # torch weight layout
        gdim = c0 if transposed else c1                     # weight_norm dim=0
        return (jax.random.normal(k0, shape, jnp.float32),
                0.3 + 0.4 * jax.random.uniform(k1, (gdim, 1, 1), jnp.float32))

    def block_params(k, c_in, c_out, D, transposed):
        k1, k2, k3, k4 = jax.random.split(k, 4)
        v1, g1 = conv_params(k1, c_in, c_out, kernel_size, transposed)
        v2, g2 = conv_params(k2, c_out, c_out, kernel_size, transposed)
        p = {"conv1_v": v1, "conv1_g": g1, "conv2_v": v2, "conv2_g": g2,
             "dilation": D, "ds_w": None, "ds_b": None}
        if c_in != c_out:     # 1x1 downsample conv always keeps its default bias
            shape = (c_in, c_out, 1) if transposed else (c_out, c_in, 1)
            p["ds_w"] = 0.1 * jax.random.normal(k3, shape, jnp.float32)
            p["ds_b"] = 0.1 * jax.random.normal(k4, (c_out,), jnp.float32)
        return p

    enc_raw, dec_raw = [], []
    for i in range(num_layers + 1):
        c_in = n_features if i == 0 else n_hidden[i - 1]
        c_out = n_emb if i == num_layers else n_hidden[i]
        enc_raw.append(block_params(keys[i], c_in, c_out, 2 ** i, False))
    dec_hidden = n_hidden[::-1]
    for i in range(num_layers + 1):
        c_in = n_emb if i == 0 else dec_hidden[i - 1]
        c_out = n_features if i == num_layers else dec_hidden[i]
        dec_raw.append(block_params(keys[num_layers + 1 + i], c_in, c_out,
                                    2 ** (num_layers - i), True))
    return enc_raw, dec_raw


# ---------------------------------------------------------------------------
# Pure-JAX reference of the PyTorch module (eval mode), for verification
# ---------------------------------------------------------------------------
_HI = jax.lax.Precision.HIGHEST


def _ref_conv1d(x, w, P, D):
    """Conv1d stride 1, zero pad P both sides, dilation D.  x:(N,Ci,L), w:(Co,Ci,K)."""
    N, C_in, L = x.shape
    C_out, _, K = w.shape
    xp = jnp.pad(x, ((0, 0), (0, 0), (P, P)))
    L_out = L + 2 * P - D * (K - 1)
    y = jnp.zeros((N, C_out, L_out), jnp.float32)
    for k in range(K):
        y = y + jnp.einsum("nil,oi->nol", xp[:, :, k * D:k * D + L_out],
                           w[:, :, k], precision=_HI)
    return y


def _ref_conv_transpose1d(x, w, P, D):
    """ConvTranspose1d stride 1, padding P, dilation D.  x:(N,Ci,L), w:(Ci,Co,K)."""
    N, C_in, L = x.shape
    _, C_out, K = w.shape
    L_out = L - 2 * P + D * (K - 1)
    y = jnp.zeros((N, C_out, L_out), jnp.float32)
    for k in range(K):
        lo, hi = max(0, k * D - P), min(L_out, L - P + k * D)
        if lo < hi:
            y = y.at[:, :, lo:hi].add(
                jnp.einsum("nil,io->nol", x[:, :, lo + P - k * D:hi + P - k * D],
                           w[:, :, k], precision=_HI))
    return y


def _ref_enc_block(x, raw, K):
    D = raw["dilation"]; P = (K - 1) * D; L = x.shape[2]
    w1 = _weight_norm(raw["conv1_v"], raw["conv1_g"])
    w2 = _weight_norm(raw["conv2_v"], raw["conv2_g"])
    h = jnp.maximum(_ref_conv1d(x, w1, P, D)[:, :, :L], 0.0)   # conv1+chomp1+act1
    h = jnp.maximum(_ref_conv1d(h, w2, P, D)[:, :, :L], 0.0)   # conv2+chomp2+act2
    if raw["ds_w"] is not None:
        res = (jnp.einsum("nil,oi->nol", x, raw["ds_w"][:, :, 0], precision=_HI)
               + raw["ds_b"][None, :, None])
    else:
        res = x
    return jnp.maximum(h + res, 0.0)


def _ref_dec_block(x, raw, K):
    D = raw["dilation"]; P = (K - 1) * D
    w1 = _weight_norm(raw["conv1_v"], raw["conv1_g"])
    w2 = _weight_norm(raw["conv2_v"], raw["conv2_g"])
    h = jnp.maximum(x, 0.0)
    h = jnp.concatenate([h, h[:, :, -P:]], axis=2)              # pad1
    h = _ref_conv_transpose1d(h, w1, P, D)                      # conv1
    h = jnp.maximum(h, 0.0)
    h = jnp.concatenate([h, h[:, :, -P:]], axis=2)              # pad2
    h = _ref_conv_transpose1d(h, w2, P, D)                      # conv2
    if raw["ds_w"] is not None:
        res = (jnp.einsum("nil,io->nol", x, raw["ds_w"][:, :, 0], precision=_HI)
               + raw["ds_b"][None, :, None])
    else:
        res = x
    return jnp.maximum(h + res, 0.0)


def _ref_tcn_ae(x_nlf, enc_raw, dec_raw, K):
    h = jnp.transpose(x_nlf, (0, 2, 1))
    for raw in enc_raw:
        h = _ref_enc_block(h, raw, K)
    enc = h
    for raw in dec_raw:
        h = _ref_dec_block(h, raw, K)
    return jnp.transpose(h, (0, 2, 1)), jnp.transpose(enc, (0, 2, 1))


# ---------------------------------------------------------------------------
if __name__ == "__main__":
    # Small-but-representative TcnAE config: 3 encoder + 3 decoder blocks,
    # dilations 1/2/4, exercising blocks with and without a 1x1 downsample.
    n_features, n_hidden, n_emb = 4, [8, 8], 6
    kernel_size = 2                                    # TcnAE default
    N, L = 2, 16

    key = jax.random.PRNGKey(0)
    k_x, k_p = jax.random.split(key)
    x = jax.random.normal(k_x, (N, L, n_features), jnp.float32)   # (batch, seq, feat)

    enc_raw, dec_raw = init_tcn_ae_params(k_p, n_features, n_hidden, n_emb,
                                          kernel_size)

    # Hoisted one-time weight prep (weight-norm, tap flip, layout) — not in the
    # per-forward path.
    enc_layers = [prep_encoder_block(r) for r in enc_raw]
    dec_layers = [prep_decoder_block(r) for r in dec_raw]

    fwd = jax.jit(lambda inp: tcn_ae_forward(inp, enc_layers, dec_layers))
    dec, enc = jax.block_until_ready(fwd(x))

    assert dec.shape == (N, L, n_features), dec.shape
    assert enc.shape == (N, L, n_emb), enc.shape

    dec_ref, enc_ref = _ref_tcn_ae(x, enc_raw, dec_raw, kernel_size)
    err_enc = float(jnp.max(jnp.abs(enc - enc_ref)))
    err_dec = float(jnp.max(jnp.abs(dec - dec_ref)))
    assert jnp.allclose(enc, enc_ref, atol=1e-3, rtol=1e-3), err_enc
    assert jnp.allclose(dec, dec_ref, atol=1e-3, rtol=1e-3), err_dec

    print("KERNEL_OK")
</pallas_src>

<mosaic_0001>
module attributes {stable_mosaic.version = 11 : i64} {
  func.func @_fused_block_kernel(%arg0: i32, %arg1: memref<1x16x8xf32, #tpu.memory_space<vmem>>, %arg2: memref<2x8x6xf32, #tpu.memory_space<vmem>>, %arg3: memref<2x6x6xf32, #tpu.memory_space<vmem>>, %arg4: memref<8x6xf32, #tpu.memory_space<vmem>>, %arg5: memref<1x6xf32, #tpu.memory_space<vmem>>, %arg6: memref<1x16x6xf32, #tpu.memory_space<vmem>>, %arg7: memref<24x8xf32, #tpu.memory_space<vmem>>, %arg8: memref<24x6xf32, #tpu.memory_space<vmem>>) attributes {dimension_semantics = [#tpu.dimension_semantics<parallel>], iteration_bounds = array<i64: 2>, scalar_prefetch = 0 : i64, scratch_operands = 2 : i64, tpu.core_type = #tpu.core_type<tc>, window_params = [{transform_indices = @transform_0, window_bounds = array<i64: 1, 16, 8>}, {pipeline_mode = #tpu.pipeline_mode<synchronous>, transform_indices = @transform_1, window_bounds = array<i64: 2, 8, 6>}, {pipeline_mode = #tpu.pipeline_mode<synchronous>, transform_indices = @transform_2, window_bounds = array<i64: 2, 6, 6>}, {pipeline_mode = #tpu.pipeline_mode<synchronous>, transform_indices = @transform_3, window_bounds = array<i64: 8, 6>}, {pipeline_mode = #tpu.pipeline_mode<synchronous>, transform_indices = @transform_4, window_bounds = array<i64: 1, 6>}, {transform_indices = @transform_5, window_bounds = array<i64: 1, 16, 6>}]} {
    %c0 = arith.constant 0 : index
    %c0_0 = arith.constant 0 : index
    %c0_1 = arith.constant 0 : index
    %0 = vector.load %arg1[%c0, %c0_0, %c0_1] : memref<1x16x8xf32, #tpu.memory_space<vmem>>, vector<1x16x8xf32>
    %1 = vector.shape_cast %0 : vector<1x16x8xf32> to vector<16x8xf32>
    %cst = arith.constant 0.000000e+00 : f32
    %2 = vector.broadcast %cst : f32 to vector<8x8xf32>
    %c0_2 = arith.constant 0 : index
    %c0_3 = arith.constant 0 : index
    %3 = vector.load %arg7[%c0_2, %c0_3] : memref<24x8xf32, #tpu.memory_space<vmem>>, vector<8x8xf32>
    tpu.vector_store %arg7[%c0_2, %c0_3], %2 {strides = array<i32>} : memref<24x8xf32, #tpu.memory_space<vmem>>, vector<8x8xf32>,
    %c8 = arith.constant 8 : index
    %c0_4 = arith.constant 0 : index
    %4 = vector.load %arg7[%c8, %c0_4] : memref<24x8xf32, #tpu.memory_space<vmem>>, vector<16x8xf32>
    tpu.vector_store %arg7[%c8, %c0_4], %1 {strides = array<i32>} : memref<24x8xf32, #tpu.memory_space<vmem>>, vector<16x8xf32>,
    %c0_5 = arith.constant 0 : index
    %c0_6 = arith.constant 0 : index
    %5 = vector.load %arg7[%c0_5, %c0_6] : memref<24x8xf32, #tpu.memory_space<vmem>>, vector<24x8xf32>
    %cst_7 = arith.constant 0.000000e+00 : f32
    %6 = vector.broadcast %cst_7 : f32 to vector<16x6xf32>
    %7 = vector.extract_strided_slice %5 {offsets = [4, 0], sizes = [16, 8], strides = [1, 1]} : vector<24x8xf32> to vector<16x8xf32>
    %c0_8 = arith.constant 0 : index
    %c0_9 = arith.constant 0 : index
    %c0_10 = arith.constant 0 : index
    %8 = vector.load %arg2[%c0_8, %c0_9, %c0_10] : memref<2x8x6xf32, #tpu.memory_space<vmem>>, vector<1x8x6xf32>
    %9 = vector.shape_cast %8 : vector<1x8x6xf32> to vector<8x6xf32>
    %cst_11 = arith.constant dense<0.000000e+00> : vector<16x6xf32>
    %10 = tpu.matmul %7, %9, %cst_11 {dimension_numbers = #tpu.dot_dimension_numbers<[1], [0], [0], [1], [0, 0, 1, 1], [], []>} : vector<16x8xf32>, vector<8x6xf32>, vector<16x6xf32> -> vector<16x6xf32>
    %11 = arith.addf %6, %10 : vector<16x6xf32>
    %12 = vector.extract_strided_slice %5 {offsets = [8, 0], sizes = [16, 8], strides = [1, 1]} : vector<24x8xf32> to vector<16x8xf32>
    %c1 = arith.constant 1 : index
    %c0_12 = arith.constant 0 : index
    %c0_13 = arith.constant 0 : index
    %13 = vector.load %arg2[%c1, %c0_12, %c0_13] : memref<2x8x6xf32, #tpu.memory_space<vmem>>, vector<1x8x6xf32>
    %14 = vector.shape_cast %13 : vector<1x8x6xf32> to vector<8x6xf32>
    %cst_14 = arith.constant dense<0.000000e+00> : vector<16x6xf32>
    %15 = tpu.matmul %12, %14, %cst_14 {dimension_numbers = #tpu.dot_dimension_numbers<[1], [0], [0], [1], [0, 0, 1, 1], [], []>} : vector<16x8xf32>, vector<8x6xf32>, vector<16x6xf32> -> vector<16x6xf32>
    %16 = arith.addf %11, %15 : vector<16x6xf32>
    %cst_15 = arith.constant 0.000000e+00 : f32
    %17 = vector.broadcast %cst_15 : f32 to vector<16x6xf32>
    %18 = arith.maximumf %16, %17 : vector<16x6xf32>
    %cst_16 = arith.constant 0.000000e+00 : f32
    %19 = vector.broadcast %cst_16 : f32 to vector<8x6xf32>
    %c0_17 = arith.constant 0 : index
    %c0_18 = arith.constant 0 : index
    %20 = vector.load %arg8[%c0_17, %c0_18] : memref<24x6xf32, #tpu.memory_space<vmem>>, vector<8x6xf32>
    tpu.vector_store %arg8[%c0_17, %c0_18], %19 {strides = array<i32>} : memref<24x6xf32, #tpu.memory_space<vmem>>, vector<8x6xf32>,
    %c8_19 = arith.constant 8 : index
    %c0_20 = arith.constant 0 : index
    %21 = vector.load %arg8[%c8_19, %c0_20] : memref<24x6xf32, #tpu.memory_space<vmem>>, vector<16x6xf32>
    tpu.vector_store %arg8[%c8_19, %c0_20], %18 {strides = array<i32>} : memref<24x6xf32, #tpu.memory_space<vmem>>, vector<16x6xf32>,
    %c0_21 = arith.constant 0 : index
    %c0_22 = arith.constant 0 : index
    %22 = vector.load %arg8[%c0_21, %c0_22] : memref<24x6xf32, #tpu.memory_space<vmem>>, vector<24x6xf32>
    %cst_23 = arith.constant 0.000000e+00 : f32
    %23 = vector.broadcast %cst_23 : f32 to vector<16x6xf32>
    %24 = vector.extract_strided_slice %22 {offsets = [4, 0], sizes = [16, 6], strides = [1, 1]} : vector<24x6xf32> to vector<16x6xf32>
    %c0_24 = arith.constant 0 : index
    %c0_25 = arith.constant 0 : index
    %c0_26 = arith.constant 0 : index
    %25 = vector.load %arg3[%c0_24, %c0_25, %c0_26] : memref<2x6x6xf32, #tpu.memory_space<vmem>>, vector<1x6x6xf32>
    %26 = vector.shape_cast %25 : vector<1x6x6xf32> to vector<6x6xf32>
    %cst_27 = arith.constant dense<0.000000e+00> : vector<16x6xf32>
    %27 = tpu.matmul %24, %26, %cst_27 {dimension_numbers = #tpu.dot_dimension_numbers<[1], [0], [0], [1], [0, 0, 1, 1], [], []>} : vector<16x6xf32>, vector<6x6xf32>, vector<16x6xf32> -> vector<16x6xf32>
    %28 = arith.addf %23, %27 : vector<16x6xf32>
    %29 = vector.extract_strided_slice %22 {offsets = [8, 0], sizes = [16, 6], strides = [1, 1]} : vector<24x6xf32> to vector<16x6xf32>
    %c1_28 = arith.constant 1 : index
    %c0_29 = arith.constant 0 : index
    %c0_30 = arith.constant 0 : index
    %30 = vector.load %arg3[%c1_28, %c0_29, %c0_30] : memref<2x6x6xf32, #tpu.memory_space<vmem>>, vector<1x6x6xf32>
    %31 = vector.shape_cast %30 : vector<1x6x6xf32> to vector<6x6xf32>
    %cst_31 = arith.constant dense<0.000000e+00> : vector<16x6xf32>
    %32 = tpu.matmul %29, %31, %cst_31 {dimension_numbers = #tpu.dot_dimension_numbers<[1], [0], [0], [1], [0, 0, 1, 1], [], []>} : vector<16x6xf32>, vector<6x6xf32>, vector<16x6xf32> -> vector<16x6xf32>
    %33 = arith.addf %28, %32 : vector<16x6xf32>
    %cst_32 = arith.constant 0.000000e+00 : f32
    %34 = vector.broadcast %cst_32 : f32 to vector<16x6xf32>
    %35 = arith.maximumf %33, %34 : vector<16x6xf32>
    %c0_33 = arith.constant 0 : index
    %c0_34 = arith.constant 0 : index
    %36 = vector.load %arg4[%c0_33, %c0_34] : memref<8x6xf32, #tpu.memory_space<vmem>>, vector<8x6xf32>
    %cst_35 = arith.constant dense<0.000000e+00> : vector<16x6xf32>
    %37 = tpu.matmul %1, %36, %cst_35 {dimension_numbers = #tpu.dot_dimension_numbers<[1], [0], [0], [1], [0, 0, 1, 1], [], []>} : vector<16x8xf32>, vector<8x6xf32>, vector<16x6xf32> -> vector<16x6xf32>
    %c0_36 = arith.constant 0 : index
    %c0_37 = arith.constant 0 : index
    %38 = vector.load %arg5[%c0_36, %c0_37] : memref<1x6xf32, #tpu.memory_space<vmem>>, vector<1x6xf32>
    %39 = vector.broadcast %38 : vector<1x6xf32> to vector<16x6xf32>
    %40 = arith.addf %37, %39 : vector<16x6xf32>
    %41 = arith.addf %35, %40 : vector<16x6xf32>
    %cst_38 = arith.constant 0.000000e+00 : f32
    %42 = vector.broadcast %cst_38 : f32 to vector<16x6xf32>
    %43 = arith.maximumf %41, %42 : vector<16x6xf32>
    %c0_39 = arith.constant 0 : index
    %c0_40 = arith.constant 0 : index
    %c0_41 = arith.constant 0 : index
    %44 = vector.load %arg6[%c0_39, %c0_40, %c0_41] : memref<1x16x6xf32, #tpu.memory_space<vmem>>, vector<1x16x6xf32>
    %45 = vector.shape_cast %44 : vector<1x16x6xf32> to vector<16x6xf32>
    %46 = vector.shape_cast %43 : vector<16x6xf32> to vector<1x16x6xf32>
    tpu.vector_store %arg6[%c0_39, %c0_40, %c0_41], %46 {strides = array<i32>} : memref<1x16x6xf32, #tpu.memory_space<vmem>>, vector<1x16x6xf32>,
    return
  }
  func.func @transform_0(%arg0: i32) -> (i32, i32, i32) {
    %c0_i32 = arith.constant 0 : i32
    %c0_i32_0 = arith.constant 0 : i32
    %c0_i32_1 = arith.constant 0 : i32
    return %arg0, %c0_i32, %c0_i32_0 : i32, i32, i32
  }
  func.func @transform_1(%arg0: i32) -> (i32, i32, i32) {
    %c0_i32 = arith.constant 0 : i32
    %c0_i32_0 = arith.constant 0 : i32
    %c0_i32_1 = arith.constant 0 : i32
    %c0_i32_2 = arith.constant 0 : i32
    return %c0_i32, %c0_i32_0, %c0_i32_1 : i32, i32, i32
  }
  func.func @transform_2(%arg0: i32) -> (i32, i32, i32) {
    %c0_i32 = arith.constant 0 : i32
    %c0_i32_0 = arith.constant 0 : i32
    %c0_i32_1 = arith.constant 0 : i32
    %c0_i32_2 = arith.constant 0 : i32
    return %c0_i32, %c0_i32_0, %c0_i32_1 : i32, i32, i32
  }
  func.func @transform_3(%arg0: i32) -> (i32, i32) {
    %c0_i32 = arith.constant 0 : i32
    %c0_i32_0 = arith.constant 0 : i32
    %c0_i32_1 = arith.constant 0 : i32
    return %c0_i32, %c0_i32_0 : i32, i32
  }
  func.func @transform_4(%arg0: i32) -> (i32, i32) {
    %c0_i32 = arith.constant 0 : i32
    %c0_i32_0 = arith.constant 0 : i32
    %c0_i32_1 = arith.constant 0 : i32
    return %c0_i32, %c0_i32_0 : i32, i32
  }
  func.func @transform_5(%arg0: i32) -> (i32, i32, i32) {
    %c0_i32 = arith.constant 0 : i32
    %c0_i32_0 = arith.constant 0 : i32
    %c0_i32_1 = arith.constant 0 : i32
    return %arg0, %c0_i32, %c0_i32_0 : i32, i32, i32
  }
}

module attributes {stable_mosaic.version = 11 : i64} {
  func.func @_fused_block_kernel(%arg0: i32, %arg1: memref<1x16x4xf32, #tpu.memory_space<vmem>>, %arg2: memref<2x4x8xf32, #tpu.memory_space<vmem>>, %arg3: memref<2x8x8xf32, #tpu.memory_space<vmem>>, %arg4: memref<4x8xf32, #tpu.memory_space<vmem>>, %arg5: memref<1x8xf32, #tpu.memory_space<vmem>>, %arg6: memref<1x16x8xf32, #tpu.memory_space<vmem>>, %arg7: memref<24x4xf32, #tpu.memory_space<vmem>>, %arg8: memref<24x8xf32, #tpu.memory_space<vmem>>) attributes {dimension_semantics = [#tpu.dimension_semantics<parallel>], iteration_bounds = array<i64: 2>, scalar_prefetch = 0 : i64, scratch_operands = 2 : i64, tpu.core_type = #tpu.core_type<tc>, window_params = [{transform_indices = @transform_0, window_bounds = array<i64: 1, 16, 4>}, {pipeline_mode = #tpu.pipeline_mode<synchronous>, transform_indices = @transform_1, window_bounds = array<i64: 2, 4, 8>}, {pipeline_mode = #tpu.pipeline_mode<synchronous>, transform_indices = @transform_2, window_bounds = array<i64: 2, 8, 8>}, {pipeline_mode = #tpu.pipeline_mode<synchronous>, transform_indices = @transform_3, window_bounds = array<i64: 4, 8>}, {pipeline_mode = #tpu.pipeline_mode<synchronous>, transform_indices = @transform_4, window_bounds = array<i64: 1, 8>}, {transform_indices = @transform_5, window_bounds = array<i64: 1, 16, 8>}]} {
    %c0 = arith.constant 0 : index
    %c0_0 = arith.constant 0 : index
    %c0_1 = arith.constant 0 : index
    %0 = vector.load %arg1[%c0, %c0_0, %c0_1] : memref<1x16x4xf32, #tpu.memory_space<vmem>>, vector<1x16x4xf32>
    %1 = vector.shape_cast %0 : vector<1x16x4xf32> to vector<16x4xf32>
    %cst = arith.constant 0.000000e+00 : f32
    %2 = vector.broadcast %cst : f32 to vector<8x4xf32>
    %c0_2 = arith.constant 0 : index
    %c0_3 = arith.constant 0 : index
    %3 = vector.load %arg7[%c0_2, %c0_3] : memref<24x4xf32, #tpu.memory_space<vmem>>, vector<8x4xf32>
    tpu.vector_store %arg7[%c0_2, %c0_3], %2 {strides = array<i32>} : memref<24x4xf32, #tpu.memory_space<vmem>>, vector<8x4xf32>,
    %c8 = arith.constant 8 : index
    %c0_4 = arith.constant 0 : index
    %4 = vector.load %arg7[%c8, %c0_4] : memref<24x4xf32, #tpu.memory_space<vmem>>, vector<16x4xf32>
    tpu.vector_store %arg7[%c8, %c0_4], %1 {strides = array<i32>} : memref<24x4xf32, #tpu.memory_space<vmem>>, vector<16x4xf32>,
    %c0_5 = arith.constant 0 : index
    %c0_6 = arith.constant 0 : index
    %5 = vector.load %arg7[%c0_5, %c0_6] : memref<24x4xf32, #tpu.memory_space<vmem>>, vector<24x4xf32>
    %cst_7 = arith.constant 0.000000e+00 : f32
    %6 = vector.broadcast %cst_7 : f32 to vector<16x8xf32>
    %7 = vector.extract_strided_slice %5 {offsets = [7, 0], sizes = [16, 4], strides = [1, 1]} : vector<24x4xf32> to vector<16x4xf32>
    %c0_8 = arith.constant 0 : index
    %c0_9 = arith.constant 0 : index
    %c0_10 = arith.constant 0 : index
    %8 = vector.load %arg2[%c0_8, %c0_9, %c0_10] : memref<2x4x8xf32, #tpu.memory_space<vmem>>, vector<1x4x8xf32>
    %9 = vector.shape_cast %8 : vector<1x4x8xf32> to vector<4x8xf32>
    %cst_11 = arith.constant dense<0.000000e+00> : vector<16x8xf32>
    %10 = tpu.matmul %7, %9, %cst_11 {dimension_numbers = #tpu.dot_dimension_numbers<[1], [0], [0], [1], [0, 0, 1, 1], [], []>} : vector<16x4xf32>, vector<4x8xf32>, vector<16x8xf32> -> vector<16x8xf32>
    %11 = arith.addf %6, %10 : vector<16x8xf32>
    %12 = vector.extract_strided_slice %5 {offsets = [8, 0], sizes = [16, 4], strides = [1, 1]} : vector<24x4xf32> to vector<16x4xf32>
    %c1 = arith.constant 1 : index
    %c0_12 = arith.constant 0 : index
    %c0_13 = arith.constant 0 : index
    %13 = vector.load %arg2[%c1, %c0_12, %c0_13] : memref<2x4x8xf32, #tpu.memory_space<vmem>>, vector<1x4x8xf32>
    %14 = vector.shape_cast %13 : vector<1x4x8xf32> to vector<4x8xf32>
    %cst_14 = arith.constant dense<0.000000e+00> : vector<16x8xf32>
    %15 = tpu.matmul %12, %14, %cst_14 {dimension_numbers = #tpu.dot_dimension_numbers<[1], [0], [0], [1], [0, 0, 1, 1], [], []>} : vector<16x4xf32>, vector<4x8xf32>, vector<16x8xf32> -> vector<16x8xf32>
    %16 = arith.addf %11, %15 : vector<16x8xf32>
    %cst_15 = arith.constant 0.000000e+00 : f32
    %17 = vector.broadcast %cst_15 : f32 to vector<16x8xf32>
    %18 = arith.maximumf %16, %17 : vector<16x8xf32>
    %cst_16 = arith.constant 0.000000e+00 : f32
    %19 = vector.broadcast %cst_16 : f32 to vector<8x8xf32>
    %c0_17 = arith.constant 0 : index
    %c0_18 = arith.constant 0 : index
    %20 = vector.load %arg8[%c0_17, %c0_18] : memref<24x8xf32, #tpu.memory_space<vmem>>, vector<8x8xf32>
    tpu.vector_store %arg8[%c0_17, %c0_18], %19 {strides = array<i32>} : memref<24x8xf32, #tpu.memory_space<vmem>>, vector<8x8xf32>,
    %c8_19 = arith.constant 8 : index
    %c0_20 = arith.constant 0 : index
    %21 = vector.load %arg8[%c8_19, %c0_20] : memref<24x8xf32, #tpu.memory_space<vmem>>, vector<16x8xf32>
    tpu.vector_store %arg8[%c8_19, %c0_20], %18 {strides = array<i32>} : memref<24x8xf32, #tpu.memory_space<vmem>>, vector<16x8xf32>,
    %c0_21 = arith.constant 0 : index
    %c0_22 = arith.constant 0 : index
    %22 = vector.load %arg8[%c0_21, %c0_22] : memref<24x8xf32, #tpu.memory_space<vmem>>, vector<24x8xf32>
    %cst_23 = arith.constant 0.000000e+00 : f32
    %23 = vector.broadcast %cst_23 : f32 to vector<16x8xf32>
    %24 = vector.extract_strided_slice %22 {offsets = [7, 0], sizes = [16, 8], strides = [1, 1]} : vector<24x8xf32> to vector<16x8xf32>
    %c0_24 = arith.constant 0 : index
    %c0_25 = arith.constant 0 : index
    %c0_26 = arith.constant 0 : index
    %25 = vector.load %arg3[%c0_24, %c0_25, %c0_26] : memref<2x8x8xf32, #tpu.memory_space<vmem>>, vector<1x8x8xf32>
    %26 = vector.shape_cast %25 : vector<1x8x8xf32> to vector<8x8xf32>
    %cst_27 = arith.constant dense<0.000000e+00> : vector<16x8xf32>
    %27 = tpu.matmul %24, %26, %cst_27 {dimension_numbers = #tpu.dot_dimension_numbers<[1], [0], [0], [1], [0, 0, 1, 1], [], []>} : vector<16x8xf32>, vector<8x8xf32>, vector<16x8xf32> -> vector<16x8xf32>
    %28 = arith.addf %23, %27 : vector<16x8xf32>
    %29 = vector.extract_strided_slice %22 {offsets = [8, 0], sizes = [16, 8], strides = [1, 1]} : vector<24x8xf32> to vector<16x8xf32>
    %c1_28 = arith.constant 1 : index
    %c0_29 = arith.constant 0 : index
    %c0_30 = arith.constant 0 : index
    %30 = vector.load %arg3[%c1_28, %c0_29, %c0_30] : memref<2x8x8xf32, #tpu.memory_space<vmem>>, vector<1x8x8xf32>
    %31 = vector.shape_cast %30 : vector<1x8x8xf32> to vector<8x8xf32>
    %cst_31 = arith.constant dense<0.000000e+00> : vector<16x8xf32>
    %32 = tpu.matmul %29, %31, %cst_31 {dimension_numbers = #tpu.dot_dimension_numbers<[1], [0], [0], [1], [0, 0, 1, 1], [], []>} : vector<16x8xf32>, vector<8x8xf32>, vector<16x8xf32> -> vector<16x8xf32>
    %33 = arith.addf %28, %32 : vector<16x8xf32>
    %cst_32 = arith.constant 0.000000e+00 : f32
    %34 = vector.broadcast %cst_32 : f32 to vector<16x8xf32>
    %35 = arith.maximumf %33, %34 : vector<16x8xf32>
    %c0_33 = arith.constant 0 : index
    %c0_34 = arith.constant 0 : index
    %36 = vector.load %arg4[%c0_33, %c0_34] : memref<4x8xf32, #tpu.memory_space<vmem>>, vector<4x8xf32>
    %cst_35 = arith.constant dense<0.000000e+00> : vector<16x8xf32>
    %37 = tpu.matmul %1, %36, %cst_35 {dimension_numbers = #tpu.dot_dimension_numbers<[1], [0], [0], [1], [0, 0, 1, 1], [], []>} : vector<16x4xf32>, vector<4x8xf32>, vector<16x8xf32> -> vector<16x8xf32>
    %c0_36 = arith.constant 0 : index
    %c0_37 = arith.constant 0 : index
    %38 = vector.load %arg5[%c0_36, %c0_37] : memref<1x8xf32, #tpu.memory_space<vmem>>, vector<1x8xf32>
    %39 = vector.broadcast %38 : vector<1x8xf32> to vector<16x8xf32>
    %40 = arith.addf %37, %39 : vector<16x8xf32>
    %41 = arith.addf %35, %40 : vector<16x8xf32>
    %cst_38 = arith.constant 0.000000e+00 : f32
    %42 = vector.broadcast %cst_38 : f32 to vector<16x8xf32>
    %43 = arith.maximumf %41, %42 : vector<16x8xf32>
    %c0_39 = arith.constant 0 : index
    %c0_40 = arith.constant 0 : index
    %c0_41 = arith.constant 0 : index
    %44 = vector.load %arg6[%c0_39, %c0_40, %c0_41] : memref<1x16x8xf32, #tpu.memory_space<vmem>>, vector<1x16x8xf32>
    %45 = vector.shape_cast %44 : vector<1x16x8xf32> to vector<16x8xf32>
    %46 = vector.shape_cast %43 : vector<16x8xf32> to vector<1x16x8xf32>
    tpu.vector_store %arg6[%c0_39, %c0_40, %c0_41], %46 {strides = array<i32>} : memref<1x16x8xf32, #tpu.memory_space<vmem>>, vector<1x16x8xf32>,
    return
  }
  func.func @transform_0(%arg0: i32) -> (i32, i32, i32) {
    %c0_i32 = arith.constant 0 : i32
    %c0_i32_0 = arith.constant 0 : i32
    %c0_i32_1 = arith.constant 0 : i32
    return %arg0, %c0_i32, %c0_i32_0 : i32, i32, i32
  }
  func.func @transform_1(%arg0: i32) -> (i32, i32, i32) {
    %c0_i32 = arith.constant 0 : i32
    %c0_i32_0 = arith.constant 0 : i32
    %c0_i32_1 = arith.constant 0 : i32
    %c0_i32_2 = arith.constant 0 : i32
    return %c0_i32, %c0_i32_0, %c0_i32_1 : i32, i32, i32
  }
  func.func @transform_2(%arg0: i32) -> (i32, i32, i32) {
    %c0_i32 = arith.constant 0 : i32
    %c0_i32_0 = arith.constant 0 : i32
    %c0_i32_1 = arith.constant 0 : i32
    %c0_i32_2 = arith.constant 0 : i32
    return %c0_i32, %c0_i32_0, %c0_i32_1 : i32, i32, i32
  }
  func.func @transform_3(%arg0: i32) -> (i32, i32) {
    %c0_i32 = arith.constant 0 : i32
    %c0_i32_0 = arith.constant 0 : i32
    %c0_i32_1 = arith.constant 0 : i32
    return %c0_i32, %c0_i32_0 : i32, i32
  }
  func.func @transform_4(%arg0: i32) -> (i32, i32) {
    %c0_i32 = arith.constant 0 : i32
    %c0_i32_0 = arith.constant 0 : i32
    %c0_i32_1 = arith.constant 0 : i32
    return %c0_i32, %c0_i32_0 : i32, i32
  }
  func.func @transform_5(%arg0: i32) -> (i32, i32, i32) {
    %c0_i32 = arith.constant 0 : i32
    %c0_i32_0 = arith.constant 0 : i32
    %c0_i32_1 = arith.constant 0 : i32
    return %arg0, %c0_i32, %c0_i32_0 : i32, i32, i32
  }
}

module attributes {stable_mosaic.version = 11 : i64} {
  func.func @_fused_block_kernel(%arg0: i32, %arg1: memref<1x16x8xf32, #tpu.memory_space<vmem>>, %arg2: memref<2x8x8xf32, #tpu.memory_space<vmem>>, %arg3: memref<2x8x8xf32, #tpu.memory_space<vmem>>, %arg4: memref<1x16x8xf32, #tpu.memory_space<vmem>>, %arg5: memref<24x8xf32, #tpu.memory_space<vmem>>, %arg6: memref<24x8xf32, #tpu.memory_space<vmem>>) attributes {dimension_semantics = [#tpu.dimension_semantics<parallel>], iteration_bounds = array<i64: 2>, scalar_prefetch = 0 : i64, scratch_operands = 2 : i64, tpu.core_type = #tpu.core_type<tc>, window_params = [{transform_indices = @transform_0, window_bounds = array<i64: 1, 16, 8>}, {pipeline_mode = #tpu.pipeline_mode<synchronous>, transform_indices = @transform_1, window_bounds = array<i64: 2, 8, 8>}, {pipeline_mode = #tpu.pipeline_mode<synchronous>, transform_indices = @transform_2, window_bounds = array<i64: 2, 8, 8>}, {transform_indices = @transform_3, window_bounds = array<i64: 1, 16, 8>}]} {
    %c0 = arith.constant 0 : index
    %c0_0 = arith.constant 0 : index
    %c0_1 = arith.constant 0 : index
    %0 = vector.load %arg1[%c0, %c0_0, %c0_1] : memref<1x16x8xf32, #tpu.memory_space<vmem>>, vector<1x16x8xf32>
    %1 = vector.shape_cast %0 : vector<1x16x8xf32> to vector<16x8xf32>
    %cst = arith.constant 0.000000e+00 : f32
    %2 = vector.broadcast %cst : f32 to vector<8x8xf32>
    %c0_2 = arith.constant 0 : index
    %c0_3 = arith.constant 0 : index
    %3 = vector.load %arg5[%c0_2, %c0_3] : memref<24x8xf32, #tpu.memory_space<vmem>>, vector<8x8xf32>
    tpu.vector_store %arg5[%c0_2, %c0_3], %2 {strides = array<i32>} : memref<24x8xf32, #tpu.memory_space<vmem>>, vector<8x8xf32>,
    %c8 = arith.constant 8 : index
    %c0_4 = arith.constant 0 : index
    %4 = vector.load %arg5[%c8, %c0_4] : memref<24x8xf32, #tpu.memory_space<vmem>>, vector<16x8xf32>
    tpu.vector_store %arg5[%c8, %c0_4], %1 {strides = array<i32>} : memref<24x8xf32, #tpu.memory_space<vmem>>, vector<16x8xf32>,
    %c0_5 = arith.constant 0 : index
    %c0_6 = arith.constant 0 : index
    %5 = vector.load %arg5[%c0_5, %c0_6] : memref<24x8xf32, #tpu.memory_space<vmem>>, vector<24x8xf32>
    %cst_7 = arith.constant 0.000000e+00 : f32
    %6 = vector.broadcast %cst_7 : f32 to vector<16x8xf32>
    %7 = vector.extract_strided_slice %5 {offsets = [6, 0], sizes = [16, 8], strides = [1, 1]} : vector<24x8xf32> to vector<16x8xf32>
    %c0_8 = arith.constant 0 : index
    %c0_9 = arith.constant 0 : index
    %c0_10 = arith.constant 0 : index
    %8 = vector.load %arg2[%c0_8, %c0_9, %c0_10] : memref<2x8x8xf32, #tpu.memory_space<vmem>>, vector<1x8x8xf32>
    %9 = vector.shape_cast %8 : vector<1x8x8xf32> to vector<8x8xf32>
    %cst_11 = arith.constant dense<0.000000e+00> : vector<16x8xf32>
    %10 = tpu.matmul %7, %9, %cst_11 {dimension_numbers = #tpu.dot_dimension_numbers<[1], [0], [0], [1], [0, 0, 1, 1], [], []>} : vector<16x8xf32>, vector<8x8xf32>, vector<16x8xf32> -> vector<16x8xf32>
    %11 = arith.addf %6, %10 : vector<16x8xf32>
    %12 = vector.extract_strided_slice %5 {offsets = [8, 0], sizes = [16, 8], strides = [1, 1]} : vector<24x8xf32> to vector<16x8xf32>
    %c1 = arith.constant 1 : index
    %c0_12 = arith.constant 0 : index
    %c0_13 = arith.constant 0 : index
    %13 = vector.load %arg2[%c1, %c0_12, %c0_13] : memref<2x8x8xf32, #tpu.memory_space<vmem>>, vector<1x8x8xf32>
    %14 = vector.shape_cast %13 : vector<1x8x8xf32> to vector<8x8xf32>
    %cst_14 = arith.constant dense<0.000000e+00> : vector<16x8xf32>
    %15 = tpu.matmul %12, %14, %cst_14 {dimension_numbers = #tpu.dot_dimension_numbers<[1], [0], [0], [1], [0, 0, 1, 1], [], []>} : vector<16x8xf32>, vector<8x8xf32>, vector<16x8xf32> -> vector<16x8xf32>
    %16 = arith.addf %11, %15 : vector<16x8xf32>
    %cst_15 = arith.constant 0.000000e+00 : f32
    %17 = vector.broadcast %cst_15 : f32 to vector<16x8xf32>
    %18 = arith.maximumf %16, %17 : vector<16x8xf32>
    %cst_16 = arith.constant 0.000000e+00 : f32
    %19 = vector.broadcast %cst_16 : f32 to vector<8x8xf32>
    %c0_17 = arith.constant 0 : index
    %c0_18 = arith.constant 0 : index
    %20 = vector.load %arg6[%c0_17, %c0_18] : memref<24x8xf32, #tpu.memory_space<vmem>>, vector<8x8xf32>
    tpu.vector_store %arg6[%c0_17, %c0_18], %19 {strides = array<i32>} : memref<24x8xf32, #tpu.memory_space<vmem>>, vector<8x8xf32>,
    %c8_19 = arith.constant 8 : index
    %c0_20 = arith.constant 0 : index
    %21 = vector.load %arg6[%c8_19, %c0_20] : memref<24x8xf32, #tpu.memory_space<vmem>>, vector<16x8xf32>
    tpu.vector_store %arg6[%c8_19, %c0_20], %18 {strides = array<i32>} : memref<24x8xf32, #tpu.memory_space<vmem>>, vector<16x8xf32>,
    %c0_21 = arith.constant 0 : index
    %c0_22 = arith.constant 0 : index
    %22 = vector.load %arg6[%c0_21, %c0_22] : memref<24x8xf32, #tpu.memory_space<vmem>>, vector<24x8xf32>
    %cst_23 = arith.constant 0.000000e+00 : f32
    %23 = vector.broadcast %cst_23 : f32 to vector<16x8xf32>
    %24 = vector.extract_strided_slice %22 {offsets = [6, 0], sizes = [16, 8], strides = [1, 1]} : vector<24x8xf32> to vector<16x8xf32>
    %c0_24 = arith.constant 0 : index
    %c0_25 = arith.constant 0 : index
    %c0_26 = arith.constant 0 : index
    %25 = vector.load %arg3[%c0_24, %c0_25, %c0_26] : memref<2x8x8xf32, #tpu.memory_space<vmem>>, vector<1x8x8xf32>
    %26 = vector.shape_cast %25 : vector<1x8x8xf32> to vector<8x8xf32>
    %cst_27 = arith.constant dense<0.000000e+00> : vector<16x8xf32>
    %27 = tpu.matmul %24, %26, %cst_27 {dimension_numbers = #tpu.dot_dimension_numbers<[1], [0], [0], [1], [0, 0, 1, 1], [], []>} : vector<16x8xf32>, vector<8x8xf32>, vector<16x8xf32> -> vector<16x8xf32>
    %28 = arith.addf %23, %27 : vector<16x8xf32>
    %29 = vector.extract_strided_slice %22 {offsets = [8, 0], sizes = [16, 8], strides = [1, 1]} : vector<24x8xf32> to vector<16x8xf32>
    %c1_28 = arith.constant 1 : index
    %c0_29 = arith.constant 0 : index
    %c0_30 = arith.constant 0 : index
    %30 = vector.load %arg3[%c1_28, %c0_29, %c0_30] : memref<2x8x8xf32, #tpu.memory_space<vmem>>, vector<1x8x8xf32>
    %31 = vector.shape_cast %30 : vector<1x8x8xf32> to vector<8x8xf32>
    %cst_31 = arith.constant dense<0.000000e+00> : vector<16x8xf32>
    %32 = tpu.matmul %29, %31, %cst_31 {dimension_numbers = #tpu.dot_dimension_numbers<[1], [0], [0], [1], [0, 0, 1, 1], [], []>} : vector<16x8xf32>, vector<8x8xf32>, vector<16x8xf32> -> vector<16x8xf32>
    %33 = arith.addf %28, %32 : vector<16x8xf32>
    %cst_32 = arith.constant 0.000000e+00 : f32
    %34 = vector.broadcast %cst_32 : f32 to vector<16x8xf32>
    %35 = arith.maximumf %33, %34 : vector<16x8xf32>
    %36 = arith.addf %35, %1 : vector<16x8xf32>
    %cst_33 = arith.constant 0.000000e+00 : f32
    %37 = vector.broadcast %cst_33 : f32 to vector<16x8xf32>
    %38 = arith.maximumf %36, %37 : vector<16x8xf32>
    %c0_34 = arith.constant 0 : index
    %c0_35 = arith.constant 0 : index
    %c0_36 = arith.constant 0 : index
    %39 = vector.load %arg4[%c0_34, %c0_35, %c0_36] : memref<1x16x8xf32, #tpu.memory_space<vmem>>, vector<1x16x8xf32>
    %40 = vector.shape_cast %39 : vector<1x16x8xf32> to vector<16x8xf32>
    %41 = vector.shape_cast %38 : vector<16x8xf32> to vector<1x16x8xf32>
    tpu.vector_store %arg4[%c0_34, %c0_35, %c0_36], %41 {strides = array<i32>} : memref<1x16x8xf32, #tpu.memory_space<vmem>>, vector<1x16x8xf32>,
    return
  }
  func.func @transform_0(%arg0: i32) -> (i32, i32, i32) {
    %c0_i32 = arith.constant 0 : i32
    %c0_i32_0 = arith.constant 0 : i32
    %c0_i32_1 = arith.constant 0 : i32
    return %arg0, %c0_i32, %c0_i32_0 : i32, i32, i32
  }
  func.func @transform_1(%arg0: i32) -> (i32, i32, i32) {
    %c0_i32 = arith.constant 0 : i32
    %c0_i32_0 = arith.constant 0 : i32
    %c0_i32_1 = arith.constant 0 : i32
    %c0_i32_2 = arith.constant 0 : i32
    return %c0_i32, %c0_i32_0, %c0_i32_1 : i32, i32, i32
  }
  func.func @transform_2(%arg0: i32) -> (i32, i32, i32) {
    %c0_i32 = arith.constant 0 : i32
    %c0_i32_0 = arith.constant 0 : i32
    %c0_i32_1 = arith.constant 0 : i32
    %c0_i32_2 = arith.constant 0 : i32
    return %c0_i32, %c0_i32_0, %c0_i32_1 : i32, i32, i32
  }
  func.func @transform_3(%arg0: i32) -> (i32, i32, i32) {
    %c0_i32 = arith.constant 0 : i32
    %c0_i32_0 = arith.constant 0 : i32
    %c0_i32_1 = arith.constant 0 : i32
    return %arg0, %c0_i32, %c0_i32_0 : i32, i32, i32
  }
}

module attributes {stable_mosaic.version = 11 : i64} {
  func.func @_fused_block_kernel(%arg0: i32, %arg1: memref<1x16x6xf32, #tpu.memory_space<vmem>>, %arg2: memref<2x6x8xf32, #tpu.memory_space<vmem>>, %arg3: memref<2x8x8xf32, #tpu.memory_space<vmem>>, %arg4: memref<6x8xf32, #tpu.memory_space<vmem>>, %arg5: memref<1x8xf32, #tpu.memory_space<vmem>>, %arg6: memref<1x16x8xf32, #tpu.memory_space<vmem>>, %arg7: memref<20x6xf32, #tpu.memory_space<vmem>>, %arg8: memref<20x8xf32, #tpu.memory_space<vmem>>) attributes {dimension_semantics = [#tpu.dimension_semantics<parallel>], iteration_bounds = array<i64: 2>, scalar_prefetch = 0 : i64, scratch_operands = 2 : i64, tpu.core_type = #tpu.core_type<tc>, window_params = [{transform_indices = @transform_0, window_bounds = array<i64: 1, 16, 6>}, {pipeline_mode = #tpu.pipeline_mode<synchronous>, transform_indices = @transform_1, window_bounds = array<i64: 2, 6, 8>}, {pipeline_mode = #tpu.pipeline_mode<synchronous>, transform_indices = @transform_2, window_bounds = array<i64: 2, 8, 8>}, {pipeline_mode = #tpu.pipeline_mode<synchronous>, transform_indices = @transform_3, window_bounds = array<i64: 6, 8>}, {pipeline_mode = #tpu.pipeline_mode<synchronous>, transform_indices = @transform_4, window_bounds = array<i64: 1, 8>}, {transform_indices = @transform_5, window_bounds = array<i64: 1, 16, 8>}]} {
    %c0 = arith.constant 0 : index
    %c0_0 = arith.constant 0 : index
    %c0_1 = arith.constant 0 : index
    %0 = vector.load %arg1[%c0, %c0_0, %c0_1] : memref<1x16x6xf32, #tpu.memory_space<vmem>>, vector<1x16x6xf32>
    %1 = vector.shape_cast %0 : vector<1x16x6xf32> to vector<16x6xf32>
    %cst = arith.constant 0.000000e+00 : f32
    %2 = vector.broadcast %cst : f32 to vector<16x6xf32>
    %3 = arith.maximumf %1, %2 : vector<16x6xf32>
    %c0_2 = arith.constant 0 : index
    %c0_3 = arith.constant 0 : index
    %4 = vector.load %arg7[%c0_2, %c0_3] : memref<20x6xf32, #tpu.memory_space<vmem>>, vector<16x6xf32>
    tpu.vector_store %arg7[%c0_2, %c0_3], %3 {strides = array<i32>} : memref<20x6xf32, #tpu.memory_space<vmem>>, vector<16x6xf32>,
    %5 = vector.extract_strided_slice %3 {offsets = [12, 0], sizes = [4, 6], strides = [1, 1]} : vector<16x6xf32> to vector<4x6xf32>
    %c16 = arith.constant 16 : index
    %c0_4 = arith.constant 0 : index
    %6 = vector.load %arg7[%c16, %c0_4] : memref<20x6xf32, #tpu.memory_space<vmem>>, vector<4x6xf32>
    tpu.vector_store %arg7[%c16, %c0_4], %5 {strides = array<i32>} : memref<20x6xf32, #tpu.memory_space<vmem>>, vector<4x6xf32>,
    %c0_5 = arith.constant 0 : index
    %c0_6 = arith.constant 0 : index
    %7 = vector.load %arg7[%c0_5, %c0_6] : memref<20x6xf32, #tpu.memory_space<vmem>>, vector<20x6xf32>
    %cst_7 = arith.constant 0.000000e+00 : f32
    %8 = vector.broadcast %cst_7 : f32 to vector<16x8xf32>
    %9 = vector.extract_strided_slice %7 {offsets = [0, 0], sizes = [16, 6], strides = [1, 1]} : vector<20x6xf32> to vector<16x6xf32>
    %c0_8 = arith.constant 0 : index
    %c0_9 = arith.constant 0 : index
    %c0_10 = arith.constant 0 : index
    %10 = vector.load %arg2[%c0_8, %c0_9, %c0_10] : memref<2x6x8xf32, #tpu.memory_space<vmem>>, vector<1x6x8xf32>
    %11 = vector.shape_cast %10 : vector<1x6x8xf32> to vector<6x8xf32>
    %cst_11 = arith.constant dense<0.000000e+00> : vector<16x8xf32>
    %12 = tpu.matmul %9, %11, %cst_11 {dimension_numbers = #tpu.dot_dimension_numbers<[1], [0], [0], [1], [0, 0, 1, 1], [], []>} : vector<16x6xf32>, vector<6x8xf32>, vector<16x8xf32> -> vector<16x8xf32>
    %13 = arith.addf %8, %12 : vector<16x8xf32>
    %14 = vector.extract_strided_slice %7 {offsets = [4, 0], sizes = [16, 6], strides = [1, 1]} : vector<20x6xf32> to vector<16x6xf32>
    %c1 = arith.constant 1 : index
    %c0_12 = arith.constant 0 : index
    %c0_13 = arith.constant 0 : index
    %15 = vector.load %arg2[%c1, %c0_12, %c0_13] : memref<2x6x8xf32, #tpu.memory_space<vmem>>, vector<1x6x8xf32>
    %16 = vector.shape_cast %15 : vector<1x6x8xf32> to vector<6x8xf32>
    %cst_14 = arith.constant dense<0.000000e+00> : vector<16x8xf32>
    %17 = tpu.matmul %14, %16, %cst_14 {dimension_numbers = #tpu.dot_dimension_numbers<[1], [0], [0], [1], [0, 0, 1, 1], [], []>} : vector<16x6xf32>, vector<6x8xf32>, vector<16x8xf32> -> vector<16x8xf32>
    %18 = arith.addf %13, %17 : vector<16x8xf32>
    %cst_15 = arith.constant 0.000000e+00 : f32
    %19 = vector.broadcast %cst_15 : f32 to vector<16x8xf32>
    %20 = arith.maximumf %18, %19 : vector<16x8xf32>
    %c0_16 = arith.constant 0 : index
    %c0_17 = arith.constant 0 : index
    %21 = vector.load %arg8[%c0_16, %c0_17] : memref<20x8xf32, #tpu.memory_space<vmem>>, vector<16x8xf32>
    tpu.vector_store %arg8[%c0_16, %c0_17], %20 {strides = array<i32>} : memref<20x8xf32, #tpu.memory_space<vmem>>, vector<16x8xf32>,
    %22 = vector.extract_strided_slice %20 {offsets = [12, 0], sizes = [4, 8], strides = [1, 1]} : vector<16x8xf32> to vector<4x8xf32>
    %c16_18 = arith.constant 16 : index
    %c0_19 = arith.constant 0 : index
    %23 = vector.load %arg8[%c16_18, %c0_19] : memref<20x8xf32, #tpu.memory_space<vmem>>, vector<4x8xf32>
    tpu.vector_store %arg8[%c16_18, %c0_19], %22 {strides = array<i32>} : memref<20x8xf32, #tpu.memory_space<vmem>>, vector<4x8xf32>,
    %c0_20 = arith.constant 0 : index
    %c0_21 = arith.constant 0 : index
    %24 = vector.load %arg8[%c0_20, %c0_21] : memref<20x8xf32, #tpu.memory_space<vmem>>, vector<20x8xf32>
    %cst_22 = arith.constant 0.000000e+00 : f32
    %25 = vector.broadcast %cst_22 : f32 to vector<16x8xf32>
    %26 = vector.extract_strided_slice %24 {offsets = [0, 0], sizes = [16, 8], strides = [1, 1]} : vector<20x8xf32> to vector<16x8xf32>
    %c0_23 = arith.constant 0 : index
    %c0_24 = arith.constant 0 : index
    %c0_25 = arith.constant 0 : index
    %27 = vector.load %arg3[%c0_23, %c0_24, %c0_25] : memref<2x8x8xf32, #tpu.memory_space<vmem>>, vector<1x8x8xf32>
    %28 = vector.shape_cast %27 : vector<1x8x8xf32> to vector<8x8xf32>
    %cst_26 = arith.constant dense<0.000000e+00> : vector<16x8xf32>
    %29 = tpu.matmul %26, %28, %cst_26 {dimension_numbers = #tpu.dot_dimension_numbers<[1], [0], [0], [1], [0, 0, 1, 1], [], []>} : vector<16x8xf32>, vector<8x8xf32>, vector<16x8xf32> -> vector<16x8xf32>
    %30 = arith.addf %25, %29 : vector<16x8xf32>
    %31 = vector.extract_strided_slice %24 {offsets = [4, 0], sizes = [16, 8], strides = [1, 1]} : vector<20x8xf32> to vector<16x8xf32>
    %c1_27 = arith.constant 1 : index
    %c0_28 = arith.constant 0 : index
    %c0_29 = arith.constant 0 : index
    %32 = vector.load %arg3[%c1_27, %c0_28, %c0_29] : memref<2x8x8xf32, #tpu.memory_space<vmem>>, vector<1x8x8xf32>
    %33 = vector.shape_cast %32 : vector<1x8x8xf32> to vector<8x8xf32>
    %cst_30 = arith.constant dense<0.000000e+00> : vector<16x8xf32>
    %34 = tpu.matmul %31, %33, %cst_30 {dimension_numbers = #tpu.dot_dimension_numbers<[1], [0], [0], [1], [0, 0, 1, 1], [], []>} : vector<16x8xf32>, vector<8x8xf32>, vector<16x8xf32> -> vector<16x8xf32>
    %35 = arith.addf %30, %34 : vector<16x8xf32>
    %c0_31 = arith.constant 0 : index
    %c0_32 = arith.constant 0 : index
    %36 = vector.load %arg4[%c0_31, %c0_32] : memref<6x8xf32, #tpu.memory_space<vmem>>, vector<6x8xf32>
    %cst_33 = arith.constant dense<0.000000e+00> : vector<16x8xf32>
    %37 = tpu.matmul %1, %36, %cst_33 {dimension_numbers = #tpu.dot_dimension_numbers<[1], [0], [0], [1], [0, 0, 1, 1], [], []>} : vector<16x6xf32>, vector<6x8xf32>, vector<16x8xf32> -> vector<16x8xf32>
    %c0_34 = arith.constant 0 : index
    %c0_35 = arith.constant 0 : index
    %38 = vector.load %arg5[%c0_34, %c0_35] : memref<1x8xf32, #tpu.memory_space<vmem>>, vector<1x8xf32>
    %39 = vector.broadcast %38 : vector<1x8xf32> to vector<16x8xf32>
    %40 = arith.addf %37, %39 : vector<16x8xf32>
    %41 = arith.addf %35, %40 : vector<16x8xf32>
    %cst_36 = arith.constant 0.000000e+00 : f32
    %42 = vector.broadcast %cst_36 : f32 to vector<16x8xf32>
    %43 = arith.maximumf %41, %42 : vector<16x8xf32>
    %c0_37 = arith.constant 0 : index
    %c0_38 = arith.constant 0 : index
    %c0_39 = arith.constant 0 : index
    %44 = vector.load %arg6[%c0_37, %c0_38, %c0_39] : memref<1x16x8xf32, #tpu.memory_space<vmem>>, vector<1x16x8xf32>
    %45 = vector.shape_cast %44 : vector<1x16x8xf32> to vector<16x8xf32>
    %46 = vector.shape_cast %43 : vector<16x8xf32> to vector<1x16x8xf32>
    tpu.vector_store %arg6[%c0_37, %c0_38, %c0_39], %46 {strides = array<i32>} : memref<1x16x8xf32, #tpu.memory_space<vmem>>, vector<1x16x8xf32>,
    return
  }
  func.func @transform_0(%arg0: i32) -> (i32, i32, i32) {
    %c0_i32 = arith.constant 0 : i32
    %c0_i32_0 = arith.constant 0 : i32
    %c0_i32_1 = arith.constant 0 : i32
    return %arg0, %c0_i32, %c0_i32_0 : i32, i32, i32
  }
  func.func @transform_1(%arg0: i32) -> (i32, i32, i32) {
    %c0_i32 = arith.constant 0 : i32
    %c0_i32_0 = arith.constant 0 : i32
    %c0_i32_1 = arith.constant 0 : i32
    %c0_i32_2 = arith.constant 0 : i32
    return %c0_i32, %c0_i32_0, %c0_i32_1 : i32, i32, i32
  }
  func.func @transform_2(%arg0: i32) -> (i32, i32, i32) {
    %c0_i32 = arith.constant 0 : i32
    %c0_i32_0 = arith.constant 0 : i32
    %c0_i32_1 = arith.constant 0 : i32
    %c0_i32_2 = arith.constant 0 : i32
    return %c0_i32, %c0_i32_0, %c0_i32_1 : i32, i32, i32
  }
  func.func @transform_3(%arg0: i32) -> (i32, i32) {
    %c0_i32 = arith.constant 0 : i32
    %c0_i32_0 = arith.constant 0 : i32
    %c0_i32_1 = arith.constant 0 : i32
    return %c0_i32, %c0_i32_0 : i32, i32
  }
  func.func @transform_4(%arg0: i32) -> (i32, i32) {
    %c0_i32 = arith.constant 0 : i32
    %c0_i32_0 = arith.constant 0 : i32
    %c0_i32_1 = arith.constant 0 : i32
    return %c0_i32, %c0_i32_0 : i32, i32
  }
  func.func @transform_5(%arg0: i32) -> (i32, i32, i32) {
    %c0_i32 = arith.constant 0 : i32
    %c0_i32_0 = arith.constant 0 : i32
    %c0_i32_1 = arith.constant 0 : i32
    return %arg0, %c0_i32, %c0_i32_0 : i32, i32, i32
  }
}

module attributes {stable_mosaic.version = 11 : i64} {
  func.func @_fused_block_kernel(%arg0: i32, %arg1: memref<1x16x8xf32, #tpu.memory_space<vmem>>, %arg2: memref<2x8x8xf32, #tpu.memory_space<vmem>>, %arg3: memref<2x8x8xf32, #tpu.memory_space<vmem>>, %arg4: memref<1x16x8xf32, #tpu.memory_space<vmem>>, %arg5: memref<18x8xf32, #tpu.memory_space<vmem>>, %arg6: memref<18x8xf32, #tpu.memory_space<vmem>>) attributes {dimension_semantics = [#tpu.dimension_semantics<parallel>], iteration_bounds = array<i64: 2>, scalar_prefetch = 0 : i64, scratch_operands = 2 : i64, tpu.core_type = #tpu.core_type<tc>, window_params = [{transform_indices = @transform_0, window_bounds = array<i64: 1, 16, 8>}, {pipeline_mode = #tpu.pipeline_mode<synchronous>, transform_indices = @transform_1, window_bounds = array<i64: 2, 8, 8>}, {pipeline_mode = #tpu.pipeline_mode<synchronous>, transform_indices = @transform_2, window_bounds = array<i64: 2, 8, 8>}, {transform_indices = @transform_3, window_bounds = array<i64: 1, 16, 8>}]} {
    %c0 = arith.constant 0 : index
    %c0_0 = arith.constant 0 : index
    %c0_1 = arith.constant 0 : index
    %0 = vector.load %arg1[%c0, %c0_0, %c0_1] : memref<1x16x8xf32, #tpu.memory_space<vmem>>, vector<1x16x8xf32>
    %1 = vector.shape_cast %0 : vector<1x16x8xf32> to vector<16x8xf32>
    %cst = arith.constant 0.000000e+00 : f32
    %2 = vector.broadcast %cst : f32 to vector<16x8xf32>
    %3 = arith.maximumf %1, %2 : vector<16x8xf32>
    %c0_2 = arith.constant 0 : index
    %c0_3 = arith.constant 0 : index
    %4 = vector.load %arg5[%c0_2, %c0_3] : memref<18x8xf32, #tpu.memory_space<vmem>>, vector<16x8xf32>
    tpu.vector_store %arg5[%c0_2, %c0_3], %3 {strides = array<i32>} : memref<18x8xf32, #tpu.memory_space<vmem>>, vector<16x8xf32>,
    %5 = vector.extract_strided_slice %3 {offsets = [14, 0], sizes = [2, 8], strides = [1, 1]} : vector<16x8xf32> to vector<2x8xf32>
    %c16 = arith.constant 16 : index
    %c0_4 = arith.constant 0 : index
    %6 = vector.load %arg5[%c16, %c0_4] : memref<18x8xf32, #tpu.memory_space<vmem>>, vector<2x8xf32>
    tpu.vector_store %arg5[%c16, %c0_4], %5 {strides = array<i32>} : memref<18x8xf32, #tpu.memory_space<vmem>>, vector<2x8xf32>,
    %c0_5 = arith.constant 0 : index
    %c0_6 = arith.constant 0 : index
    %7 = vector.load %arg5[%c0_5, %c0_6] : memref<18x8xf32, #tpu.memory_space<vmem>>, vector<18x8xf32>
    %cst_7 = arith.constant 0.000000e+00 : f32
    %8 = vector.broadcast %cst_7 : f32 to vector<16x8xf32>
    %9 = vector.extract_strided_slice %7 {offsets = [0, 0], sizes = [16, 8], strides = [1, 1]} : vector<18x8xf32> to vector<16x8xf32>
    %c0_8 = arith.constant 0 : index
    %c0_9 = arith.constant 0 : index
    %c0_10 = arith.constant 0 : index
    %10 = vector.load %arg2[%c0_8, %c0_9, %c0_10] : memref<2x8x8xf32, #tpu.memory_space<vmem>>, vector<1x8x8xf32>
    %11 = vector.shape_cast %10 : vector<1x8x8xf32> to vector<8x8xf32>
    %cst_11 = arith.constant dense<0.000000e+00> : vector<16x8xf32>
    %12 = tpu.matmul %9, %11, %cst_11 {dimension_numbers = #tpu.dot_dimension_numbers<[1], [0], [0], [1], [0, 0, 1, 1], [], []>} : vector<16x8xf32>, vector<8x8xf32>, vector<16x8xf32> -> vector<16x8xf32>
    %13 = arith.addf %8, %12 : vector<16x8xf32>
    %14 = vector.extract_strided_slice %7 {offsets = [2, 0], sizes = [16, 8], strides = [1, 1]} : vector<18x8xf32> to vector<16x8xf32>
    %c1 = arith.constant 1 : index
    %c0_12 = arith.constant 0 : index
    %c0_13 = arith.constant 0 : index
    %15 = vector.load %arg2[%c1, %c0_12, %c0_13] : memref<2x8x8xf32, #tpu.memory_space<vmem>>, vector<1x8x8xf32>
    %16 = vector.shape_cast %15 : vector<1x8x8xf32> to vector<8x8xf32>
    %cst_14 = arith.constant dense<0.000000e+00> : vector<16x8xf32>
    %17 = tpu.matmul %14, %16, %cst_14 {dimension_numbers = #tpu.dot_dimension_numbers<[1], [0], [0], [1], [0, 0, 1, 1], [], []>} : vector<16x8xf32>, vector<8x8xf32>, vector<16x8xf32> -> vector<16x8xf32>
    %18 = arith.addf %13, %17 : vector<16x8xf32>
    %cst_15 = arith.constant 0.000000e+00 : f32
    %19 = vector.broadcast %cst_15 : f32 to vector<16x8xf32>
    %20 = arith.maximumf %18, %19 : vector<16x8xf32>
    %c0_16 = arith.constant 0 : index
    %c0_17 = arith.constant 0 : index
    %21 = vector.load %arg6[%c0_16, %c0_17] : memref<18x8xf32, #tpu.memory_space<vmem>>, vector<16x8xf32>
    tpu.vector_store %arg6[%c0_16, %c0_17], %20 {strides = array<i32>} : memref<18x8xf32, #tpu.memory_space<vmem>>, vector<16x8xf32>,
    %22 = vector.extract_strided_slice %20 {offsets = [14, 0], sizes = [2, 8], strides = [1, 1]} : vector<16x8xf32> to vector<2x8xf32>
    %c16_18 = arith.constant 16 : index
    %c0_19 = arith.constant 0 : index
    %23 = vector.load %arg6[%c16_18, %c0_19] : memref<18x8xf32, #tpu.memory_space<vmem>>, vector<2x8xf32>
    tpu.vector_store %arg6[%c16_18, %c0_19], %22 {strides = array<i32>} : memref<18x8xf32, #tpu.memory_space<vmem>>, vector<2x8xf32>,
    %c0_20 = arith.constant 0 : index
    %c0_21 = arith.constant 0 : index
    %24 = vector.load %arg6[%c0_20, %c0_21] : memref<18x8xf32, #tpu.memory_space<vmem>>, vector<18x8xf32>
    %cst_22 = arith.constant 0.000000e+00 : f32
    %25 = vector.broadcast %cst_22 : f32 to vector<16x8xf32>
    %26 = vector.extract_strided_slice %24 {offsets = [0, 0], sizes = [16, 8], strides = [1, 1]} : vector<18x8xf32> to vector<16x8xf32>
    %c0_23 = arith.constant 0 : index
    %c0_24 = arith.constant 0 : index
    %c0_25 = arith.constant 0 : index
    %27 = vector.load %arg3[%c0_23, %c0_24, %c0_25] : memref<2x8x8xf32, #tpu.memory_space<vmem>>, vector<1x8x8xf32>
    %28 = vector.shape_cast %27 : vector<1x8x8xf32> to vector<8x8xf32>
    %cst_26 = arith.constant dense<0.000000e+00> : vector<16x8xf32>
    %29 = tpu.matmul %26, %28, %cst_26 {dimension_numbers = #tpu.dot_dimension_numbers<[1], [0], [0], [1], [0, 0, 1, 1], [], []>} : vector<16x8xf32>, vector<8x8xf32>, vector<16x8xf32> -> vector<16x8xf32>
    %30 = arith.addf %25, %29 : vector<16x8xf32>
    %31 = vector.extract_strided_slice %24 {offsets = [2, 0], sizes = [16, 8], strides = [1, 1]} : vector<18x8xf32> to vector<16x8xf32>
    %c1_27 = arith.constant 1 : index
    %c0_28 = arith.constant 0 : index
    %c0_29 = arith.constant 0 : index
    %32 = vector.load %arg3[%c1_27, %c0_28, %c0_29] : memref<2x8x8xf32, #tpu.memory_space<vmem>>, vector<1x8x8xf32>
    %33 = vector.shape_cast %32 : vector<1x8x8xf32> to vector<8x8xf32>
    %cst_30 = arith.constant dense<0.000000e+00> : vector<16x8xf32>
    %34 = tpu.matmul %31, %33, %cst_30 {dimension_numbers = #tpu.dot_dimension_numbers<[1], [0], [0], [1], [0, 0, 1, 1], [], []>} : vector<16x8xf32>, vector<8x8xf32>, vector<16x8xf32> -> vector<16x8xf32>
    %35 = arith.addf %30, %34 : vector<16x8xf32>
    %36 = arith.addf %35, %1 : vector<16x8xf32>
    %cst_31 = arith.constant 0.000000e+00 : f32
    %37 = vector.broadcast %cst_31 : f32 to vector<16x8xf32>
    %38 = arith.maximumf %36, %37 : vector<16x8xf32>
    %c0_32 = arith.constant 0 : index
    %c0_33 = arith.constant 0 : index
    %c0_34 = arith.constant 0 : index
    %39 = vector.load %arg4[%c0_32, %c0_33, %c0_34] : memref<1x16x8xf32, #tpu.memory_space<vmem>>, vector<1x16x8xf32>
    %40 = vector.shape_cast %39 : vector<1x16x8xf32> to vector<16x8xf32>
    %41 = vector.shape_cast %38 : vector<16x8xf32> to vector<1x16x8xf32>
    tpu.vector_store %arg4[%c0_32, %c0_33, %c0_34], %41 {strides = array<i32>} : memref<1x16x8xf32, #tpu.memory_space<vmem>>, vector<1x16x8xf32>,
    return
  }
  func.func @transform_0(%arg0: i32) -> (i32, i32, i32) {
    %c0_i32 = arith.constant 0 : i32
    %c0_i32_0 = arith.constant 0 : i32
    %c0_i32_1 = arith.constant 0 : i32
    return %arg0, %c0_i32, %c0_i32_0 : i32, i32, i32
  }
  func.func @transform_1(%arg0: i32) -> (i32, i32, i32) {
    %c0_i32 = arith.constant 0 : i32
    %c0_i32_0 = arith.constant 0 : i32
    %c0_i32_1 = arith.constant 0 : i32
    %c0_i32_2 = arith.constant 0 : i32
    return %c0_i32, %c0_i32_0, %c0_i32_1 : i32, i32, i32
  }
  func.func @transform_2(%arg0: i32) -> (i32, i32, i32) {
    %c0_i32 = arith.constant 0 : i32
    %c0_i32_0 = arith.constant 0 : i32
    %c0_i32_1 = arith.constant 0 : i32
    %c0_i32_2 = arith.constant 0 : i32
    return %c0_i32, %c0_i32_0, %c0_i32_1 : i32, i32, i32
  }
  func.func @transform_3(%arg0: i32) -> (i32, i32, i32) {
    %c0_i32 = arith.constant 0 : i32
    %c0_i32_0 = arith.constant 0 : i32
    %c0_i32_1 = arith.constant 0 : i32
    return %arg0, %c0_i32, %c0_i32_0 : i32, i32, i32
  }
}

module attributes {stable_mosaic.version = 11 : i64} {
  func.func @_fused_block_kernel(%arg0: i32, %arg1: memref<1x16x8xf32, #tpu.memory_space<vmem>>, %arg2: memref<2x8x4xf32, #tpu.memory_space<vmem>>, %arg3: memref<2x4x4xf32, #tpu.memory_space<vmem>>, %arg4: memref<8x4xf32, #tpu.memory_space<vmem>>, %arg5: memref<1x4xf32, #tpu.memory_space<vmem>>, %arg6: memref<1x16x4xf32, #tpu.memory_space<vmem>>, %arg7: memref<17x8xf32, #tpu.memory_space<vmem>>, %arg8: memref<17x4xf32, #tpu.memory_space<vmem>>) attributes {dimension_semantics = [#tpu.dimension_semantics<parallel>], iteration_bounds = array<i64: 2>, scalar_prefetch = 0 : i64, scratch_operands = 2 : i64, tpu.core_type = #tpu.core_type<tc>, window_params = [{transform_indices = @transform_0, window_bounds = array<i64: 1, 16, 8>}, {pipeline_mode = #tpu.pipeline_mode<synchronous>, transform_indices = @transform_1, window_bounds = array<i64: 2, 8, 4>}, {pipeline_mode = #tpu.pipeline_mode<synchronous>, transform_indices = @transform_2, window_bounds = array<i64: 2, 4, 4>}, {pipeline_mode = #tpu.pipeline_mode<synchronous>, transform_indices = @transform_3, window_bounds = array<i64: 8, 4>}, {pipeline_mode = #tpu.pipeline_mode<synchronous>, transform_indices = @transform_4, window_bounds = array<i64: 1, 4>}, {transform_indices = @transform_5, window_bounds = array<i64: 1, 16, 4>}]} {
    %c0 = arith.constant 0 : index
    %c0_0 = arith.constant 0 : index
    %c0_1 = arith.constant 0 : index
    %0 = vector.load %arg1[%c0, %c0_0, %c0_1] : memref<1x16x8xf32, #tpu.memory_space<vmem>>, vector<1x16x8xf32>
    %1 = vector.shape_cast %0 : vector<1x16x8xf32> to vector<16x8xf32>
    %cst = arith.constant 0.000000e+00 : f32
    %2 = vector.broadcast %cst : f32 to vector<16x8xf32>
    %3 = arith.maximumf %1, %2 : vector<16x8xf32>
    %c0_2 = arith.constant 0 : index
    %c0_3 = arith.constant 0 : index
    %4 = vector.load %arg7[%c0_2, %c0_3] : memref<17x8xf32, #tpu.memory_space<vmem>>, vector<16x8xf32>
    tpu.vector_store %arg7[%c0_2, %c0_3], %3 {strides = array<i32>} : memref<17x8xf32, #tpu.memory_space<vmem>>, vector<16x8xf32>,
    %5 = vector.extract_strided_slice %3 {offsets = [15, 0], sizes = [1, 8], strides = [1, 1]} : vector<16x8xf32> to vector<1x8xf32>
    %c16 = arith.constant 16 : index
    %c0_4 = arith.constant 0 : index
    %6 = vector.load %arg7[%c16, %c0_4] : memref<17x8xf32, #tpu.memory_space<vmem>>, vector<1x8xf32>
    tpu.vector_store %arg7[%c16, %c0_4], %5 {strides = array<i32>} : memref<17x8xf32, #tpu.memory_space<vmem>>, vector<1x8xf32>,
    %c0_5 = arith.constant 0 : index
    %c0_6 = arith.constant 0 : index
    %7 = vector.load %arg7[%c0_5, %c0_6] : memref<17x8xf32, #tpu.memory_space<vmem>>, vector<17x8xf32>
    %cst_7 = arith.constant 0.000000e+00 : f32
    %8 = vector.broadcast %cst_7 : f32 to vector<16x4xf32>
    %9 = vector.extract_strided_slice %7 {offsets = [0, 0], sizes = [16, 8], strides = [1, 1]} : vector<17x8xf32> to vector<16x8xf32>
    %c0_8 = arith.constant 0 : index
    %c0_9 = arith.constant 0 : index
    %c0_10 = arith.constant 0 : index
    %10 = vector.load %arg2[%c0_8, %c0_9, %c0_10] : memref<2x8x4xf32, #tpu.memory_space<vmem>>, vector<1x8x4xf32>
    %11 = vector.shape_cast %10 : vector<1x8x4xf32> to vector<8x4xf32>
    %cst_11 = arith.constant dense<0.000000e+00> : vector<16x4xf32>
    %12 = tpu.matmul %9, %11, %cst_11 {dimension_numbers = #tpu.dot_dimension_numbers<[1], [0], [0], [1], [0, 0, 1, 1], [], []>} : vector<16x8xf32>, vector<8x4xf32>, vector<16x4xf32> -> vector<16x4xf32>
    %13 = arith.addf %8, %12 : vector<16x4xf32>
    %14 = vector.extract_strided_slice %7 {offsets = [1, 0], sizes = [16, 8], strides = [1, 1]} : vector<17x8xf32> to vector<16x8xf32>
    %c1 = arith.constant 1 : index
    %c0_12 = arith.constant 0 : index
    %c0_13 = arith.constant 0 : index
    %15 = vector.load %arg2[%c1, %c0_12, %c0_13] : memref<2x8x4xf32, #tpu.memory_space<vmem>>, vector<1x8x4xf32>
    %16 = vector.shape_cast %15 : vector<1x8x4xf32> to vector<8x4xf32>
    %cst_14 = arith.constant dense<0.000000e+00> : vector<16x4xf32>
    %17 = tpu.matmul %14, %16, %cst_14 {dimension_numbers = #tpu.dot_dimension_numbers<[1], [0], [0], [1], [0, 0, 1, 1], [], []>} : vector<16x8xf32>, vector<8x4xf32>, vector<16x4xf32> -> vector<16x4xf32>
    %18 = arith.addf %13, %17 : vector<16x4xf32>
    %cst_15 = arith.constant 0.000000e+00 : f32
    %19 = vector.broadcast %cst_15 : f32 to vector<16x4xf32>
    %20 = arith.maximumf %18, %19 : vector<16x4xf32>
    %c0_16 = arith.constant 0 : index
    %c0_17 = arith.constant 0 : index
    %21 = vector.load %arg8[%c0_16, %c0_17] : memref<17x4xf32, #tpu.memory_space<vmem>>, vector<16x4xf32>
    tpu.vector_store %arg8[%c0_16, %c0_17], %20 {strides = array<i32>} : memref<17x4xf32, #tpu.memory_space<vmem>>, vector<16x4xf32>,
    %22 = vector.extract_strided_slice %20 {offsets = [15, 0], sizes = [1, 4], strides = [1, 1]} : vector<16x4xf32> to vector<1x4xf32>
    %c16_18 = arith.constant 16 : index
    %c0_19 = arith.constant 0 : index
    %23 = vector.load %arg8[%c16_18, %c0_19] : memref<17x4xf32, #tpu.memory_space<vmem>>, vector<1x4xf32>
    tpu.vector_store %arg8[%c16_18, %c0_19], %22 {strides = array<i32>} : memref<17x4xf32, #tpu.memory_space<vmem>>, vector<1x4xf32>,
    %c0_20 = arith.constant 0 : index
    %c0_21 = arith.constant 0 : index
    %24 = vector.load %arg8[%c0_20, %c0_21] : memref<17x4xf32, #tpu.memory_space<vmem>>, vector<17x4xf32>
    %cst_22 = arith.constant 0.000000e+00 : f32
    %25 = vector.broadcast %cst_22 : f32 to vector<16x4xf32>
    %26 = vector.extract_strided_slice %24 {offsets = [0, 0], sizes = [16, 4], strides = [1, 1]} : vector<17x4xf32> to vector<16x4xf32>
    %c0_23 = arith.constant 0 : index
    %c0_24 = arith.constant 0 : index
    %c0_25 = arith.constant 0 : index
    %27 = vector.load %arg3[%c0_23, %c0_24, %c0_25] : memref<2x4x4xf32, #tpu.memory_space<vmem>>, vector<1x4x4xf32>
    %28 = vector.shape_cast %27 : vector<1x4x4xf32> to vector<4x4xf32>
    %cst_26 = arith.constant dense<0.000000e+00> : vector<16x4xf32>
    %29 = tpu.matmul %26, %28, %cst_26 {dimension_numbers = #tpu.dot_dimension_numbers<[1], [0], [0], [1], [0, 0, 1, 1], [], []>} : vector<16x4xf32>, vector<4x4xf32>, vector<16x4xf32> -> vector<16x4xf32>
    %30 = arith.addf %25, %29 : vector<16x4xf32>
    %31 = vector.extract_strided_slice %24 {offsets = [1, 0], sizes = [16, 4], strides = [1, 1]} : vector<17x4xf32> to vector<16x4xf32>
    %c1_27 = arith.constant 1 : index
    %c0_28 = arith.constant 0 : index
    %c0_29 = arith.constant 0 : index
    %32 = vector.load %arg3[%c1_27, %c0_28, %c0_29] : memref<2x4x4xf32, #tpu.memory_space<vmem>>, vector<1x4x4xf32>
    %33 = vector.shape_cast %32 : vector<1x4x4xf32> to vector<4x4xf32>
    %cst_30 = arith.constant dense<0.000000e+00> : vector<16x4xf32>
    %34 = tpu.matmul %31, %33, %cst_30 {dimension_numbers = #tpu.dot_dimension_numbers<[1], [0], [0], [1], [0, 0, 1, 1], [], []>} : vector<16x4xf32>, vector<4x4xf32>, vector<16x4xf32> -> vector<16x4xf32>
    %35 = arith.addf %30, %34 : vector<16x4xf32>
    %c0_31 = arith.constant 0 : index
    %c0_32 = arith.constant 0 : index
    %36 = vector.load %arg4[%c0_31, %c0_32] : memref<8x4xf32, #tpu.memory_space<vmem>>, vector<8x4xf32>
    %cst_33 = arith.constant dense<0.000000e+00> : vector<16x4xf32>
    %37 = tpu.matmul %1, %36, %cst_33 {dimension_numbers = #tpu.dot_dimension_numbers<[1], [0], [0], [1], [0, 0, 1, 1], [], []>} : vector<16x8xf32>, vector<8x4xf32>, vector<16x4xf32> -> vector<16x4xf32>
    %c0_34 = arith.constant 0 : index
    %c0_35 = arith.constant 0 : index
    %38 = vector.load %arg5[%c0_34, %c0_35] : memref<1x4xf32, #tpu.memory_space<vmem>>, vector<1x4xf32>
    %39 = vector.broadcast %38 : vector<1x4xf32> to vector<16x4xf32>
    %40 = arith.addf %37, %39 : vector<16x4xf32>
    %41 = arith.addf %35, %40 : vector<16x4xf32>
    %cst_36 = arith.constant 0.000000e+00 : f32
    %42 = vector.broadcast %cst_36 : f32 to vector<16x4xf32>
    %43 = arith.maximumf %41, %42 : vector<16x4xf32>
    %c0_37 = arith.constant 0 : index
    %c0_38 = arith.constant 0 : index
    %c0_39 = arith.constant 0 : index
    %44 = vector.load %arg6[%c0_37, %c0_38, %c0_39] : memref<1x16x4xf32, #tpu.memory_space<vmem>>, vector<1x16x4xf32>
    %45 = vector.shape_cast %44 : vector<1x16x4xf32> to vector<16x4xf32>
    %46 = vector.shape_cast %43 : vector<16x4xf32> to vector<1x16x4xf32>
    tpu.vector_store %arg6[%c0_37, %c0_38, %c0_39], %46 {strides = array<i32>} : memref<1x16x4xf32, #tpu.memory_space<vmem>>, vector<1x16x4xf32>,
    return
  }
  func.func @transform_0(%arg0: i32) -> (i32, i32, i32) {
    %c0_i32 = arith.constant 0 : i32
    %c0_i32_0 = arith.constant 0 : i32
    %c0_i32_1 = arith.constant 0 : i32
    return %arg0, %c0_i32, %c0_i32_0 : i32, i32, i32
  }
  func.func @transform_1(%arg0: i32) -> (i32, i32, i32) {
    %c0_i32 = arith.constant 0 : i32
    %c0_i32_0 = arith.constant 0 : i32
    %c0_i32_1 = arith.constant 0 : i32
    %c0_i32_2 = arith.constant 0 : i32
    return %c0_i32, %c0_i32_0, %c0_i32_1 : i32, i32, i32
  }
  func.func @transform_2(%arg0: i32) -> (i32, i32, i32) {
    %c0_i32 = arith.constant 0 : i32
    %c0_i32_0 = arith.constant 0 : i32
    %c0_i32_1 = arith.constant 0 : i32
    %c0_i32_2 = arith.constant 0 : i32
    return %c0_i32, %c0_i32_0, %c0_i32_1 : i32, i32, i32
  }
  func.func @transform_3(%arg0: i32) -> (i32, i32) {
    %c0_i32 = arith.constant 0 : i32
    %c0_i32_0 = arith.constant 0 : i32
    %c0_i32_1 = arith.constant 0 : i32
    return %c0_i32, %c0_i32_0 : i32, i32
  }
  func.func @transform_4(%arg0: i32) -> (i32, i32) {
    %c0_i32 = arith.constant 0 : i32
    %c0_i32_0 = arith.constant 0 : i32
    %c0_i32_1 = arith.constant 0 : i32
    return %c0_i32, %c0_i32_0 : i32, i32
  }
  func.func @transform_5(%arg0: i32) -> (i32, i32, i32) {
    %c0_i32 = arith.constant 0 : i32
    %c0_i32_0 = arith.constant 0 : i32
    %c0_i32_1 = arith.constant 0 : i32
    return %arg0, %c0_i32, %c0_i32_0 : i32, i32, i32
  }
}

</mosaic_0001>

<llo_original>
// kernel: _lambda_.8
$region0: #{_lambda_.8}
  #allocation0 [shape = 'u32[]', space=smem, size = 0x4, offset = 0x4, fixed_abs, tag = 'smem constant byte address 0x4 - core index']
  #allocation1 [shape = 'u32[144,128]{1,0:T(1,128)}', space=vmem, size = 0x12000, scoped, tag = 'internal scratch']
  #allocation2 [shape = 'f32[24,8]{1,0:T(8,128)}', space=vmem, size = 0x3000, scoped, tag = 'scratch operand']
  #allocation3 [shape = 'f32[24,6]{1,0:T(8,128)}', space=vmem, size = 0x3000, scoped, tag = 'scratch operand']
  %s0 = inlined_call_operand.vmem [shape: f32[2,16,8], index: 0, kind: input, shape index: {}]
  %s1 = inlined_call_operand.vmem [shape: f32[2,8,6], index: 1, kind: input, shape index: {}]
  %s2 = inlined_call_operand.vmem [shape: f32[2,6,6], index: 2, kind: input, shape index: {}]
  %s3 = inlined_call_operand.vmem [shape: f32[8,6], index: 3, kind: input, shape index: {}]
  %s4 = inlined_call_operand.vmem [shape: f32[1,6], index: 4, kind: input, shape index: {}]
  %s5 = inlined_call_operand.vmem [shape: f32[2,16,6], index: 5, kind: output, shape index: {}]
  %s6 = sld [smem:[#allocation0]]
  $region53: #{_lambda_.8} parent=0
    _
  %s8 = ssub.s32 1, %s6
  %s9 = scalar_select 0, %s8, %s6
  loop: start=0, step=1, limit=4
  $region2: #{_lambda_.8} parent=0 // loop_pre_header
    _
  $region3: #{_lambda_.8} parent=0 // loop_header
    %s11 = sphi 0, %s15
    %p12 = scmp.ge.s32.totalorder %s11, 4
    %s21 = sphi 0, %s23
    %s24 = sphi 0, %s21
    %s25 = sphi 0, %s24
    %s41 = sphi 0, %s25
    %s45 = sphi 0, %s45
    %s47 = sphi 0, %s45
    %s48 = sphi 0, %s47
    %s62 = sphi 0, %s48
    %s66 = sphi 0, %s66
    %s68 = sphi 0, %s66
    %s69 = sphi 0, %s68
    %s83 = sphi 0, %s69
    %s87 = sphi 0, %s87
    %s89 = sphi 0, %s87
    %s90 = sphi 0, %s89
    %s104 = sphi 0, %s90
    %s108 = sphi 0, %s108
    %s110 = sphi 0, %s108
    %s111 = sphi 0, %s110
    %s125 = sphi 0, %s111
    %s131 = sphi 0, %s133
    %s134 = sphi 0, %s131
    %s135 = sphi 0, %s134
    %s151 = sphi 0, %s135
  $region4: #{_lambda_.8} parent=0 // loop_header_branch
    %14 = sbr.rel (%p12) target = $region8
  $region5: #{_lambda_.8} parent=0 // loop_body
    %s16 = ssub.s32 %s11, 1
    %s17 = ssub.s32 %s11, 2
    %s18 = sadd.s32 %s11, 1
    %s19 = ssub.s32 %s11, %s18
    %p20 = scmp.eq.s32.totalorder %s19, 0
    %s22 = sadd.s32 %s21, 1
    %s23 = scalar_select %p20, %s21, %s22
    %p26 = pneg %p20
    %p27 = scmp.eq.s32.totalorder %s11, 1
    %p28 = por %p26, %p27
    %p29 = scmp.ne.s32.totalorder %s21, %s24
    %p30 = scmp.eq.s32.totalorder %s11, 0
    %p31 = por %p29, %p30
    %p32 = scmp.ne.s32.totalorder %s21, %s24
    %p33 = scmp.eq.s32.totalorder %s16, 1
    %p34 = por %p32, %p33
    %p35 = scmp.ne.s32.totalorder %s24, %s25
    %p36 = scmp.eq.s32.totalorder %s16, 0
    %p37 = por %p35, %p36
    %p38 = scmp.ne.s32.totalorder %s24, %s25
    %p39 = scmp.eq.s32.totalorder %s17, 1
    %p40 = por %p38, %p39
    %p42 = scmp.ne.s32.totalorder %s25, %s41
    %p43 = scmp.eq.s32.totalorder %s17, 0
    %p44 = por %p42, %p43
    %s46 = sadd.s32 %s45, 1
    %p49 = scmp.eq.s32.totalorder %s11, 1
    %p50 = scmp.ne.s32.totalorder %s45, %s47
    %p51 = scmp.eq.s32.totalorder %s11, 0
    %p52 = por %p50, %p51
    %p53 = scmp.ne.s32.totalorder %s45, %s47
    %p54 = scmp.eq.s32.totalorder %s16, 1
    %p55 = por %p53, %p54
    %p56 = scmp.ne.s32.totalorder %s47, %s48
    %p57 = scmp.eq.s32.totalorder %s16, 0
    %p58 = por %p56, %p57
    %p59 = scmp.ne.s32.totalorder %s47, %s48
    %p60 = scmp.eq.s32.totalorder %s17, 1
    %p61 = por %p59, %p60
    %p63 = scmp.ne.s32.totalorder %s48, %s62
    %p64 = scmp.eq.s32.totalorder %s17, 0
    %p65 = por %p63, %p64
    %s67 = sadd.s32 %s66, 1
    %p70 = scmp.eq.s32.totalorder %s11, 1
    %p71 = scmp.ne.s32.totalorder %s66, %s68
    %p72 = scmp.eq.s32.totalorder %s11, 0
    %p73 = por %p71, %p72
    %p74 = scmp.ne.s32.totalorder %s66, %s68
    %p75 = scmp.eq.s32.totalorder %s16, 1
    %p76 = por %p74, %p75
    %p77 = scmp.ne.s32.totalorder %s68, %s69
    %p78 = scmp.eq.s32.totalorder %s16, 0
    %p79 = por %p77, %p78
    %p80 = scmp.ne.s32.totalorder %s68, %s69
    %p81 = scmp.eq.s32.totalorder %s17, 1
    %p82 = por %p80, %p81
    %p84 = scmp.ne.s32.totalorder %s69, %s83
    %p85 = scmp.eq.s32.totalorder %s17, 0
    %p86 = por %p84, %p85
    %s88 = sadd.s32 %s87, 1
    %p91 = scmp.eq.s32.totalorder %s11, 1
    %p92 = scmp.ne.s32.totalorder %s87, %s89
    %p93 = scmp.eq.s32.totalorder %s11, 0
    %p94 = por %p92, %p93
    %p95 = scmp.ne.s32.totalorder %s87, %s89
    %p96 = scmp.eq.s32.totalorder %s16, 1
    %p97 = por %p95, %p96
    %p98 = scmp.ne.s32.totalorder %s89, %s90
    %p99 = scmp.eq.s32.totalorder %s16, 0
    %p100 = por %p98, %p99
    %p101 = scmp.ne.s32.totalorder %s89, %s90
    %p102 = scmp.eq.s32.totalorder %s17, 1
    %p103 = por %p101, %p102
    %p105 = scmp.ne.s32.totalorder %s90, %s104
    %p106 = scmp.eq.s32.totalorder %s17, 0
    %p107 = por %p105, %p106
    %s109 = sadd.s32 %s108, 1
    %p112 = scmp.eq.s32.totalorder %s11, 1
    %p113 = scmp.ne.s32.totalorder %s108, %s110
    %p114 = scmp.eq.s32.totalorder %s11, 0
    %p115 = por %p113, %p114
    %p116 = scmp.ne.s32.totalorder %s108, %s110
    %p117 = scmp.eq.s32.totalorder %s16, 1
    %p118 = por %p116, %p117
    %p119 = scmp.ne.s32.totalorder %s110, %s111
    %p120 = scmp.eq.s32.totalorder %s16, 0
    %p121 = por %p119, %p120
    %p122 = scmp.ne.s32.totalorder %s110, %s111
    %p123 = scmp.eq.s32.totalorder %s17, 1
    %p124 = por %p122, %p123
    %p126 = scmp.ne.s32.totalorder %s111, %s125
    %p127 = scmp.eq.s32.totalorder %s17, 0
    %p128 = por %p126, %p127
    %s129 = ssub.s32 %s11, %s18
    %p130 = scmp.eq.s32.totalorder %s129, 0
    %s132 = sadd.s32 %s131, 1
    %s133 = scalar_select %p130, %s131, %s132
    %p136 = pneg %p130
    %p137 = scmp.eq.s32.totalorder %s11, 1
    %p138 = por %p136, %p137
    %p139 = scmp.ne.s32.totalorder %s131, %s134
    %p140 = scmp.eq.s32.totalorder %s11, 0
    %p141 = por %p139, %p140
    %p142 = scmp.ne.s32.totalorder %s131, %s134
    %p143 = scmp.eq.s32.totalorder %s16, 1
    %p144 = por %p142, %p143
    %p145 = scmp.ne.s32.totalorder %s134, %s135
    %p146 = scmp.eq.s32.totalorder %s16, 0
    %p147 = por %p145, %p146
    %p148 = scmp.ne.s32.totalorder %s134, %s135
    %p149 = scmp.eq.s32.totalorder %s17, 1
    %p150 = por %p148, %p149
    %p152 = scmp.ne.s32.totalorder %s135, %s151
    %p153 = scmp.eq.s32.totalorder %s17, 0
    %p154 = por %p152, %p153
    %p155 = scmp.le.s32.totalorder 1, %s11
    %p156 = scmp.lt.s32.totalorder %s11, 3
    %p157 = pnand %p155, %p156
    %p158 = pneg %p157
    // Predicated region
    $region9: #{_lambda_.8} parent=5 // pred_check
      _
    $region10: #{_lambda_.8} parent=5 // pred_check_branch
      %160 = sbr.rel (%p157) target = $region12
    $region11: #{_lambda_.8} parent=5 // pred_region
      %s161 = ssub.s32 %s11, 1
      // Predicated region
      $region13: #{_lambda_.8} parent=11 // pred_check
        %p162 = pneg %p58
      $region14: #{_lambda_.8} parent=11 // pred_check_branch
        %164 = sbr.rel (%p162) target = $region16
      $region15: #{_lambda_.8} parent=11 // pred_region
        _
      $region16: #{_lambda_.8} parent=11 // pred_fallthru
        _
      // Predicated region
      $region17: #{_lambda_.8} parent=11 // pred_check
        %p165 = pneg %p79
      $region18: #{_lambda_.8} parent=11 // pred_check_branch
        %167 = sbr.rel (%p165) target = $region20
      $region19: #{_lambda_.8} parent=11 // pred_region
        _
      $region20: #{_lambda_.8} parent=11 // pred_fallthru
        _
      // Predicated region
      $region21: #{_lambda_.8} parent=11 // pred_check
        %p168 = pneg %p100
      $region22: #{_lambda_.8} parent=11 // pred_check_branch
        %170 = sbr.rel (%p168) target = $region24
      $region23: #{_lambda_.8} parent=11 // pred_region
        _
      $region24: #{_lambda_.8} parent=11 // pred_fallthru
        _
      // Predicated region
      $region25: #{_lambda_.8} parent=11 // pred_check
        %p171 = pneg %p121
      $region26: #{_lambda_.8} parent=11 // pred_check_branch
        %173 = sbr.rel (%p171) target = $region28
      $region27: #{_lambda_.8} parent=11 // pred_region
        _
      $region28: #{_lambda_.8} parent=11 // pred_fallthru
        _
    $region12: #{_lambda_.8} parent=5 // pred_fallthru
      _
    %p174 = scmp.lt.s32.totalorder %s11, 2
    // Predicated region
    $region29: #{_lambda_.8} parent=5 // pred_check
      %p175 = pneg %p174
    $region30: #{_lambda_.8} parent=5 // pred_check_branch
      %177 = sbr.rel (%p175) target = $region32
    $region31: #{_lambda_.8} parent=5 // pred_region
      // Predicated region
      $region33: #{_lambda_.8} parent=31 // pred_check
        %p178 = pneg %p31
      $region34: #{_lambda_.8} parent=31 // pred_check_branch
        %180 = sbr.rel (%p178) target = $region36
      $region35: #{_lambda_.8} parent=31 // pred_region
        %p181 = scmp.lt.s32.totalorder %s11, 1
        %s182 = scalar_select %p181, %s11, 1
        %s183 = smul.addr %s182, 2
        %s184 = smul.addr %s183, 8
        %s185 = scalar_lea.vmem %s0, %s184
      $region36: #{_lambda_.8} parent=31 // pred_fallthru
        _
    $region32: #{_lambda_.8} parent=5 // pred_fallthru
      _
    %p186 = scmp.le.s32.totalorder 1, %s11
    %p187 = scmp.lt.s32.totalorder %s11, 3
    %p188 = pnand %p186, %p187
    %p189 = pneg %p188
    // Predicated region
    $region37: #{_lambda_.8} parent=5 // pred_check
      _
    $region38: #{_lambda_.8} parent=5 // pred_check_branch
      %191 = sbr.rel (%p188) target = $region40
    $region39: #{_lambda_.8} parent=5 // pred_region
      %s192 = ssub.s32 %s11, 1
      %p193 = scmp.lt.s32.totalorder %s16, 1
      %s194 = scalar_select %p193, %s16, 1
      %s195 = smul.addr %s194, 2
      %s196 = smul.addr %s195, 8
      %s197 = scalar_lea.vmem %s0, %s196
      %p198 = pneg %p37
      %p199 = pneg %p34
      %p200 = pneg %p58
      %p201 = pneg %p55
      %p202 = pneg %p79
      %p203 = pneg %p76
      %p204 = pneg %p100
      %p205 = pneg %p97
      %p206 = pneg %p121
      %p207 = pneg %p118
      %p208 = pneg %p147
      %p209 = pneg %p144
      %p210 = scmp.lt.s32.totalorder %s16, 1
      %s211 = scalar_select %p210, %s16, 1
      %s212 = smul.addr %s211, 2
      %s213 = smul.addr %s212, 8
      %s214 = scalar_lea.vmem %s5, %s213
      %p215 = scmp.lt.s32.totalorder %s16, 1
      %s216 = scalar_select %p215, %s16, 1
      %s217 = smul.addr %s216, 2
      %s218 = smul.addr %s217, 8
      %s219 = scalar_lea.vmem %s0, %s218
      %p220 = scmp.lt.s32.totalorder %s16, 1
      %s221 = scalar_select %p220, %s16, 1
      %s222 = smul.addr %s221, 2
      %s223 = smul.addr %s222, 8
      %s224 = scalar_lea.vmem %s5, %s223
      %v225 = vld [vmem:[%s219] sm:$0xff]
      %v226 = vld [vmem:[%s219 + $0x8] sm:$0xff]
      %vm227 = vcmask 64512
      %228 = vst.msk [vmem:[#allocation2] sm:$0xff] %vm227, 0.0
      %229 = vst.msk [vmem:[#allocation2 + $0x8] sm:$0xff] %vm227, %v225
      %230 = vst.msk [vmem:[#allocation2 + $0x10] sm:$0xff] %vm227, %v226
      %v231 = vld [vmem:[#allocation2] sm:$0xff]
      %v232 = vld [vmem:[#allocation2 + $0x8] sm:$0xff]
      %v233 = vld [vmem:[#allocation2 + $0x10] sm:$0xff]
      %v234 = vld [vmem:[%s1] sm:$0xff]
      %s235 = scalar_lea.vmem %s1, 8
      %v236 = vld [vmem:[%s235] sm:$0xff]
      %v238 = vsel %vm227, %v232, 0
      %v241 = vsel %vm227, %v233, 0
      %243 = vmatprep.subr.mxu0 0.0
      %244 = vmatpush1.msra.mxu0 0.0
      %245 = vmatprep.subr.mxu0 0.0
      %246 = vmatpush1.msra.mxu0 0.0
      %247 = vmatprep.subr.mxu0 0.0
      %248 = vmatpush1.msra.mxu0 0.0
      %249 = vmatprep.subr.mxu0 0.0
      %250 = vmatpush1.msra.mxu0 0.0
      %251 = vmatprep.subr.mxu0 0.0
      %252 = vmatpush1.msra.mxu0 0.0
      %253 = vmatprep.subr.mxu0 0.0
      %254 = vmatpush1.msra.mxu0 0.0
      %255 = vmatprep.subr.mxu0 0.0
      %256 = vmatpush1.msra.mxu0 0.0
      %257 = vmatprep.subr.mxu0 0.0
      %258 = vmatpush1.msra.mxu0 0.0
      %259 = vmatprep.subr.mxu0 0.0
      %260 = vmatpush1.msra.mxu0 0.0
      %261 = vmatprep.subr.mxu0 0.0
      %262 = vmatpush1.msra.mxu0 0.0
      %263 = vmatprep.subr.mxu0 0.0
      %264 = vmatpush1.msra.mxu0 0.0
      %265 = vmatprep.subr.mxu0 0.0
      %266 = vmatpush1.msra.mxu0 0.0
      %267 = vmatprep.subr.mxu0 0.0
      %268 = vmatpush1.msra.mxu0 0.0
      %269 = vmatprep.subr.mxu0 0.0
      %270 = vmatpush1.msra.mxu0 0.0
      %271 = vmatprep.subr.mxu0 0.0
      %272 = vmatpush1.msra.mxu0 0.0
      %273 = vmatprep.subr.mxu0 0.0
      %274 = vmatpush1.msra.mxu0 %v236
      %275 = vmatprep.subr.mxu0 0.0
      %276 = vmatpush2.msra.mxu0 0.0
      %277 = vmatprep.subr.mxu0 0.0
      %278 = vmatpush2.msra.mxu0 0.0
      %279 = vmatprep.subr.mxu0 0.0
      %280 = vmatpush2.msra.mxu0 0.0
      %281 = vmatprep.subr.mxu0 0.0
      %282 = vmatpush2.msra.mxu0 0.0
      %283 = vmatprep.subr.mxu0 0.0
      %284 = vmatpush2.msra.mxu0 0.0
      %285 = vmatprep.subr.mxu0 0.0
      %286 = vmatpush2.msra.mxu0 0.0
      %287 = vmatprep.subr.mxu0 0.0
      %288 = vmatpush2.msra.mxu0 0.0
      %289 = vmatprep.subr.mxu0 0.0
      %290 = vmatpush2.msra.mxu0 0.0
      %291 = vmatprep.subr.mxu0 0.0
      %292 = vmatpush2.msra.mxu0 0.0
      %293 = vmatprep.subr.mxu0 0.0
      %294 = vmatpush2.msra.mxu0 0.0
      %295 = vmatprep.subr.mxu0 0.0
      %296 = vmatpush2.msra.mxu0 0.0
      %297 = vmatprep.subr.mxu0 0.0
      %298 = vmatpush2.msra.mxu0 0.0
      %299 = vmatprep.subr.mxu0 0.0
      %300 = vmatpush2.msra.mxu0 0.0
      %301 = vmatprep.subr.mxu0 0.0
      %302 = vmatpush2.msra.mxu0 0.0
      %303 = vmatprep.subr.mxu0 0.0
      %304 = vmatpush2.msra.mxu0 0.0
      %305 = vmatprep.subr.mxu0 0.0
      %306 = vmatpush2.msra.mxu0 0.0
      %307 = vmatprep.mubr.f32.mxu0 0.0
      %308 = vmatmul.mubr.f32.gmra.mxu0 %v238
      %v309 = vpop.f32.mrf.mxu0
      %v310 = vadd.f32 0.0, %v309
      %v311 = vpop.f32.mrf.mxu0
      %312 = vmatprep.mubr.f32.mxu0 0.0
      %313 = vmatmul.mubr.f32.gmra.mxu0 %v241
      %v314 = vpop.f32.mrf.mxu0
      %v315 = vadd.f32 0.0, %v314
      %v316 = vpop.f32.mrf.mxu0
      %317 = vdwg.mxu0
      %vm319 = vcmask 1043456
      %v320 = vrot.slane %v231, 4
      %v321 = vrot.slane %v232, 4
      %v322 = vsel %vm319, %v320, %v321
      %v323 = vrot.slane %v233, 4
      %v324 = vsel %vm319, %v321, %v323
      %v325 = vsel %vm227, %v322, 0
      %v327 = vsel %vm227, %v324, 0
      %329 = vmatprep.subr.mxu0 0.0
      %330 = vmatpush1.msra.mxu0 0.0
      %331 = vmatprep.subr.mxu0 0.0
      %332 = vmatpush1.msra.mxu0 0.0
      %333 = vmatprep.subr.mxu0 0.0
      %334 = vmatpush1.msra.mxu0 0.0
      %335 = vmatprep.subr.mxu0 0.0
      %336 = vmatpush1.msra.mxu0 0.0
      %337 = vmatprep.subr.mxu0 0.0
      %338 = vmatpush1.msra.mxu0 0.0
      %339 = vmatprep.subr.mxu0 0.0
      %340 = vmatpush1.msra.mxu0 0.0
      %341 = vmatprep.subr.mxu0 0.0
      %342 = vmatpush1.msra.mxu0 0.0
      %343 = vmatprep.subr.mxu0 0.0
      %344 = vmatpush1.msra.mxu0 0.0
      %345 = vmatprep.subr.mxu0 0.0
      %346 = vmatpush1.msra.mxu0 0.0
      %347 = vmatprep.subr.mxu0 0.0
      %348 = vmatpush1.msra.mxu0 0.0
      %349 = vmatprep.subr.mxu0 0.0
      %350 = vmatpush1.msra.mxu0 0.0
      %351 = vmatprep.subr.mxu0 0.0
      %352 = vmatpush1.msra.mxu0 0.0
      %353 = vmatprep.subr.mxu0 0.0
      %354 = vmatpush1.msra.mxu0 0.0
      %355 = vmatprep.subr.mxu0 0.0
      %356 = vmatpush1.msra.mxu0 0.0
      %357 = vmatprep.subr.mxu0 0.0
      %358 = vmatpush1.msra.mxu0 0.0
      %359 = vmatprep.subr.mxu0 0.0
      %360 = vmatpush1.msra.mxu0 %v234
      %361 = vmatprep.subr.mxu0 0.0
      %362 = vmatpush2.msra.mxu0 0.0
      %363 = vmatprep.subr.mxu0 0.0
      %364 = vmatpush2.msra.mxu0 0.0
      %365 = vmatprep.subr.mxu0 0.0
      %366 = vmatpush2.msra.mxu0 0.0
      %367 = vmatprep.subr.mxu0 0.0
      %368 = vmatpush2.msra.mxu0 0.0
      %369 = vmatprep.subr.mxu0 0.0
      %370 = vmatpush2.msra.mxu0 0.0
      %371 = vmatprep.subr.mxu0 0.0
      %372 = vmatpush2.msra.mxu0 0.0
      %373 = vmatprep.subr.mxu0 0.0
      %374 = vmatpush2.msra.mxu0 0.0
      %375 = vmatprep.subr.mxu0 0.0
      %376 = vmatpush2.msra.mxu0 0.0
      %377 = vmatprep.subr.mxu0 0.0
      %378 = vmatpush2.msra.mxu0 0.0
      %379 = vmatprep.subr.mxu0 0.0
      %380 = vmatpush2.msra.mxu0 0.0
      %381 = vmatprep.subr.mxu0 0.0
      %382 = vmatpush2.msra.mxu0 0.0
      %383 = vmatprep.subr.mxu0 0.0
      %384 = vmatpush2.msra.mxu0 0.0
      %385 = vmatprep.subr.mxu0 0.0
      %386 = vmatpush2.msra.mxu0 0.0
      %387 = vmatprep.subr.mxu0 0.0
      %388 = vmatpush2.msra.mxu0 0.0
      %389 = vmatprep.subr.mxu0 0.0
      %390 = vmatpush2.msra.mxu0 0.0
      %391 = vmatprep.subr.mxu0 0.0
      %392 = vmatpush2.msra.mxu0 0.0
      %393 = vmatprep.mubr.f32.mxu0 0.0
      %394 = vmatmul.mubr.f32.gmra.mxu0 %v325
      %v395 = vpop.f32.mrf.mxu0
      %v396 = vadd.f32 %v310, %v395
      %v397 = vpop.f32.mrf.mxu0
      %398 = vmatprep.mubr.f32.mxu0 0.0
      %399 = vmatmul.mubr.f32.gmra.mxu0 %v327
      %v400 = vpop.f32.mrf.mxu0
      %v401 = vadd.f32 %v315, %v400
      %v402 = vpop.f32.mrf.mxu0
      %403 = vdwg.mxu0
      %v404 = vmax.f32 %v396, 0.0
      %v405 = vmax.f32 %v401, 0.0
      %vm406 = vcmask 48128
      %407 = vst.msk [vmem:[#allocation3] sm:$0xff] %vm406, 0.0
      %408 = vst.msk [vmem:[#allocation3 + $0x8] sm:$0xff] %vm406, %v404
      %409 = vst.msk [vmem:[#allocation3 + $0x10] sm:$0xff] %vm406, %v405
      %v410 = vld [vmem:[#allocation3] sm:$0xff]
      %v411 = vld [vmem:[#allocation3 + $0x8] sm:$0xff]
      %v412 = vld [vmem:[#allocation3 + $0x10] sm:$0xff]
      %v413 = vld [vmem:[%s2] sm:$0x3f]
      %s414 = scalar_lea.vmem %s2, 8
      %v415 = vld [vmem:[%s414] sm:$0x3f]
      %v417 = vsel %vm406, %v411, 0
      %v420 = vsel %vm406, %v412, 0
      %vm422 = vcmask 1045504
      %v424 = vsel %vm422, %v415, 0
      %426 = vmatprep.subr.mxu0 0.0
      %427 = vmatpush1.msra.mxu0 0.0
      %428 = vmatprep.subr.mxu0 0.0
      %429 = vmatpush1.msra.mxu0 0.0
      %430 = vmatprep.subr.mxu0 0.0
      %431 = vmatpush1.msra.mxu0 0.0
      %432 = vmatprep.subr.mxu0 0.0
      %433 = vmatpush1.msra.mxu0 0.0
      %434 = vmatprep.subr.mxu0 0.0
      %435 = vmatpush1.msra.mxu0 0.0
      %436 = vmatprep.subr.mxu0 0.0
      %437 = vmatpush1.msra.mxu0 0.0
      %438 = vmatprep.subr.mxu0 0.0
      %439 = vmatpush1.msra.mxu0 0.0
      %440 = vmatprep.subr.mxu0 0.0
      %441 = vmatpush1.msra.mxu0 0.0
      %442 = vmatprep.subr.mxu0 0.0
      %443 = vmatpush1.msra.mxu0 0.0
      %444 = vmatprep.subr.mxu0 0.0
      %445 = vmatpush1.msra.mxu0 0.0
      %446 = vmatprep.subr.mxu0 0.0
      %447 = vmatpush1.msra.mxu0 0.0
      %448 = vmatprep.subr.mxu0 0.0
      %449 = vmatpush1.msra.mxu0 0.0
      %450 = vmatprep.subr.mxu0 0.0
      %451 = vmatpush1.msra.mxu0 0.0
      %452 = vmatprep.subr.mxu0 0.0
      %453 = vmatpush1.msra.mxu0 0.0
      %454 = vmatprep.subr.mxu0 0.0
      %455 = vmatpush1.msra.mxu0 0.0
      %456 = vmatprep.subr.mxu0 0.0
      %457 = vmatpush1.msra.mxu0 %v424
      %458 = vmatprep.subr.mxu0 0.0
      %459 = vmatpush2.msra.mxu0 0.0
      %460 = vmatprep.subr.mxu0 0.0
      %461 = vmatpush2.msra.mxu0 0.0
      %462 = vmatprep.subr.mxu0 0.0
      %463 = vmatpush2.msra.mxu0 0.0
      %464 = vmatprep.subr.mxu0 0.0
      %465 = vmatpush2.msra.mxu0 0.0
      %466 = vmatprep.subr.mxu0 0.0
      %467 = vmatpush2.msra.mxu0 0.0
      %468 = vmatprep.subr.mxu0 0.0
      %469 = vmatpush2.msra.mxu0 0.0
      %470 = vmatprep.subr.mxu0 0.0
      %471 = vmatpush2.msra.mxu0 0.0
      %472 = vmatprep.subr.mxu0 0.0
      %473 = vmatpush2.msra.mxu0 0.0
      %474 = vmatprep.subr.mxu0 0.0
      %475 = vmatpush2.msra.mxu0 0.0
      %476 = vmatprep.subr.mxu0 0.0
      %477 = vmatpush2.msra.mxu0 0.0
      %478 = vmatprep.subr.mxu0 0.0
      %479 = vmatpush2.msra.mxu0 0.0
      %480 = vmatprep.subr.mxu0 0.0
      %481 = vmatpush2.msra.mxu0 0.0
      %482 = vmatprep.subr.mxu0 0.0
      %483 = vmatpush2.msra.mxu0 0.0
      %484 = vmatprep.subr.mxu0 0.0
      %485 = vmatpush2.msra.mxu0 0.0
      %486 = vmatprep.subr.mxu0 0.0
      %487 = vmatpush2.msra.mxu0 0.0
      %488 = vmatprep.subr.mxu0 0.0
      %489 = vmatpush2.msra.mxu0 0.0
      %490 = vmatprep.mubr.f32.mxu0 0.0
      %491 = vmatmul.mubr.f32.gmra.mxu0 %v417
      %v492 = vpop.f32.mrf.mxu0
      %v493 = vadd.f32 0.0, %v492
      %v494 = vpop.f32.mrf.mxu0
      %495 = vmatprep.mubr.f32.mxu0 0.0
      %496 = vmatmul.mubr.f32.gmra.mxu0 %v420
      %v497 = vpop.f32.mrf.mxu0
      %v498 = vadd.f32 0.0, %v497
      %v499 = vpop.f32.mrf.mxu0
      %500 = vdwg.mxu0
      %v502 = vrot.slane %v410, 4
      %v503 = vrot.slane %v411, 4
      %v504 = vsel %vm319, %v502, %v503
      %v505 = vrot.slane %v412, 4
      %v506 = vsel %vm319, %v503, %v505
      %v507 = vsel %vm406, %v504, 0
      %v509 = vsel %vm406, %v506, 0
      %v512 = vsel %vm422, %v413, 0
      %514 = vmatprep.subr.mxu0 0.0
      %515 = vmatpush1.msra.mxu0 0.0
      %516 = vmatprep.subr.mxu0 0.0
      %517 = vmatpush1.msra.mxu0 0.0
      %518 = vmatprep.subr.mxu0 0.0
      %519 = vmatpush1.msra.mxu0 0.0
      %520 = vmatprep.subr.mxu0 0.0
      %521 = vmatpush1.msra.mxu0 0.0
      %522 = vmatprep.subr.mxu0 0.0
      %523 = vmatpush1.msra.mxu0 0.0
      %524 = vmatprep.subr.mxu0 0.0
      %525 = vmatpush1.msra.mxu0 0.0
      %526 = vmatprep.subr.mxu0 0.0
      %527 = vmatpush1.msra.mxu0 0.0
      %528 = vmatprep.subr.mxu0 0.0
      %529 = vmatpush1.msra.mxu0 0.0
      %530 = vmatprep.subr.mxu0 0.0
      %531 = vmatpush1.msra.mxu0 0.0
      %532 = vmatprep.subr.mxu0 0.0
      %533 = vmatpush1.msra.mxu0 0.0
      %534 = vmatprep.subr.mxu0 0.0
      %535 = vmatpush1.msra.mxu0 0.0
      %536 = vmatprep.subr.mxu0 0.0
      %537 = vmatpush1.msra.mxu0 0.0
      %538 = vmatprep.subr.mxu0 0.0
      %539 = vmatpush1.msra.mxu0 0.0
      %540 = vmatprep.subr.mxu0 0.0
      %541 = vmatpush1.msra.mxu0 0.0
      %542 = vmatprep.subr.mxu0 0.0
      %543 = vmatpush1.msra.mxu0 0.0
      %544 = vmatprep.subr.mxu0 0.0
      %545 = vmatpush1.msra.mxu0 %v512
      %546 = vmatprep.subr.mxu0 0.0
      %547 = vmatpush2.msra.mxu0 0.0
      %548 = vmatprep.subr.mxu0 0.0
      %549 = vmatpush2.msra.mxu0 0.0
      %550 = vmatprep.subr.mxu0 0.0
      %551 = vmatpush2.msra.mxu0 0.0
      %552 = vmatprep.subr.mxu0 0.0
      %553 = vmatpush2.msra.mxu0 0.0
      %554 = vmatprep.subr.mxu0 0.0
      %555 = vmatpush2.msra.mxu0 0.0
      %556 = vmatprep.subr.mxu0 0.0
      %557 = vmatpush2.msra.mxu0 0.0
      %558 = vmatprep.subr.mxu0 0.0
      %559 = vmatpush2.msra.mxu0 0.0
      %560 = vmatprep.subr.mxu0 0.0
      %561 = vmatpush2.msra.mxu0 0.0
      %562 = vmatprep.subr.mxu0 0.0
      %563 = vmatpush2.msra.mxu0 0.0
      %564 = vmatprep.subr.mxu0 0.0
      %565 = vmatpush2.msra.mxu0 0.0
      %566 = vmatprep.subr.mxu0 0.0
      %567 = vmatpush2.msra.mxu0 0.0
      %568 = vmatprep.subr.mxu0 0.0
      %569 = vmatpush2.msra.mxu0 0.0
      %570 = vmatprep.subr.mxu0 0.0
      %571 = vmatpush2.msra.mxu0 0.0
      %572 = vmatprep.subr.mxu0 0.0
      %573 = vmatpush2.msra.mxu0 0.0
      %574 = vmatprep.subr.mxu0 0.0
      %575 = vmatpush2.msra.mxu0 0.0
      %576 = vmatprep.subr.mxu0 0.0
      %577 = vmatpush2.msra.mxu0 0.0
      %578 = vmatprep.mubr.f32.mxu0 0.0
      %579 = vmatmul.mubr.f32.gmra.mxu0 %v507
      %v580 = vpop.f32.mrf.mxu0
      %v581 = vadd.f32 %v493, %v580
      %v582 = vpop.f32.mrf.mxu0
      %583 = vmatprep.mubr.f32.mxu0 0.0
      %584 = vmatmul.mubr.f32.gmra.mxu0 %v509
      %v585 = vpop.f32.mrf.mxu0
      %v586 = vadd.f32 %v498, %v585
      %v587 = vpop.f32.mrf.mxu0
      %588 = vdwg.mxu0
      %v589 = vmax.f32 %v581, 0.0
      %v590 = vmax.f32 %v586, 0.0
      %v591 = vld [vmem:[%s3] sm:$0xff]
      %v592 = vld [vmem:[%s4] sm:$0x1]
      %v594 = vlaneseq
      %v595 = vshrl.u32 %v594, 7
      %v596 = vsub.s32 0, %v595
      %v597 = vrot.slane %v592, %v596
      %v600 = vsel %vm227, %v225, 0
      %v603 = vsel %vm227, %v226, 0
      %605 = vmatprep.subr.mxu0 0.0
      %606 = vmatpush1.msra.mxu0 0.0
      %607 = vmatprep.subr.mxu0 0.0
      %608 = vmatpush1.msra.mxu0 0.0
      %609 = vmatprep.subr.mxu0 0.0
      %610 = vmatpush1.msra.mxu0 0.0
      %611 = vmatprep.subr.mxu0 0.0
      %612 = vmatpush1.msra.mxu0 0.0
      %613 = vmatprep.subr.mxu0 0.0
      %614 = vmatpush1.msra.mxu0 0.0
      %615 = vmatprep.subr.mxu0 0.0
      %616 = vmatpush1.msra.mxu0 0.0
      %617 = vmatprep.subr.mxu0 0.0
      %618 = vmatpush1.msra.mxu0 0.0
      %619 = vmatprep.subr.mxu0 0.0
      %620 = vmatpush1.msra.mxu0 0.0
      %621 = vmatprep.subr.mxu0 0.0
      %622 = vmatpush1.msra.mxu0 0.0
      %623 = vmatprep.subr.mxu0 0.0
      %624 = vmatpush1.msra.mxu0 0.0
      %625 = vmatprep.subr.mxu0 0.0
      %626 = vmatpush1.msra.mxu0 0.0
      %627 = vmatprep.subr.mxu0 0.0
      %628 = vmatpush1.msra.mxu0 0.0
      %629 = vmatprep.subr.mxu0 0.0
      %630 = vmatpush1.msra.mxu0 0.0
      %631 = vmatprep.subr.mxu0 0.0
      %632 = vmatpush1.msra.mxu0 0.0
      %633 = vmatprep.subr.mxu0 0.0
      %634 = vmatpush1.msra.mxu0 0.0
      %635 = vmatprep.subr.mxu0 0.0
      %636 = vmatpush1.msra.mxu0 %v591
      %637 = vmatprep.subr.mxu0 0.0
      %638 = vmatpush2.msra.mxu0 0.0
      %639 = vmatprep.subr.mxu0 0.0
      %640 = vmatpush2.msra.mxu0 0.0
      %641 = vmatprep.subr.mxu0 0.0
      %642 = vmatpush2.msra.mxu0 0.0
      %643 = vmatprep.subr.mxu0 0.0
      %644 = vmatpush2.msra.mxu0 0.0
      %645 = vmatprep.subr.mxu0 0.0
      %646 = vmatpush2.msra.mxu0 0.0
      %647 = vmatprep.subr.mxu0 0.0
      %648 = vmatpush2.msra.mxu0 0.0
      %649 = vmatprep.subr.mxu0 0.0
      %650 = vmatpush2.msra.mxu0 0.0
      %651 = vmatprep.subr.mxu0 0.0
      %652 = vmatpush2.msra.mxu0 0.0
      %653 = vmatprep.subr.mxu0 0.0
      %654 = vmatpush2.msra.mxu0 0.0
      %655 = vmatprep.subr.mxu0 0.0
      %656 = vmatpush2.msra.mxu0 0.0
      %657 = vmatprep.subr.mxu0 0.0
      %658 = vmatpush2.msra.mxu0 0.0
      %659 = vmatprep.subr.mxu0 0.0
      %660 = vmatpush2.msra.mxu0 0.0
      %661 = vmatprep.subr.mxu0 0.0
      %662 = vmatpush2.msra.mxu0 0.0
      %663 = vmatprep.subr.mxu0 0.0
      %664 = vmatpush2.msra.mxu0 0.0
      %665 = vmatprep.subr.mxu0 0.0
      %666 = vmatpush2.msra.mxu0 0.0
      %667 = vmatprep.subr.mxu0 0.0
      %668 = vmatpush2.msra.mxu0 0.0
      %669 = vmatprep.mubr.f32.mxu0 0.0
      %670 = vmatmul.mubr.f32.gmra.mxu0 %v600
      %v671 = vpop.f32.mrf.mxu0
      %v672 = vadd.f32 %v597, %v671
      %v673 = vpop.f32.mrf.mxu0
      %674 = vmatprep.mubr.f32.mxu0 0.0
      %675 = vmatmul.mubr.f32.gmra.mxu0 %v603
      %v676 = vpop.f32.mrf.mxu0
      %v677 = vadd.f32 %v597, %v676
      %v678 = vpop.f32.mrf.mxu0
      %679 = vdwg.mxu0
      %v680 = vadd.f32 %v589, %v672
      %v681 = vadd.f32 %v590, %v677
      %v682 = vmax.f32 %v680, 0.0
      %v683 = vmax.f32 %v681, 0.0
      %684 = vst.msk [vmem:[%s224] sm:$0xff] %vm406, %v682
      %685 = vst.msk [vmem:[%s224 + $0x8] sm:$0xff] %vm406, %v683
      %p686 = scmp.lt.s32.totalorder %s16, 1
      %s687 = scalar_select %p686, %s16, 1
      %s688 = smul.addr %s687, 2
      %s689 = smul.addr %s688, 8
      %s690 = scalar_lea.vmem %s5, %s689
      // Predicated region
      $region41: #{_lambda_.8} parent=39 // pred_check
        %p691 = pneg %p144
      $region42: #{_lambda_.8} parent=39 // pred_check_branch
        %693 = sbr.rel (%p691) target = $region44
      $region43: #{_lambda_.8} parent=39 // pred_region
        _
      $region44: #{_lambda_.8} parent=39 // pred_fallthru
        _
    $region40: #{_lambda_.8} parent=5 // pred_fallthru
      _
    %p694 = scmp.le.s32.totalorder 2, %s11
    // Predicated region
    $region45: #{_lambda_.8} parent=5 // pred_check
      %p695 = pneg %p694
    $region46: #{_lambda_.8} parent=5 // pred_check_branch
      %697 = sbr.rel (%p695) target = $region48
    $region47: #{_lambda_.8} parent=5 // pred_region
      %s698 = ssub.s32 %s11, 2
      // Predicated region
      $region49: #{_lambda_.8} parent=47 // pred_check
        %p699 = pneg %p150
      $region50: #{_lambda_.8} parent=47 // pred_check_branch
        %701 = sbr.rel (%p699) target = $region52
      $region51: #{_lambda_.8} parent=47 // pred_region
        %p702 = scmp.lt.s32.totalorder %s17, 1
        %s703 = scalar_select %p702, %s17, 1
        %s704 = smul.addr %s703, 2
        %s705 = smul.addr %s704, 8
        %s706 = scalar_lea.vmem %s5, %s705
      $region52: #{_lambda_.8} parent=47 // pred_fallthru
        _
    $region48: #{_lambda_.8} parent=5 // pred_fallthru
      _
  $region6: #{_lambda_.8} parent=0 // loop_footer
    %s15 = sadd.s32 1, %s11
  $region7: #{_lambda_.8} parent=0 // loop_footer_branch
    %10 = sbr.rel target = $region3
  $region8: #{_lambda_.8} parent=0 // loop_exit
    _

// kernel: _lambda_.6
$region0: #{_lambda_.6}
  #allocation0 [shape = 'u32[]', space=smem, size = 0x4, offset = 0x4, fixed_abs, tag = 'smem constant byte address 0x4 - core index']
  #allocation1 [shape = 'u32[144,128]{1,0:T(1,128)}', space=vmem, size = 0x12000, scoped, tag = 'internal scratch']
  #allocation2 [shape = 'f32[24,4]{1,0:T(8,128)}', space=vmem, size = 0x3000, scoped, tag = 'scratch operand']
  #allocation3 [shape = 'f32[24,8]{1,0:T(8,128)}', space=vmem, size = 0x3000, scoped, tag = 'scratch operand']
  %s0 = inlined_call_operand.vmem [shape: f32[2,16,4], index: 0, kind: input, shape index: {}]
  %s1 = inlined_call_operand.vmem [shape: f32[2,4,8], index: 1, kind: input, shape index: {}]
  %s2 = inlined_call_operand.vmem [shape: f32[2,8,8], index: 2, kind: input, shape index: {}]
  %s3 = inlined_call_operand.vmem [shape: f32[4,8], index: 3, kind: input, shape index: {}]
  %s4 = inlined_call_operand.vmem [shape: f32[1,8], index: 4, kind: input, shape index: {}]
  %s5 = inlined_call_operand.vmem [shape: f32[2,16,8], index: 5, kind: output, shape index: {}]
  %s6 = sld [smem:[#allocation0]]
  $region53: #{_lambda_.6} parent=0
    _
  %s8 = ssub.s32 1, %s6
  %s9 = scalar_select 0, %s8, %s6
  loop: start=0, step=1, limit=4
  $region2: #{_lambda_.6} parent=0 // loop_pre_header
    _
  $region3: #{_lambda_.6} parent=0 // loop_header
    %s11 = sphi 0, %s15
    %p12 = scmp.ge.s32.totalorder %s11, 4
    %s21 = sphi 0, %s23
    %s24 = sphi 0, %s21
    %s25 = sphi 0, %s24
    %s41 = sphi 0, %s25
    %s45 = sphi 0, %s45
    %s47 = sphi 0, %s45
    %s48 = sphi 0, %s47
    %s62 = sphi 0, %s48
    %s66 = sphi 0, %s66
    %s68 = sphi 0, %s66
    %s69 = sphi 0, %s68
    %s83 = sphi 0, %s69
    %s87 = sphi 0, %s87
    %s89 = sphi 0, %s87
    %s90 = sphi 0, %s89
    %s104 = sphi 0, %s90
    %s108 = sphi 0, %s108
    %s110 = sphi 0, %s108
    %s111 = sphi 0, %s110
    %s125 = sphi 0, %s111
    %s131 = sphi 0, %s133
    %s134 = sphi 0, %s131
    %s135 = sphi 0, %s134
    %s151 = sphi 0, %s135
  $region4: #{_lambda_.6} parent=0 // loop_header_branch
    %14 = sbr.rel (%p12) target = $region8
  $region5: #{_lambda_.6} parent=0 // loop_body
    %s16 = ssub.s32 %s11, 1
    %s17 = ssub.s32 %s11, 2
    %s18 = sadd.s32 %s11, 1
    %s19 = ssub.s32 %s11, %s18
    %p20 = scmp.eq.s32.totalorder %s19, 0
    %s22 = sadd.s32 %s21, 1
    %s23 = scalar_select %p20, %s21, %s22
    %p26 = pneg %p20
    %p27 = scmp.eq.s32.totalorder %s11, 1
    %p28 = por %p26, %p27
    %p29 = scmp.ne.s32.totalorder %s21, %s24
    %p30 = scmp.eq.s32.totalorder %s11, 0
    %p31 = por %p29, %p30
    %p32 = scmp.ne.s32.totalorder %s21, %s24
    %p33 = scmp.eq.s32.totalorder %s16, 1
    %p34 = por %p32, %p33
    %p35 = scmp.ne.s32.totalorder %s24, %s25
    %p36 = scmp.eq.s32.totalorder %s16, 0
    %p37 = por %p35, %p36
    %p38 = scmp.ne.s32.totalorder %s24, %s25
    %p39 = scmp.eq.s32.totalorder %s17, 1
    %p40 = por %p38, %p39
    %p42 = scmp.ne.s32.totalorder %s25, %s41
    %p43 = scmp.eq.s32.totalorder %s17, 0
    %p44 = por %p42, %p43
    %s46 = sadd.s32 %s45, 1
    %p49 = scmp.eq.s32.totalorder %s11, 1
    %p50 = scmp.ne.s32.totalorder %s45, %s47
    %p51 = scmp.eq.s32.totalorder %s11, 0
    %p52 = por %p50, %p51
    %p53 = scmp.ne.s32.totalorder %s45, %s47
    %p54 = scmp.eq.s32.totalorder %s16, 1
    %p55 = por %p53, %p54
    %p56 = scmp.ne.s32.totalorder %s47, %s48
    %p57 = scmp.eq.s32.totalorder %s16, 0
    %p58 = por %p56, %p57
    %p59 = scmp.ne.s32.totalorder %s47, %s48
    %p60 = scmp.eq.s32.totalorder %s17, 1
    %p61 = por %p59, %p60
    %p63 = scmp.ne.s32.totalorder %s48, %s62
    %p64 = scmp.eq.s32.totalorder %s17, 0
    %p65 = por %p63, %p64
    %s67 = sadd.s32 %s66, 1
    %p70 = scmp.eq.s32.totalorder %s11, 1
    %p71 = scmp.ne.s32.totalorder %s66, %s68
    %p72 = scmp.eq.s32.totalorder %s11, 0
    %p73 = por %p71, %p72
    %p74 = scmp.ne.s32.totalorder %s66, %s68
    %p75 = scmp.eq.s32.totalorder %s16, 1
    %p76 = por %p74, %p75
    %p77 = scmp.ne.s32.totalorder %s68, %s69
    %p78 = scmp.eq.s32.totalorder %s16, 0
    %p79 = por %p77, %p78
    %p80 = scmp.ne.s32.totalorder %s68, %s69
    %p81 = scmp.eq.s32.totalorder %s17, 1
    %p82 = por %p80, %p81
    %p84 = scmp.ne.s32.totalorder %s69, %s83
    %p85 = scmp.eq.s32.totalorder %s17, 0
    %p86 = por %p84, %p85
    %s88 = sadd.s32 %s87, 1
    %p91 = scmp.eq.s32.totalorder %s11, 1
    %p92 = scmp.ne.s32.totalorder %s87, %s89
    %p93 = scmp.eq.s32.totalorder %s11, 0
    %p94 = por %p92, %p93
    %p95 = scmp.ne.s32.totalorder %s87, %s89
    %p96 = scmp.eq.s32.totalorder %s16, 1
    %p97 = por %p95, %p96
    %p98 = scmp.ne.s32.totalorder %s89, %s90
    %p99 = scmp.eq.s32.totalorder %s16, 0
    %p100 = por %p98, %p99
    %p101 = scmp.ne.s32.totalorder %s89, %s90
    %p102 = scmp.eq.s32.totalorder %s17, 1
    %p103 = por %p101, %p102
    %p105 = scmp.ne.s32.totalorder %s90, %s104
    %p106 = scmp.eq.s32.totalorder %s17, 0
    %p107 = por %p105, %p106
    %s109 = sadd.s32 %s108, 1
    %p112 = scmp.eq.s32.totalorder %s11, 1
    %p113 = scmp.ne.s32.totalorder %s108, %s110
    %p114 = scmp.eq.s32.totalorder %s11, 0
    %p115 = por %p113, %p114
    %p116 = scmp.ne.s32.totalorder %s108, %s110
    %p117 = scmp.eq.s32.totalorder %s16, 1
    %p118 = por %p116, %p117
    %p119 = scmp.ne.s32.totalorder %s110, %s111
    %p120 = scmp.eq.s32.totalorder %s16, 0
    %p121 = por %p119, %p120
    %p122 = scmp.ne.s32.totalorder %s110, %s111
    %p123 = scmp.eq.s32.totalorder %s17, 1
    %p124 = por %p122, %p123
    %p126 = scmp.ne.s32.totalorder %s111, %s125
    %p127 = scmp.eq.s32.totalorder %s17, 0
    %p128 = por %p126, %p127
    %s129 = ssub.s32 %s11, %s18
    %p130 = scmp.eq.s32.totalorder %s129, 0
    %s132 = sadd.s32 %s131, 1
    %s133 = scalar_select %p130, %s131, %s132
    %p136 = pneg %p130
    %p137 = scmp.eq.s32.totalorder %s11, 1
    %p138 = por %p136, %p137
    %p139 = scmp.ne.s32.totalorder %s131, %s134
    %p140 = scmp.eq.s32.totalorder %s11, 0
    %p141 = por %p139, %p140
    %p142 = scmp.ne.s32.totalorder %s131, %s134
    %p143 = scmp.eq.s32.totalorder %s16, 1
    %p144 = por %p142, %p143
    %p145 = scmp.ne.s32.totalorder %s134, %s135
    %p146 = scmp.eq.s32.totalorder %s16, 0
    %p147 = por %p145, %p146
    %p148 = scmp.ne.s32.totalorder %s134, %s135
    %p149 = scmp.eq.s32.totalorder %s17, 1
    %p150 = por %p148, %p149
    %p152 = scmp.ne.s32.totalorder %s135, %s151
    %p153 = scmp.eq.s32.totalorder %s17, 0
    %p154 = por %p152, %p153
    %p155 = scmp.le.s32.totalorder 1, %s11
    %p156 = scmp.lt.s32.totalorder %s11, 3
    %p157 = pnand %p155, %p156
    %p158 = pneg %p157
    // Predicated region
    $region9: #{_lambda_.6} parent=5 // pred_check
      _
    $region10: #{_lambda_.6} parent=5 // pred_check_branch
      %160 = sbr.rel (%p157) target = $region12
    $region11: #{_lambda_.6} parent=5 // pred_region
      %s161 = ssub.s32 %s11, 1
      // Predicated region
      $region13: #{_lambda_.6} parent=11 // pred_check
        %p162 = pneg %p58
      $region14: #{_lambda_.6} parent=11 // pred_check_branch
        %164 = sbr.rel (%p162) target = $region16
      $region15: #{_lambda_.6} parent=11 // pred_region
        _
      $region16: #{_lambda_.6} parent=11 // pred_fallthru
        _
      // Predicated region
      $region17: #{_lambda_.6} parent=11 // pred_check
        %p165 = pneg %p79
      $region18: #{_lambda_.6} parent=11 // pred_check_branch
        %167 = sbr.rel (%p165) target = $region20
      $region19: #{_lambda_.6} parent=11 // pred_region
        _
      $region20: #{_lambda_.6} parent=11 // pred_fallthru
        _
      // Predicated region
      $region21: #{_lambda_.6} parent=11 // pred_check
        %p168 = pneg %p100
      $region22: #{_lambda_.6} parent=11 // pred_check_branch
        %170 = sbr.rel (%p168) target = $region24
      $region23: #{_lambda_.6} parent=11 // pred_region
        _
      $region24: #{_lambda_.6} parent=11 // pred_fallthru
        _
      // Predicated region
      $region25: #{_lambda_.6} parent=11 // pred_check
        %p171 = pneg %p121
      $region26: #{_lambda_.6} parent=11 // pred_check_branch
        %173 = sbr.rel (%p171) target = $region28
      $region27: #{_lambda_.6} parent=11 // pred_region
        _
      $region28: #{_lambda_.6} parent=11 // pred_fallthru
        _
    $region12: #{_lambda_.6} parent=5 // pred_fallthru
      _
    %p174 = scmp.lt.s32.totalorder %s11, 2
    // Predicated region
    $region29: #{_lambda_.6} parent=5 // pred_check
      %p175 = pneg %p174
    $region30: #{_lambda_.6} parent=5 // pred_check_branch
      %177 = sbr.rel (%p175) target = $region32
    $region31: #{_lambda_.6} parent=5 // pred_region
      // Predicated region
      $region33: #{_lambda_.6} parent=31 // pred_check
        %p178 = pneg %p31
      $region34: #{_lambda_.6} parent=31 // pred_check_branch
        %180 = sbr.rel (%p178) target = $region36
      $region35: #{_lambda_.6} parent=31 // pred_region
        %p181 = scmp.lt.s32.totalorder %s11, 1
        %s182 = scalar_select %p181, %s11, 1
        %s183 = smul.addr %s182, 2
        %s184 = smul.addr %s183, 8
        %s185 = scalar_lea.vmem %s0, %s184
      $region36: #{_lambda_.6} parent=31 // pred_fallthru
        _
    $region32: #{_lambda_.6} parent=5 // pred_fallthru
      _
    %p186 = scmp.le.s32.totalorder 1, %s11
    %p187 = scmp.lt.s32.totalorder %s11, 3
    %p188 = pnand %p186, %p187
    %p189 = pneg %p188
    // Predicated region
    $region37: #{_lambda_.6} parent=5 // pred_check
      _
    $region38: #{_lambda_.6} parent=5 // pred_check_branch
      %191 = sbr.rel (%p188) target = $region40
    $region39: #{_lambda_.6} parent=5 // pred_region
      %s192 = ssub.s32 %s11, 1
      %p193 = scmp.lt.s32.totalorder %s16, 1
      %s194 = scalar_select %p193, %s16, 1
      %s195 = smul.addr %s194, 2
      %s196 = smul.addr %s195, 8
      %s197 = scalar_lea.vmem %s0, %s196
      %p198 = pneg %p37
      %p199 = pneg %p34
      %p200 = pneg %p58
      %p201 = pneg %p55
      %p202 = pneg %p79
      %p203 = pneg %p76
      %p204 = pneg %p100
      %p205 = pneg %p97
      %p206 = pneg %p121
      %p207 = pneg %p118
      %p208 = pneg %p147
      %p209 = pneg %p144
      %p210 = scmp.lt.s32.totalorder %s16, 1
      %s211 = scalar_select %p210, %s16, 1
      %s212 = smul.addr %s211, 2
      %s213 = smul.addr %s212, 8
      %s214 = scalar_lea.vmem %s5, %s213
      %p215 = scmp.lt.s32.totalorder %s16, 1
      %s216 = scalar_select %p215, %s16, 1
      %s217 = smul.addr %s216, 2
      %s218 = smul.addr %s217, 8
      %s219 = scalar_lea.vmem %s0, %s218
      %p220 = scmp.lt.s32.totalorder %s16, 1
      %s221 = scalar_select %p220, %s16, 1
      %s222 = smul.addr %s221, 2
      %s223 = smul.addr %s222, 8
      %s224 = scalar_lea.vmem %s5, %s223
      %v225 = vld [vmem:[%s219] sm:$0xff]
      %v226 = vld [vmem:[%s219 + $0x8] sm:$0xff]
      %vm227 = vcmask 31744
      %228 = vst.msk [vmem:[#allocation2] sm:$0xff] %vm227, 0.0
      %229 = vst.msk [vmem:[#allocation2 + $0x8] sm:$0xff] %vm227, %v225
      %230 = vst.msk [vmem:[#allocation2 + $0x10] sm:$0xff] %vm227, %v226
      %v231 = vld [vmem:[#allocation2] sm:$0xff]
      %v232 = vld [vmem:[#allocation2 + $0x8] sm:$0xff]
      %v233 = vld [vmem:[#allocation2 + $0x10] sm:$0xff]
      %v234 = vld [vmem:[%s1] sm:$0xf]
      %s235 = scalar_lea.vmem %s1, 4
      %v236 = vld [vmem:[%s235] sm:$0xf]
      %v238 = vsel %vm227, %v232, 0
      %v241 = vsel %vm227, %v233, 0
      %vm243 = vcmask 1043456
      %v245 = vsel %vm243, %v236, 0
      %247 = vmatprep.subr.mxu0 0.0
      %248 = vmatpush1.msra.mxu0 0.0
      %249 = vmatprep.subr.mxu0 0.0
      %250 = vmatpush1.msra.mxu0 0.0
      %251 = vmatprep.subr.mxu0 0.0
      %252 = vmatpush1.msra.mxu0 0.0
      %253 = vmatprep.subr.mxu0 0.0
      %254 = vmatpush1.msra.mxu0 0.0
      %255 = vmatprep.subr.mxu0 0.0
      %256 = vmatpush1.msra.mxu0 0.0
      %257 = vmatprep.subr.mxu0 0.0
      %258 = vmatpush1.msra.mxu0 0.0
      %259 = vmatprep.subr.mxu0 0.0
      %260 = vmatpush1.msra.mxu0 0.0
      %261 = vmatprep.subr.mxu0 0.0
      %262 = vmatpush1.msra.mxu0 0.0
      %263 = vmatprep.subr.mxu0 0.0
      %264 = vmatpush1.msra.mxu0 0.0
      %265 = vmatprep.subr.mxu0 0.0
      %266 = vmatpush1.msra.mxu0 0.0
      %267 = vmatprep.subr.mxu0 0.0
      %268 = vmatpush1.msra.mxu0 0.0
      %269 = vmatprep.subr.mxu0 0.0
      %270 = vmatpush1.msra.mxu0 0.0
      %271 = vmatprep.subr.mxu0 0.0
      %272 = vmatpush1.msra.mxu0 0.0
      %273 = vmatprep.subr.mxu0 0.0
      %274 = vmatpush1.msra.mxu0 0.0
      %275 = vmatprep.subr.mxu0 0.0
      %276 = vmatpush1.msra.mxu0 0.0
      %277 = vmatprep.subr.mxu0 0.0
      %278 = vmatpush1.msra.mxu0 %v245
      %279 = vmatprep.subr.mxu0 0.0
      %280 = vmatpush2.msra.mxu0 0.0
      %281 = vmatprep.subr.mxu0 0.0
      %282 = vmatpush2.msra.mxu0 0.0
      %283 = vmatprep.subr.mxu0 0.0
      %284 = vmatpush2.msra.mxu0 0.0
      %285 = vmatprep.subr.mxu0 0.0
      %286 = vmatpush2.msra.mxu0 0.0
      %287 = vmatprep.subr.mxu0 0.0
      %288 = vmatpush2.msra.mxu0 0.0
      %289 = vmatprep.subr.mxu0 0.0
      %290 = vmatpush2.msra.mxu0 0.0
      %291 = vmatprep.subr.mxu0 0.0
      %292 = vmatpush2.msra.mxu0 0.0
      %293 = vmatprep.subr.mxu0 0.0
      %294 = vmatpush2.msra.mxu0 0.0
      %295 = vmatprep.subr.mxu0 0.0
      %296 = vmatpush2.msra.mxu0 0.0
      %297 = vmatprep.subr.mxu0 0.0
      %298 = vmatpush2.msra.mxu0 0.0
      %299 = vmatprep.subr.mxu0 0.0
      %300 = vmatpush2.msra.mxu0 0.0
      %301 = vmatprep.subr.mxu0 0.0
      %302 = vmatpush2.msra.mxu0 0.0
      %303 = vmatprep.subr.mxu0 0.0
      %304 = vmatpush2.msra.mxu0 0.0
      %305 = vmatprep.subr.mxu0 0.0
      %306 = vmatpush2.msra.mxu0 0.0
      %307 = vmatprep.subr.mxu0 0.0
      %308 = vmatpush2.msra.mxu0 0.0
      %309 = vmatprep.subr.mxu0 0.0
      %310 = vmatpush2.msra.mxu0 0.0
      %311 = vmatprep.mubr.f32.mxu0 0.0
      %312 = vmatmul.mubr.f32.gmra.mxu0 %v238
      %v313 = vpop.f32.mrf.mxu0
      %v314 = vadd.f32 0.0, %v313
      %v315 = vpop.f32.mrf.mxu0
      %316 = vmatprep.mubr.f32.mxu0 0.0
      %317 = vmatmul.mubr.f32.gmra.mxu0 %v241
      %v318 = vpop.f32.mrf.mxu0
      %v319 = vadd.f32 0.0, %v318
      %v320 = vpop.f32.mrf.mxu0
      %321 = vdwg.mxu0
      %vm323 = vcmask 1040384
      %v324 = vrot.slane %v231, 7
      %v325 = vrot.slane %v232, 7
      %v326 = vsel %vm323, %v324, %v325
      %v327 = vrot.slane %v233, 7
      %v328 = vsel %vm323, %v325, %v327
      %v329 = vsel %vm227, %v326, 0
      %v331 = vsel %vm227, %v328, 0
      %v334 = vsel %vm243, %v234, 0
      %336 = vmatprep.subr.mxu0 0.0
      %337 = vmatpush1.msra.mxu0 0.0
      %338 = vmatprep.subr.mxu0 0.0
      %339 = vmatpush1.msra.mxu0 0.0
      %340 = vmatprep.subr.mxu0 0.0
      %341 = vmatpush1.msra.mxu0 0.0
      %342 = vmatprep.subr.mxu0 0.0
      %343 = vmatpush1.msra.mxu0 0.0
      %344 = vmatprep.subr.mxu0 0.0
      %345 = vmatpush1.msra.mxu0 0.0
      %346 = vmatprep.subr.mxu0 0.0
      %347 = vmatpush1.msra.mxu0 0.0
      %348 = vmatprep.subr.mxu0 0.0
      %349 = vmatpush1.msra.mxu0 0.0
      %350 = vmatprep.subr.mxu0 0.0
      %351 = vmatpush1.msra.mxu0 0.0
      %352 = vmatprep.subr.mxu0 0.0
      %353 = vmatpush1.msra.mxu0 0.0
      %354 = vmatprep.subr.mxu0 0.0
      %355 = vmatpush1.msra.mxu0 0.0
      %356 = vmatprep.subr.mxu0 0.0
      %357 = vmatpush1.msra.mxu0 0.0
      %358 = vmatprep.subr.mxu0 0.0
      %359 = vmatpush1.msra.mxu0 0.0
      %360 = vmatprep.subr.mxu0 0.0
      %361 = vmatpush1.msra.mxu0 0.0
      %362 = vmatprep.subr.mxu0 0.0
      %363 = vmatpush1.msra.mxu0 0.0
      %364 = vmatprep.subr.mxu0 0.0
      %365 = vmatpush1.msra.mxu0 0.0
      %366 = vmatprep.subr.mxu0 0.0
      %367 = vmatpush1.msra.mxu0 %v334
      %368 = vmatprep.subr.mxu0 0.0
      %369 = vmatpush2.msra.mxu0 0.0
      %370 = vmatprep.subr.mxu0 0.0
      %371 = vmatpush2.msra.mxu0 0.0
      %372 = vmatprep.subr.mxu0 0.0
      %373 = vmatpush2.msra.mxu0 0.0
      %374 = vmatprep.subr.mxu0 0.0
      %375 = vmatpush2.msra.mxu0 0.0
      %376 = vmatprep.subr.mxu0 0.0
      %377 = vmatpush2.msra.mxu0 0.0
      %378 = vmatprep.subr.mxu0 0.0
      %379 = vmatpush2.msra.mxu0 0.0
      %380 = vmatprep.subr.mxu0 0.0
      %381 = vmatpush2.msra.mxu0 0.0
      %382 = vmatprep.subr.mxu0 0.0
      %383 = vmatpush2.msra.mxu0 0.0
      %384 = vmatprep.subr.mxu0 0.0
      %385 = vmatpush2.msra.mxu0 0.0
      %386 = vmatprep.subr.mxu0 0.0
      %387 = vmatpush2.msra.mxu0 0.0
      %388 = vmatprep.subr.mxu0 0.0
      %389 = vmatpush2.msra.mxu0 0.0
      %390 = vmatprep.subr.mxu0 0.0
      %391 = vmatpush2.msra.mxu0 0.0
      %392 = vmatprep.subr.mxu0 0.0
      %393 = vmatpush2.msra.mxu0 0.0
      %394 = vmatprep.subr.mxu0 0.0
      %395 = vmatpush2.msra.mxu0 0.0
      %396 = vmatprep.subr.mxu0 0.0
      %397 = vmatpush2.msra.mxu0 0.0
      %398 = vmatprep.subr.mxu0 0.0
      %399 = vmatpush2.msra.mxu0 0.0
      %400 = vmatprep.mubr.f32.mxu0 0.0
      %401 = vmatmul.mubr.f32.gmra.mxu0 %v329
      %v402 = vpop.f32.mrf.mxu0
      %v403 = vadd.f32 %v314, %v402
      %v404 = vpop.f32.mrf.mxu0
      %405 = vmatprep.mubr.f32.mxu0 0.0
      %406 = vmatmul.mubr.f32.gmra.mxu0 %v331
      %v407 = vpop.f32.mrf.mxu0
      %v408 = vadd.f32 %v319, %v407
      %v409 = vpop.f32.mrf.mxu0
      %410 = vdwg.mxu0
      %v411 = vmax.f32 %v403, 0.0
      %v412 = vmax.f32 %v408, 0.0
      %vm413 = vcmask 64512
      %414 = vst.msk [vmem:[#allocation3] sm:$0xff] %vm413, 0.0
      %415 = vst.msk [vmem:[#allocation3 + $0x8] sm:$0xff] %vm413, %v411
      %416 = vst.msk [vmem:[#allocation3 + $0x10] sm:$0xff] %vm413, %v412
      %v417 = vld [vmem:[#allocation3] sm:$0xff]
      %v418 = vld [vmem:[#allocation3 + $0x8] sm:$0xff]
      %v419 = vld [vmem:[#allocation3 + $0x10] sm:$0xff]
      %v420 = vld [vmem:[%s2] sm:$0xff]
      %s421 = scalar_lea.vmem %s2, 8
      %v422 = vld [vmem:[%s421] sm:$0xff]
      %v424 = vsel %vm413, %v418, 0
      %v427 = vsel %vm413, %v419, 0
      %429 = vmatprep.subr.mxu0 0.0
      %430 = vmatpush1.msra.mxu0 0.0
      %431 = vmatprep.subr.mxu0 0.0
      %432 = vmatpush1.msra.mxu0 0.0
      %433 = vmatprep.subr.mxu0 0.0
      %434 = vmatpush1.msra.mxu0 0.0
      %435 = vmatprep.subr.mxu0 0.0
      %436 = vmatpush1.msra.mxu0 0.0
      %437 = vmatprep.subr.mxu0 0.0
      %438 = vmatpush1.msra.mxu0 0.0
      %439 = vmatprep.subr.mxu0 0.0
      %440 = vmatpush1.msra.mxu0 0.0
      %441 = vmatprep.subr.mxu0 0.0
      %442 = vmatpush1.msra.mxu0 0.0
      %443 = vmatprep.subr.mxu0 0.0
      %444 = vmatpush1.msra.mxu0 0.0
      %445 = vmatprep.subr.mxu0 0.0
      %446 = vmatpush1.msra.mxu0 0.0
      %447 = vmatprep.subr.mxu0 0.0
      %448 = vmatpush1.msra.mxu0 0.0
      %449 = vmatprep.subr.mxu0 0.0
      %450 = vmatpush1.msra.mxu0 0.0
      %451 = vmatprep.subr.mxu0 0.0
      %452 = vmatpush1.msra.mxu0 0.0
      %453 = vmatprep.subr.mxu0 0.0
      %454 = vmatpush1.msra.mxu0 0.0
      %455 = vmatprep.subr.mxu0 0.0
      %456 = vmatpush1.msra.mxu0 0.0
      %457 = vmatprep.subr.mxu0 0.0
      %458 = vmatpush1.msra.mxu0 0.0
      %459 = vmatprep.subr.mxu0 0.0
      %460 = vmatpush1.msra.mxu0 %v422
      %461 = vmatprep.subr.mxu0 0.0
      %462 = vmatpush2.msra.mxu0 0.0
      %463 = vmatprep.subr.mxu0 0.0
      %464 = vmatpush2.msra.mxu0 0.0
      %465 = vmatprep.subr.mxu0 0.0
      %466 = vmatpush2.msra.mxu0 0.0
      %467 = vmatprep.subr.mxu0 0.0
      %468 = vmatpush2.msra.mxu0 0.0
      %469 = vmatprep.subr.mxu0 0.0
      %470 = vmatpush2.msra.mxu0 0.0
      %471 = vmatprep.subr.mxu0 0.0
      %472 = vmatpush2.msra.mxu0 0.0
      %473 = vmatprep.subr.mxu0 0.0
      %474 = vmatpush2.msra.mxu0 0.0
      %475 = vmatprep.subr.mxu0 0.0
      %476 = vmatpush2.msra.mxu0 0.0
      %477 = vmatprep.subr.mxu0 0.0
      %478 = vmatpush2.msra.mxu0 0.0
      %479 = vmatprep.subr.mxu0 0.0
      %480 = vmatpush2.msra.mxu0 0.0
      %481 = vmatprep.subr.mxu0 0.0
      %482 = vmatpush2.msra.mxu0 0.0
      %483 = vmatprep.subr.mxu0 0.0
      %484 = vmatpush2.msra.mxu0 0.0
      %485 = vmatprep.subr.mxu0 0.0
      %486 = vmatpush2.msra.mxu0 0.0
      %487 = vmatprep.subr.mxu0 0.0
      %488 = vmatpush2.msra.mxu0 0.0
      %489 = vmatprep.subr.mxu0 0.0
      %490 = vmatpush2.msra.mxu0 0.0
      %491 = vmatprep.subr.mxu0 0.0
      %492 = vmatpush2.msra.mxu0 0.0
      %493 = vmatprep.mubr.f32.mxu0 0.0
      %494 = vmatmul.mubr.f32.gmra.mxu0 %v424
      %v495 = vpop.f32.mrf.mxu0
      %v496 = vadd.f32 0.0, %v495
      %v497 = vpop.f32.mrf.mxu0
      %498 = vmatprep.mubr.f32.mxu0 0.0
      %499 = vmatmul.mubr.f32.gmra.mxu0 %v427
      %v500 = vpop.f32.mrf.mxu0
      %v501 = vadd.f32 0.0, %v500
      %v502 = vpop.f32.mrf.mxu0
      %503 = vdwg.mxu0
      %v505 = vrot.slane %v417, 7
      %v506 = vrot.slane %v418, 7
      %v507 = vsel %vm323, %v505, %v506
      %v508 = vrot.slane %v419, 7
      %v509 = vsel %vm323, %v506, %v508
      %v510 = vsel %vm413, %v507, 0
      %v512 = vsel %vm413, %v509, 0
      %514 = vmatprep.subr.mxu0 0.0
      %515 = vmatpush1.msra.mxu0 0.0
      %516 = vmatprep.subr.mxu0 0.0
      %517 = vmatpush1.msra.mxu0 0.0
      %518 = vmatprep.subr.mxu0 0.0
      %519 = vmatpush1.msra.mxu0 0.0
      %520 = vmatprep.subr.mxu0 0.0
      %521 = vmatpush1.msra.mxu0 0.0
      %522 = vmatprep.subr.mxu0 0.0
      %523 = vmatpush1.msra.mxu0 0.0
      %524 = vmatprep.subr.mxu0 0.0
      %525 = vmatpush1.msra.mxu0 0.0
      %526 = vmatprep.subr.mxu0 0.0
      %527 = vmatpush1.msra.mxu0 0.0
      %528 = vmatprep.subr.mxu0 0.0
      %529 = vmatpush1.msra.mxu0 0.0
      %530 = vmatprep.subr.mxu0 0.0
      %531 = vmatpush1.msra.mxu0 0.0
      %532 = vmatprep.subr.mxu0 0.0
      %533 = vmatpush1.msra.mxu0 0.0
      %534 = vmatprep.subr.mxu0 0.0
      %535 = vmatpush1.msra.mxu0 0.0
      %536 = vmatprep.subr.mxu0 0.0
      %537 = vmatpush1.msra.mxu0 0.0
      %538 = vmatprep.subr.mxu0 0.0
      %539 = vmatpush1.msra.mxu0 0.0
      %540 = vmatprep.subr.mxu0 0.0
      %541 = vmatpush1.msra.mxu0 0.0
      %542 = vmatprep.subr.mxu0 0.0
      %543 = vmatpush1.msra.mxu0 0.0
      %544 = vmatprep.subr.mxu0 0.0
      %545 = vmatpush1.msra.mxu0 %v420
      %546 = vmatprep.subr.mxu0 0.0
      %547 = vmatpush2.msra.mxu0 0.0
      %548 = vmatprep.subr.mxu0 0.0
      %549 = vmatpush2.msra.mxu0 0.0
      %550 = vmatprep.subr.mxu0 0.0
      %551 = vmatpush2.msra.mxu0 0.0
      %552 = vmatprep.subr.mxu0 0.0
      %553 = vmatpush2.msra.mxu0 0.0
      %554 = vmatprep.subr.mxu0 0.0
      %555 = vmatpush2.msra.mxu0 0.0
      %556 = vmatprep.subr.mxu0 0.0
      %557 = vmatpush2.msra.mxu0 0.0
      %558 = vmatprep.subr.mxu0 0.0
      %559 = vmatpush2.msra.mxu0 0.0
      %560 = vmatprep.subr.mxu0 0.0
      %561 = vmatpush2.msra.mxu0 0.0
      %562 = vmatprep.subr.mxu0 0.0
      %563 = vmatpush2.msra.mxu0 0.0
      %564 = vmatprep.subr.mxu0 0.0
      %565 = vmatpush2.msra.mxu0 0.0
      %566 = vmatprep.subr.mxu0 0.0
      %567 = vmatpush2.msra.mxu0 0.0
      %568 = vmatprep.subr.mxu0 0.0
      %569 = vmatpush2.msra.mxu0 0.0
      %570 = vmatprep.subr.mxu0 0.0
      %571 = vmatpush2.msra.mxu0 0.0
      %572 = vmatprep.subr.mxu0 0.0
      %573 = vmatpush2.msra.mxu0 0.0
      %574 = vmatprep.subr.mxu0 0.0
      %575 = vmatpush2.msra.mxu0 0.0
      %576 = vmatprep.subr.mxu0 0.0
      %577 = vmatpush2.msra.mxu0 0.0
      %578 = vmatprep.mubr.f32.mxu0 0.0
      %579 = vmatmul.mubr.f32.gmra.mxu0 %v510
      %v580 = vpop.f32.mrf.mxu0
      %v581 = vadd.f32 %v496, %v580
      %v582 = vpop.f32.mrf.mxu0
      %583 = vmatprep.mubr.f32.mxu0 0.0
      %584 = vmatmul.mubr.f32.gmra.mxu0 %v512
      %v585 = vpop.f32.mrf.mxu0
      %v586 = vadd.f32 %v501, %v585
      %v587 = vpop.f32.mrf.mxu0
      %588 = vdwg.mxu0
      %v589 = vmax.f32 %v581, 0.0
      %v590 = vmax.f32 %v586, 0.0
      %v591 = vld [vmem:[%s3] sm:$0xf]
      %v592 = vld [vmem:[%s4] sm:$0x1]
      %v594 = vlaneseq
      %v595 = vshrl.u32 %v594, 7
      %v596 = vsub.s32 0, %v595
      %v597 = vrot.slane %v592, %v596
      %v600 = vsel %vm227, %v225, 0
      %v603 = vsel %vm227, %v226, 0
      %v606 = vsel %vm243, %v591, 0
      %608 = vmatprep.subr.mxu0 0.0
      %609 = vmatpush1.msra.mxu0 0.0
      %610 = vmatprep.subr.mxu0 0.0
      %611 = vmatpush1.msra.mxu0 0.0
      %612 = vmatprep.subr.mxu0 0.0
      %613 = vmatpush1.msra.mxu0 0.0
      %614 = vmatprep.subr.mxu0 0.0
      %615 = vmatpush1.msra.mxu0 0.0
      %616 = vmatprep.subr.mxu0 0.0
      %617 = vmatpush1.msra.mxu0 0.0
      %618 = vmatprep.subr.mxu0 0.0
      %619 = vmatpush1.msra.mxu0 0.0
      %620 = vmatprep.subr.mxu0 0.0
      %621 = vmatpush1.msra.mxu0 0.0
      %622 = vmatprep.subr.mxu0 0.0
      %623 = vmatpush1.msra.mxu0 0.0
      %624 = vmatprep.subr.mxu0 0.0
      %625 = vmatpush1.msra.mxu0 0.0
      %626 = vmatprep.subr.mxu0 0.0
      %627 = vmatpush1.msra.mxu0 0.0
      %628 = vmatprep.subr.mxu0 0.0
      %629 = vmatpush1.msra.mxu0 0.0
      %630 = vmatprep.subr.mxu0 0.0
      %631 = vmatpush1.msra.mxu0 0.0
      %632 = vmatprep.subr.mxu0 0.0
      %633 = vmatpush1.msra.mxu0 0.0
      %634 = vmatprep.subr.mxu0 0.0
      %635 = vmatpush1.msra.mxu0 0.0
      %636 = vmatprep.subr.mxu0 0.0
      %637 = vmatpush1.msra.mxu0 0.0
      %638 = vmatprep.subr.mxu0 0.0
      %639 = vmatpush1.msra.mxu0 %v606
      %640 = vmatprep.subr.mxu0 0.0
      %641 = vmatpush2.msra.mxu0 0.0
      %642 = vmatprep.subr.mxu0 0.0
      %643 = vmatpush2.msra.mxu0 0.0
      %644 = vmatprep.subr.mxu0 0.0
      %645 = vmatpush2.msra.mxu0 0.0
      %646 = vmatprep.subr.mxu0 0.0
      %647 = vmatpush2.msra.mxu0 0.0
      %648 = vmatprep.subr.mxu0 0.0
      %649 = vmatpush2.msra.mxu0 0.0
      %650 = vmatprep.subr.mxu0 0.0
      %651 = vmatpush2.msra.mxu0 0.0
      %652 = vmatprep.subr.mxu0 0.0
      %653 = vmatpush2.msra.mxu0 0.0
      %654 = vmatprep.subr.mxu0 0.0
      %655 = vmatpush2.msra.mxu0 0.0
      %656 = vmatprep.subr.mxu0 0.0
      %657 = vmatpush2.msra.mxu0 0.0
      %658 = vmatprep.subr.mxu0 0.0
      %659 = vmatpush2.msra.mxu0 0.0
      %660 = vmatprep.subr.mxu0 0.0
      %661 = vmatpush2.msra.mxu0 0.0
      %662 = vmatprep.subr.mxu0 0.0
      %663 = vmatpush2.msra.mxu0 0.0
      %664 = vmatprep.subr.mxu0 0.0
      %665 = vmatpush2.msra.mxu0 0.0
      %666 = vmatprep.subr.mxu0 0.0
      %667 = vmatpush2.msra.mxu0 0.0
      %668 = vmatprep.subr.mxu0 0.0
      %669 = vmatpush2.msra.mxu0 0.0
      %670 = vmatprep.subr.mxu0 0.0
      %671 = vmatpush2.msra.mxu0 0.0
      %672 = vmatprep.mubr.f32.mxu0 0.0
      %673 = vmatmul.mubr.f32.gmra.mxu0 %v600
      %v674 = vpop.f32.mrf.mxu0
      %v675 = vadd.f32 %v597, %v674
      %v676 = vpop.f32.mrf.mxu0
      %677 = vmatprep.mubr.f32.mxu0 0.0
      %678 = vmatmul.mubr.f32.gmra.mxu0 %v603
      %v679 = vpop.f32.mrf.mxu0
      %v680 = vadd.f32 %v597, %v679
      %v681 = vpop.f32.mrf.mxu0
      %682 = vdwg.mxu0
      %v683 = vadd.f32 %v589, %v675
      %v684 = vadd.f32 %v590, %v680
      %v685 = vmax.f32 %v683, 0.0
      %v686 = vmax.f32 %v684, 0.0
      %687 = vst.msk [vmem:[%s224] sm:$0xff] %vm413, %v685
      %688 = vst.msk [vmem:[%s224 + $0x8] sm:$0xff] %vm413, %v686
      %p689 = scmp.lt.s32.totalorder %s16, 1
      %s690 = scalar_select %p689, %s16, 1
      %s691 = smul.addr %s690, 2
      %s692 = smul.addr %s691, 8
      %s693 = scalar_lea.vmem %s5, %s692
      // Predicated region
      $region41: #{_lambda_.6} parent=39 // pred_check
        %p694 = pneg %p144
      $region42: #{_lambda_.6} parent=39 // pred_check_branch
        %696 = sbr.rel (%p694) target = $region44
      $region43: #{_lambda_.6} parent=39 // pred_region
        _
      $region44: #{_lambda_.6} parent=39 // pred_fallthru
        _
    $region40: #{_lambda_.6} parent=5 // pred_fallthru
      _
    %p697 = scmp.le.s32.totalorder 2, %s11
    // Predicated region
    $region45: #{_lambda_.6} parent=5 // pred_check
      %p698 = pneg %p697
    $region46: #{_lambda_.6} parent=5 // pred_check_branch
      %700 = sbr.rel (%p698) target = $region48
    $region47: #{_lambda_.6} parent=5 // pred_region
      %s701 = ssub.s32 %s11, 2
      // Predicated region
      $region49: #{_lambda_.6} parent=47 // pred_check
        %p702 = pneg %p150
      $region50: #{_lambda_.6} parent=47 // pred_check_branch
        %704 = sbr.rel (%p702) target = $region52
      $region51: #{_lambda_.6} parent=47 // pred_region
        %p705 = scmp.lt.s32.totalorder %s17, 1
        %s706 = scalar_select %p705, %s17, 1
        %s707 = smul.addr %s706, 2
        %s708 = smul.addr %s707, 8
        %s709 = scalar_lea.vmem %s5, %s708
      $region52: #{_lambda_.6} parent=47 // pred_fallthru
        _
    $region48: #{_lambda_.6} parent=5 // pred_fallthru
      _
  $region6: #{_lambda_.6} parent=0 // loop_footer
    %s15 = sadd.s32 1, %s11
  $region7: #{_lambda_.6} parent=0 // loop_footer_branch
    %10 = sbr.rel target = $region3
  $region8: #{_lambda_.6} parent=0 // loop_exit
    _

// kernel: _lambda_.7
$region0: #{_lambda_.7}
  #allocation0 [shape = 'u32[]', space=smem, size = 0x4, offset = 0x4, fixed_abs, tag = 'smem constant byte address 0x4 - core index']
  #allocation1 [shape = 'u32[144,128]{1,0:T(1,128)}', space=vmem, size = 0x12000, scoped, tag = 'internal scratch']
  #allocation2 [shape = 'f32[24,8]{1,0:T(8,128)}', space=vmem, size = 0x3000, scoped, tag = 'scratch operand']
  #allocation3 [shape = 'f32[24,8]{1,0:T(8,128)}', space=vmem, size = 0x3000, scoped, tag = 'scratch operand']
  %s0 = inlined_call_operand.vmem [shape: f32[2,16,8], index: 0, kind: input, shape index: {}]
  %s1 = inlined_call_operand.vmem [shape: f32[2,8,8], index: 1, kind: input, shape index: {}]
  %s2 = inlined_call_operand.vmem [shape: f32[2,8,8], index: 2, kind: input, shape index: {}]
  %s3 = inlined_call_operand.vmem [shape: f32[2,16,8], index: 3, kind: output, shape index: {}]
  %s4 = sld [smem:[#allocation0]]
  $region45: #{_lambda_.7} parent=0
    _
  %s6 = ssub.s32 1, %s4
  %s7 = scalar_select 0, %s6, %s4
  loop: start=0, step=1, limit=4
  $region2: #{_lambda_.7} parent=0 // loop_pre_header
    _
  $region3: #{_lambda_.7} parent=0 // loop_header
    %s9 = sphi 0, %s13
    %p10 = scmp.ge.s32.totalorder %s9, 4
    %s19 = sphi 0, %s21
    %s22 = sphi 0, %s19
    %s23 = sphi 0, %s22
    %s39 = sphi 0, %s23
    %s43 = sphi 0, %s43
    %s45 = sphi 0, %s43
    %s46 = sphi 0, %s45
    %s60 = sphi 0, %s46
    %s64 = sphi 0, %s64
    %s66 = sphi 0, %s64
    %s67 = sphi 0, %s66
    %s81 = sphi 0, %s67
    %s87 = sphi 0, %s89
    %s90 = sphi 0, %s87
    %s91 = sphi 0, %s90
    %s107 = sphi 0, %s91
  $region4: #{_lambda_.7} parent=0 // loop_header_branch
    %12 = sbr.rel (%p10) target = $region8
  $region5: #{_lambda_.7} parent=0 // loop_body
    %s14 = ssub.s32 %s9, 1
    %s15 = ssub.s32 %s9, 2
    %s16 = sadd.s32 %s9, 1
    %s17 = ssub.s32 %s9, %s16
    %p18 = scmp.eq.s32.totalorder %s17, 0
    %s20 = sadd.s32 %s19, 1
    %s21 = scalar_select %p18, %s19, %s20
    %p24 = pneg %p18
    %p25 = scmp.eq.s32.totalorder %s9, 1
    %p26 = por %p24, %p25
    %p27 = scmp.ne.s32.totalorder %s19, %s22
    %p28 = scmp.eq.s32.totalorder %s9, 0
    %p29 = por %p27, %p28
    %p30 = scmp.ne.s32.totalorder %s19, %s22
    %p31 = scmp.eq.s32.totalorder %s14, 1
    %p32 = por %p30, %p31
    %p33 = scmp.ne.s32.totalorder %s22, %s23
    %p34 = scmp.eq.s32.totalorder %s14, 0
    %p35 = por %p33, %p34
    %p36 = scmp.ne.s32.totalorder %s22, %s23
    %p37 = scmp.eq.s32.totalorder %s15, 1
    %p38 = por %p36, %p37
    %p40 = scmp.ne.s32.totalorder %s23, %s39
    %p41 = scmp.eq.s32.totalorder %s15, 0
    %p42 = por %p40, %p41
    %s44 = sadd.s32 %s43, 1
    %p47 = scmp.eq.s32.totalorder %s9, 1
    %p48 = scmp.ne.s32.totalorder %s43, %s45
    %p49 = scmp.eq.s32.totalorder %s9, 0
    %p50 = por %p48, %p49
    %p51 = scmp.ne.s32.totalorder %s43, %s45
    %p52 = scmp.eq.s32.totalorder %s14, 1
    %p53 = por %p51, %p52
    %p54 = scmp.ne.s32.totalorder %s45, %s46
    %p55 = scmp.eq.s32.totalorder %s14, 0
    %p56 = por %p54, %p55
    %p57 = scmp.ne.s32.totalorder %s45, %s46
    %p58 = scmp.eq.s32.totalorder %s15, 1
    %p59 = por %p57, %p58
    %p61 = scmp.ne.s32.totalorder %s46, %s60
    %p62 = scmp.eq.s32.totalorder %s15, 0
    %p63 = por %p61, %p62
    %s65 = sadd.s32 %s64, 1
    %p68 = scmp.eq.s32.totalorder %s9, 1
    %p69 = scmp.ne.s32.totalorder %s64, %s66
    %p70 = scmp.eq.s32.totalorder %s9, 0
    %p71 = por %p69, %p70
    %p72 = scmp.ne.s32.totalorder %s64, %s66
    %p73 = scmp.eq.s32.totalorder %s14, 1
    %p74 = por %p72, %p73
    %p75 = scmp.ne.s32.totalorder %s66, %s67
    %p76 = scmp.eq.s32.totalorder %s14, 0
    %p77 = por %p75, %p76
    %p78 = scmp.ne.s32.totalorder %s66, %s67
    %p79 = scmp.eq.s32.totalorder %s15, 1
    %p80 = por %p78, %p79
    %p82 = scmp.ne.s32.totalorder %s67, %s81
    %p83 = scmp.eq.s32.totalorder %s15, 0
    %p84 = por %p82, %p83
    %s85 = ssub.s32 %s9, %s16
    %p86 = scmp.eq.s32.totalorder %s85, 0
    %s88 = sadd.s32 %s87, 1
    %s89 = scalar_select %p86, %s87, %s88
    %p92 = pneg %p86
    %p93 = scmp.eq.s32.totalorder %s9, 1
    %p94 = por %p92, %p93
    %p95 = scmp.ne.s32.totalorder %s87, %s90
    %p96 = scmp.eq.s32.totalorder %s9, 0
    %p97 = por %p95, %p96
    %p98 = scmp.ne.s32.totalorder %s87, %s90
    %p99 = scmp.eq.s32.totalorder %s14, 1
    %p100 = por %p98, %p99
    %p101 = scmp.ne.s32.totalorder %s90, %s91
    %p102 = scmp.eq.s32.totalorder %s14, 0
    %p103 = por %p101, %p102
    %p104 = scmp.ne.s32.totalorder %s90, %s91
    %p105 = scmp.eq.s32.totalorder %s15, 1
    %p106 = por %p104, %p105
    %p108 = scmp.ne.s32.totalorder %s91, %s107
    %p109 = scmp.eq.s32.totalorder %s15, 0
    %p110 = por %p108, %p109
    %p111 = scmp.le.s32.totalorder 1, %s9
    %p112 = scmp.lt.s32.totalorder %s9, 3
    %p113 = pnand %p111, %p112
    %p114 = pneg %p113
    // Predicated region
    $region9: #{_lambda_.7} parent=5 // pred_check
      _
    $region10: #{_lambda_.7} parent=5 // pred_check_branch
      %116 = sbr.rel (%p113) target = $region12
    $region11: #{_lambda_.7} parent=5 // pred_region
      %s117 = ssub.s32 %s9, 1
      // Predicated region
      $region13: #{_lambda_.7} parent=11 // pred_check
        %p118 = pneg %p56
      $region14: #{_lambda_.7} parent=11 // pred_check_branch
        %120 = sbr.rel (%p118) target = $region16
      $region15: #{_lambda_.7} parent=11 // pred_region
        _
      $region16: #{_lambda_.7} parent=11 // pred_fallthru
        _
      // Predicated region
      $region17: #{_lambda_.7} parent=11 // pred_check
        %p121 = pneg %p77
      $region18: #{_lambda_.7} parent=11 // pred_check_branch
        %123 = sbr.rel (%p121) target = $region20
      $region19: #{_lambda_.7} parent=11 // pred_region
        _
      $region20: #{_lambda_.7} parent=11 // pred_fallthru
        _
    $region12: #{_lambda_.7} parent=5 // pred_fallthru
      _
    %p124 = scmp.lt.s32.totalorder %s9, 2
    // Predicated region
    $region21: #{_lambda_.7} parent=5 // pred_check
      %p125 = pneg %p124
    $region22: #{_lambda_.7} parent=5 // pred_check_branch
      %127 = sbr.rel (%p125) target = $region24
    $region23: #{_lambda_.7} parent=5 // pred_region
      // Predicated region
      $region25: #{_lambda_.7} parent=23 // pred_check
        %p128 = pneg %p29
      $region26: #{_lambda_.7} parent=23 // pred_check_branch
        %130 = sbr.rel (%p128) target = $region28
      $region27: #{_lambda_.7} parent=23 // pred_region
        %p131 = scmp.lt.s32.totalorder %s9, 1
        %s132 = scalar_select %p131, %s9, 1
        %s133 = smul.addr %s132, 2
        %s134 = smul.addr %s133, 8
        %s135 = scalar_lea.vmem %s0, %s134
      $region28: #{_lambda_.7} parent=23 // pred_fallthru
        _
    $region24: #{_lambda_.7} parent=5 // pred_fallthru
      _
    %p136 = scmp.le.s32.totalorder 1, %s9
    %p137 = scmp.lt.s32.totalorder %s9, 3
    %p138 = pnand %p136, %p137
    %p139 = pneg %p138
    // Predicated region
    $region29: #{_lambda_.7} parent=5 // pred_check
      _
    $region30: #{_lambda_.7} parent=5 // pred_check_branch
      %141 = sbr.rel (%p138) target = $region32
    $region31: #{_lambda_.7} parent=5 // pred_region
      %s142 = ssub.s32 %s9, 1
      %p143 = scmp.lt.s32.totalorder %s14, 1
      %s144 = scalar_select %p143, %s14, 1
      %s145 = smul.addr %s144, 2
      %s146 = smul.addr %s145, 8
      %s147 = scalar_lea.vmem %s0, %s146
      %p148 = pneg %p35
      %p149 = pneg %p32
      %p150 = pneg %p56
      %p151 = pneg %p53
      %p152 = pneg %p77
      %p153 = pneg %p74
      %p154 = pneg %p103
      %p155 = pneg %p100
      %p156 = scmp.lt.s32.totalorder %s14, 1
      %s157 = scalar_select %p156, %s14, 1
      %s158 = smul.addr %s157, 2
      %s159 = smul.addr %s158, 8
      %s160 = scalar_lea.vmem %s3, %s159
      %p161 = scmp.lt.s32.totalorder %s14, 1
      %s162 = scalar_select %p161, %s14, 1
      %s163 = smul.addr %s162, 2
      %s164 = smul.addr %s163, 8
      %s165 = scalar_lea.vmem %s0, %s164
      %p166 = scmp.lt.s32.totalorder %s14, 1
      %s167 = scalar_select %p166, %s14, 1
      %s168 = smul.addr %s167, 2
      %s169 = smul.addr %s168, 8
      %s170 = scalar_lea.vmem %s3, %s169
      %v171 = vld [vmem:[%s165] sm:$0xff]
      %v172 = vld [vmem:[%s165 + $0x8] sm:$0xff]
      %vm173 = vcmask 64512
      %174 = vst.msk [vmem:[#allocation2] sm:$0xff] %vm173, 0.0
      %175 = vst.msk [vmem:[#allocation2 + $0x8] sm:$0xff] %vm173, %v171
      %176 = vst.msk [vmem:[#allocation2 + $0x10] sm:$0xff] %vm173, %v172
      %v177 = vld [vmem:[#allocation2] sm:$0xff]
      %v178 = vld [vmem:[#allocation2 + $0x8] sm:$0xff]
      %v179 = vld [vmem:[#allocation2 + $0x10] sm:$0xff]
      %v180 = vld [vmem:[%s1] sm:$0xff]
      %s181 = scalar_lea.vmem %s1, 8
      %v182 = vld [vmem:[%s181] sm:$0xff]
      %v184 = vsel %vm173, %v178, 0
      %v187 = vsel %vm173, %v179, 0
      %189 = vmatprep.subr.mxu0 0.0
      %190 = vmatpush1.msra.mxu0 0.0
      %191 = vmatprep.subr.mxu0 0.0
      %192 = vmatpush1.msra.mxu0 0.0
      %193 = vmatprep.subr.mxu0 0.0
      %194 = vmatpush1.msra.mxu0 0.0
      %195 = vmatprep.subr.mxu0 0.0
      %196 = vmatpush1.msra.mxu0 0.0
      %197 = vmatprep.subr.mxu0 0.0
      %198 = vmatpush1.msra.mxu0 0.0
      %199 = vmatprep.subr.mxu0 0.0
      %200 = vmatpush1.msra.mxu0 0.0
      %201 = vmatprep.subr.mxu0 0.0
      %202 = vmatpush1.msra.mxu0 0.0
      %203 = vmatprep.subr.mxu0 0.0
      %204 = vmatpush1.msra.mxu0 0.0
      %205 = vmatprep.subr.mxu0 0.0
      %206 = vmatpush1.msra.mxu0 0.0
      %207 = vmatprep.subr.mxu0 0.0
      %208 = vmatpush1.msra.mxu0 0.0
      %209 = vmatprep.subr.mxu0 0.0
      %210 = vmatpush1.msra.mxu0 0.0
      %211 = vmatprep.subr.mxu0 0.0
      %212 = vmatpush1.msra.mxu0 0.0
      %213 = vmatprep.subr.mxu0 0.0
      %214 = vmatpush1.msra.mxu0 0.0
      %215 = vmatprep.subr.mxu0 0.0
      %216 = vmatpush1.msra.mxu0 0.0
      %217 = vmatprep.subr.mxu0 0.0
      %218 = vmatpush1.msra.mxu0 0.0
      %219 = vmatprep.subr.mxu0 0.0
      %220 = vmatpush1.msra.mxu0 %v182
      %221 = vmatprep.subr.mxu0 0.0
      %222 = vmatpush2.msra.mxu0 0.0
      %223 = vmatprep.subr.mxu0 0.0
      %224 = vmatpush2.msra.mxu0 0.0
      %225 = vmatprep.subr.mxu0 0.0
      %226 = vmatpush2.msra.mxu0 0.0
      %227 = vmatprep.subr.mxu0 0.0
      %228 = vmatpush2.msra.mxu0 0.0
      %229 = vmatprep.subr.mxu0 0.0
      %230 = vmatpush2.msra.mxu0 0.0
      %231 = vmatprep.subr.mxu0 0.0
      %232 = vmatpush2.msra.mxu0 0.0
      %233 = vmatprep.subr.mxu0 0.0
      %234 = vmatpush2.msra.mxu0 0.0
      %235 = vmatprep.subr.mxu0 0.0
      %236 = vmatpush2.msra.mxu0 0.0
      %237 = vmatprep.subr.mxu0 0.0
      %238 = vmatpush2.msra.mxu0 0.0
      %239 = vmatprep.subr.mxu0 0.0
      %240 = vmatpush2.msra.mxu0 0.0
      %241 = vmatprep.subr.mxu0 0.0
      %242 = vmatpush2.msra.mxu0 0.0
      %243 = vmatprep.subr.mxu0 0.0
      %244 = vmatpush2.msra.mxu0 0.0
      %245 = vmatprep.subr.mxu0 0.0
      %246 = vmatpush2.msra.mxu0 0.0
      %247 = vmatprep.subr.mxu0 0.0
      %248 = vmatpush2.msra.mxu0 0.0
      %249 = vmatprep.subr.mxu0 0.0
      %250 = vmatpush2.msra.mxu0 0.0
      %251 = vmatprep.subr.mxu0 0.0
      %252 = vmatpush2.msra.mxu0 0.0
      %253 = vmatprep.mubr.f32.mxu0 0.0
      %254 = vmatmul.mubr.f32.gmra.mxu0 %v184
      %v255 = vpop.f32.mrf.mxu0
      %v256 = vadd.f32 0.0, %v255
      %v257 = vpop.f32.mrf.mxu0
      %258 = vmatprep.mubr.f32.mxu0 0.0
      %259 = vmatmul.mubr.f32.gmra.mxu0 %v187
      %v260 = vpop.f32.mrf.mxu0
      %v261 = vadd.f32 0.0, %v260
      %v262 = vpop.f32.mrf.mxu0
      %263 = vdwg.mxu0
      %vm265 = vcmask 1041408
      %v266 = vrot.slane %v177, 6
      %v267 = vrot.slane %v178, 6
      %v268 = vsel %vm265, %v266, %v267
      %v269 = vrot.slane %v179, 6
      %v270 = vsel %vm265, %v267, %v269
      %v271 = vsel %vm173, %v268, 0
      %v273 = vsel %vm173, %v270, 0
      %275 = vmatprep.subr.mxu0 0.0
      %276 = vmatpush1.msra.mxu0 0.0
      %277 = vmatprep.subr.mxu0 0.0
      %278 = vmatpush1.msra.mxu0 0.0
      %279 = vmatprep.subr.mxu0 0.0
      %280 = vmatpush1.msra.mxu0 0.0
      %281 = vmatprep.subr.mxu0 0.0
      %282 = vmatpush1.msra.mxu0 0.0
      %283 = vmatprep.subr.mxu0 0.0
      %284 = vmatpush1.msra.mxu0 0.0
      %285 = vmatprep.subr.mxu0 0.0
      %286 = vmatpush1.msra.mxu0 0.0
      %287 = vmatprep.subr.mxu0 0.0
      %288 = vmatpush1.msra.mxu0 0.0
      %289 = vmatprep.subr.mxu0 0.0
      %290 = vmatpush1.msra.mxu0 0.0
      %291 = vmatprep.subr.mxu0 0.0
      %292 = vmatpush1.msra.mxu0 0.0
      %293 = vmatprep.subr.mxu0 0.0
      %294 = vmatpush1.msra.mxu0 0.0
      %295 = vmatprep.subr.mxu0 0.0
      %296 = vmatpush1.msra.mxu0 0.0
      %297 = vmatprep.subr.mxu0 0.0
      %298 = vmatpush1.msra.mxu0 0.0
      %299 = vmatprep.subr.mxu0 0.0
      %300 = vmatpush1.msra.mxu0 0.0
      %301 = vmatprep.subr.mxu0 0.0
      %302 = vmatpush1.msra.mxu0 0.0
      %303 = vmatprep.subr.mxu0 0.0
      %304 = vmatpush1.msra.mxu0 0.0
      %305 = vmatprep.subr.mxu0 0.0
      %306 = vmatpush1.msra.mxu0 %v180
      %307 = vmatprep.subr.mxu0 0.0
      %308 = vmatpush2.msra.mxu0 0.0
      %309 = vmatprep.subr.mxu0 0.0
      %310 = vmatpush2.msra.mxu0 0.0
      %311 = vmatprep.subr.mxu0 0.0
      %312 = vmatpush2.msra.mxu0 0.0
      %313 = vmatprep.subr.mxu0 0.0
      %314 = vmatpush2.msra.mxu0 0.0
      %315 = vmatprep.subr.mxu0 0.0
      %316 = vmatpush2.msra.mxu0 0.0
      %317 = vmatprep.subr.mxu0 0.0
      %318 = vmatpush2.msra.mxu0 0.0
      %319 = vmatprep.subr.mxu0 0.0
      %320 = vmatpush2.msra.mxu0 0.0
      %321 = vmatprep.subr.mxu0 0.0
      %322 = vmatpush2.msra.mxu0 0.0
      %323 = vmatprep.subr.mxu0 0.0
      %324 = vmatpush2.msra.mxu0 0.0
      %325 = vmatprep.subr.mxu0 0.0
      %326 = vmatpush2.msra.mxu0 0.0
      %327 = vmatprep.subr.mxu0 0.0
      %328 = vmatpush2.msra.mxu0 0.0
      %329 = vmatprep.subr.mxu0 0.0
      %330 = vmatpush2.msra.mxu0 0.0
      %331 = vmatprep.subr.mxu0 0.0
      %332 = vmatpush2.msra.mxu0 0.0
      %333 = vmatprep.subr.mxu0 0.0
      %334 = vmatpush2.msra.mxu0 0.0
      %335 = vmatprep.subr.mxu0 0.0
      %336 = vmatpush2.msra.mxu0 0.0
      %337 = vmatprep.subr.mxu0 0.0
      %338 = vmatpush2.msra.mxu0 0.0
      %339 = vmatprep.mubr.f32.mxu0 0.0
      %340 = vmatmul.mubr.f32.gmra.mxu0 %v271
      %v341 = vpop.f32.mrf.mxu0
      %v342 = vadd.f32 %v256, %v341
      %v343 = vpop.f32.mrf.mxu0
      %344 = vmatprep.mubr.f32.mxu0 0.0
      %345 = vmatmul.mubr.f32.gmra.mxu0 %v273
      %v346 = vpop.f32.mrf.mxu0
      %v347 = vadd.f32 %v261, %v346
      %v348 = vpop.f32.mrf.mxu0
      %349 = vdwg.mxu0
      %v350 = vmax.f32 %v342, 0.0
      %v351 = vmax.f32 %v347, 0.0
      %352 = vst.msk [vmem:[#allocation3] sm:$0xff] %vm173, 0.0
      %353 = vst.msk [vmem:[#allocation3 + $0x8] sm:$0xff] %vm173, %v350
      %354 = vst.msk [vmem:[#allocation3 + $0x10] sm:$0xff] %vm173, %v351
      %v355 = vld [vmem:[#allocation3] sm:$0xff]
      %v356 = vld [vmem:[#allocation3 + $0x8] sm:$0xff]
      %v357 = vld [vmem:[#allocation3 + $0x10] sm:$0xff]
      %v358 = vld [vmem:[%s2] sm:$0xff]
      %s359 = scalar_lea.vmem %s2, 8
      %v360 = vld [vmem:[%s359] sm:$0xff]
      %v362 = vsel %vm173, %v356, 0
      %v365 = vsel %vm173, %v357, 0
      %367 = vmatprep.subr.mxu0 0.0
      %368 = vmatpush1.msra.mxu0 0.0
      %369 = vmatprep.subr.mxu0 0.0
      %370 = vmatpush1.msra.mxu0 0.0
      %371 = vmatprep.subr.mxu0 0.0
      %372 = vmatpush1.msra.mxu0 0.0
      %373 = vmatprep.subr.mxu0 0.0
      %374 = vmatpush1.msra.mxu0 0.0
      %375 = vmatprep.subr.mxu0 0.0
      %376 = vmatpush1.msra.mxu0 0.0
      %377 = vmatprep.subr.mxu0 0.0
      %378 = vmatpush1.msra.mxu0 0.0
      %379 = vmatprep.subr.mxu0 0.0
      %380 = vmatpush1.msra.mxu0 0.0
      %381 = vmatprep.subr.mxu0 0.0
      %382 = vmatpush1.msra.mxu0 0.0
      %383 = vmatprep.subr.mxu0 0.0
      %384 = vmatpush1.msra.mxu0 0.0
      %385 = vmatprep.subr.mxu0 0.0
      %386 = vmatpush1.msra.mxu0 0.0
      %387 = vmatprep.subr.mxu0 0.0
      %388 = vmatpush1.msra.mxu0 0.0
      %389 = vmatprep.subr.mxu0 0.0
      %390 = vmatpush1.msra.mxu0 0.0
      %391 = vmatprep.subr.mxu0 0.0
      %392 = vmatpush1.msra.mxu0 0.0
      %393 = vmatprep.subr.mxu0 0.0
      %394 = vmatpush1.msra.mxu0 0.0
      %395 = vmatprep.subr.mxu0 0.0
      %396 = vmatpush1.msra.mxu0 0.0
      %397 = vmatprep.subr.mxu0 0.0
      %398 = vmatpush1.msra.mxu0 %v360
      %399 = vmatprep.subr.mxu0 0.0
      %400 = vmatpush2.msra.mxu0 0.0
      %401 = vmatprep.subr.mxu0 0.0
      %402 = vmatpush2.msra.mxu0 0.0
      %403 = vmatprep.subr.mxu0 0.0
      %404 = vmatpush2.msra.mxu0 0.0
      %405 = vmatprep.subr.mxu0 0.0
      %406 = vmatpush2.msra.mxu0 0.0
      %407 = vmatprep.subr.mxu0 0.0
      %408 = vmatpush2.msra.mxu0 0.0
      %409 = vmatprep.subr.mxu0 0.0
      %410 = vmatpush2.msra.mxu0 0.0
      %411 = vmatprep.subr.mxu0 0.0
      %412 = vmatpush2.msra.mxu0 0.0
      %413 = vmatprep.subr.mxu0 0.0
      %414 = vmatpush2.msra.mxu0 0.0
      %415 = vmatprep.subr.mxu0 0.0
      %416 = vmatpush2.msra.mxu0 0.0
      %417 = vmatprep.subr.mxu0 0.0
      %418 = vmatpush2.msra.mxu0 0.0
      %419 = vmatprep.subr.mxu0 0.0
      %420 = vmatpush2.msra.mxu0 0.0
      %421 = vmatprep.subr.mxu0 0.0
      %422 = vmatpush2.msra.mxu0 0.0
      %423 = vmatprep.subr.mxu0 0.0
      %424 = vmatpush2.msra.mxu0 0.0
      %425 = vmatprep.subr.mxu0 0.0
      %426 = vmatpush2.msra.mxu0 0.0
      %427 = vmatprep.subr.mxu0 0.0
      %428 = vmatpush2.msra.mxu0 0.0
      %429 = vmatprep.subr.mxu0 0.0
      %430 = vmatpush2.msra.mxu0 0.0
      %431 = vmatprep.mubr.f32.mxu0 0.0
      %432 = vmatmul.mubr.f32.gmra.mxu0 %v362
      %v433 = vpop.f32.mrf.mxu0
      %v434 = vadd.f32 0.0, %v433
      %v435 = vpop.f32.mrf.mxu0
      %436 = vmatprep.mubr.f32.mxu0 0.0
      %437 = vmatmul.mubr.f32.gmra.mxu0 %v365
      %v438 = vpop.f32.mrf.mxu0
      %v439 = vadd.f32 0.0, %v438
      %v440 = vpop.f32.mrf.mxu0
      %441 = vdwg.mxu0
      %v443 = vrot.slane %v355, 6
      %v444 = vrot.slane %v356, 6
      %v445 = vsel %vm265, %v443, %v444
      %v446 = vrot.slane %v357, 6
      %v447 = vsel %vm265, %v444, %v446
      %v448 = vsel %vm173, %v445, 0
      %v450 = vsel %vm173, %v447, 0
      %452 = vmatprep.subr.mxu0 0.0
      %453 = vmatpush1.msra.mxu0 0.0
      %454 = vmatprep.subr.mxu0 0.0
      %455 = vmatpush1.msra.mxu0 0.0
      %456 = vmatprep.subr.mxu0 0.0
      %457 = vmatpush1.msra.mxu0 0.0
      %458 = vmatprep.subr.mxu0 0.0
      %459 = vmatpush1.msra.mxu0 0.0
      %460 = vmatprep.subr.mxu0 0.0
      %461 = vmatpush1.msra.mxu0 0.0
      %462 = vmatprep.subr.mxu0 0.0
      %463 = vmatpush1.msra.mxu0 0.0
      %464 = vmatprep.subr.mxu0 0.0
      %465 = vmatpush1.msra.mxu0 0.0
      %466 = vmatprep.subr.mxu0 0.0
      %467 = vmatpush1.msra.mxu0 0.0
      %468 = vmatprep.subr.mxu0 0.0
      %469 = vmatpush1.msra.mxu0 0.0
      %470 = vmatprep.subr.mxu0 0.0
      %471 = vmatpush1.msra.mxu0 0.0
      %472 = vmatprep.subr.mxu0 0.0
      %473 = vmatpush1.msra.mxu0 0.0
      %474 = vmatprep.subr.mxu0 0.0
      %475 = vmatpush1.msra.mxu0 0.0
      %476 = vmatprep.subr.mxu0 0.0
      %477 = vmatpush1.msra.mxu0 0.0
      %478 = vmatprep.subr.mxu0 0.0
      %479 = vmatpush1.msra.mxu0 0.0
      %480 = vmatprep.subr.mxu0 0.0
      %481 = vmatpush1.msra.mxu0 0.0
      %482 = vmatprep.subr.mxu0 0.0
      %483 = vmatpush1.msra.mxu0 %v358
      %484 = vmatprep.subr.mxu0 0.0
      %485 = vmatpush2.msra.mxu0 0.0
      %486 = vmatprep.subr.mxu0 0.0
      %487 = vmatpush2.msra.mxu0 0.0
      %488 = vmatprep.subr.mxu0 0.0
      %489 = vmatpush2.msra.mxu0 0.0
      %490 = vmatprep.subr.mxu0 0.0
      %491 = vmatpush2.msra.mxu0 0.0
      %492 = vmatprep.subr.mxu0 0.0
      %493 = vmatpush2.msra.mxu0 0.0
      %494 = vmatprep.subr.mxu0 0.0
      %495 = vmatpush2.msra.mxu0 0.0
      %496 = vmatprep.subr.mxu0 0.0
      %497 = vmatpush2.msra.mxu0 0.0
      %498 = vmatprep.subr.mxu0 0.0
      %499 = vmatpush2.msra.mxu0 0.0
      %500 = vmatprep.subr.mxu0 0.0
      %501 = vmatpush2.msra.mxu0 0.0
      %502 = vmatprep.subr.mxu0 0.0
      %503 = vmatpush2.msra.mxu0 0.0
      %504 = vmatprep.subr.mxu0 0.0
      %505 = vmatpush2.msra.mxu0 0.0
      %506 = vmatprep.subr.mxu0 0.0
      %507 = vmatpush2.msra.mxu0 0.0
      %508 = vmatprep.subr.mxu0 0.0
      %509 = vmatpush2.msra.mxu0 0.0
      %510 = vmatprep.subr.mxu0 0.0
      %511 = vmatpush2.msra.mxu0 0.0
      %512 = vmatprep.subr.mxu0 0.0
      %513 = vmatpush2.msra.mxu0 0.0
      %514 = vmatprep.subr.mxu0 0.0
      %515 = vmatpush2.msra.mxu0 0.0
      %516 = vmatprep.mubr.f32.mxu0 0.0
      %517 = vmatmul.mubr.f32.gmra.mxu0 %v448
      %v518 = vpop.f32.mrf.mxu0
      %v519 = vadd.f32 %v434, %v518
      %v520 = vpop.f32.mrf.mxu0
      %521 = vmatprep.mubr.f32.mxu0 0.0
      %522 = vmatmul.mubr.f32.gmra.mxu0 %v450
      %v523 = vpop.f32.mrf.mxu0
      %v524 = vadd.f32 %v439, %v523
      %v525 = vpop.f32.mrf.mxu0
      %526 = vdwg.mxu0
      %v527 = vmax.f32 %v519, 0.0
      %v528 = vmax.f32 %v524, 0.0
      %v529 = vadd.f32 %v527, %v171
      %v530 = vadd.f32 %v528, %v172
      %v531 = vmax.f32 %v529, 0.0
      %v532 = vmax.f32 %v530, 0.0
      %533 = vst.msk [vmem:[%s170] sm:$0xff] %vm173, %v531
      %534 = vst.msk [vmem:[%s170 + $0x8] sm:$0xff] %vm173, %v532
      %p535 = scmp.lt.s32.totalorder %s14, 1
      %s536 = scalar_select %p535, %s14, 1
      %s537 = smul.addr %s536, 2
      %s538 = smul.addr %s537, 8
      %s539 = scalar_lea.vmem %s3, %s538
      // Predicated region
      $region33: #{_lambda_.7} parent=31 // pred_check
        %p540 = pneg %p100
      $region34: #{_lambda_.7} parent=31 // pred_check_branch
        %542 = sbr.rel (%p540) target = $region36
      $region35: #{_lambda_.7} parent=31 // pred_region
        _
      $region36: #{_lambda_.7} parent=31 // pred_fallthru
        _
    $region32: #{_lambda_.7} parent=5 // pred_fallthru
      _
    %p543 = scmp.le.s32.totalorder 2, %s9
    // Predicated region
    $region37: #{_lambda_.7} parent=5 // pred_check
      %p544 = pneg %p543
    $region38: #{_lambda_.7} parent=5 // pred_check_branch
      %546 = sbr.rel (%p544) target = $region40
    $region39: #{_lambda_.7} parent=5 // pred_region
      %s547 = ssub.s32 %s9, 2
      // Predicated region
      $region41: #{_lambda_.7} parent=39 // pred_check
        %p548 = pneg %p106
      $region42: #{_lambda_.7} parent=39 // pred_check_branch
        %550 = sbr.rel (%p548) target = $region44
      $region43: #{_lambda_.7} parent=39 // pred_region
        %p551 = scmp.lt.s32.totalorder %s15, 1
        %s552 = scalar_select %p551, %s15, 1
        %s553 = smul.addr %s552, 2
        %s554 = smul.addr %s553, 8
        %s555 = scalar_lea.vmem %s3, %s554
      $region44: #{_lambda_.7} parent=39 // pred_fallthru
        _
    $region40: #{_lambda_.7} parent=5 // pred_fallthru
      _
  $region6: #{_lambda_.7} parent=0 // loop_footer
    %s13 = sadd.s32 1, %s9
  $region7: #{_lambda_.7} parent=0 // loop_footer_branch
    %8 = sbr.rel target = $region3
  $region8: #{_lambda_.7} parent=0 // loop_exit
    _

// kernel: _lambda_.9
$region0: #{_lambda_.9}
  #allocation0 [shape = 'u32[]', space=smem, size = 0x4, offset = 0x4, fixed_abs, tag = 'smem constant byte address 0x4 - core index']
  #allocation1 [shape = 'u32[144,128]{1,0:T(1,128)}', space=vmem, size = 0x12000, scoped, tag = 'internal scratch']
  #allocation2 [shape = 'f32[20,6]{1,0:T(8,128)}', space=vmem, size = 0x3000, scoped, tag = 'scratch operand']
  #allocation3 [shape = 'f32[20,8]{1,0:T(8,128)}', space=vmem, size = 0x3000, scoped, tag = 'scratch operand']
  %s0 = inlined_call_operand.vmem [shape: f32[2,16,6], index: 0, kind: input, shape index: {}]
  %s1 = inlined_call_operand.vmem [shape: f32[2,6,8], index: 1, kind: input, shape index: {}]
  %s2 = inlined_call_operand.vmem [shape: f32[2,8,8], index: 2, kind: input, shape index: {}]
  %s3 = inlined_call_operand.vmem [shape: f32[6,8], index: 3, kind: input, shape index: {}]
  %s4 = inlined_call_operand.vmem [shape: f32[1,8], index: 4, kind: input, shape index: {}]
  %s5 = inlined_call_operand.vmem [shape: f32[2,16,8], index: 5, kind: output, shape index: {}]
  %s6 = sld [smem:[#allocation0]]
  $region53: #{_lambda_.9} parent=0
    _
  %s8 = ssub.s32 1, %s6
  %s9 = scalar_select 0, %s8, %s6
  loop: start=0, step=1, limit=4
  $region2: #{_lambda_.9} parent=0 // loop_pre_header
    _
  $region3: #{_lambda_.9} parent=0 // loop_header
    %s11 = sphi 0, %s15
    %p12 = scmp.ge.s32.totalorder %s11, 4
    %s21 = sphi 0, %s23
    %s24 = sphi 0, %s21
    %s25 = sphi 0, %s24
    %s41 = sphi 0, %s25
    %s45 = sphi 0, %s45
    %s47 = sphi 0, %s45
    %s48 = sphi 0, %s47
    %s62 = sphi 0, %s48
    %s66 = sphi 0, %s66
    %s68 = sphi 0, %s66
    %s69 = sphi 0, %s68
    %s83 = sphi 0, %s69
    %s87 = sphi 0, %s87
    %s89 = sphi 0, %s87
    %s90 = sphi 0, %s89
    %s104 = sphi 0, %s90
    %s108 = sphi 0, %s108
    %s110 = sphi 0, %s108
    %s111 = sphi 0, %s110
    %s125 = sphi 0, %s111
    %s131 = sphi 0, %s133
    %s134 = sphi 0, %s131
    %s135 = sphi 0, %s134
    %s151 = sphi 0, %s135
  $region4: #{_lambda_.9} parent=0 // loop_header_branch
    %14 = sbr.rel (%p12) target = $region8
  $region5: #{_lambda_.9} parent=0 // loop_body
    %s16 = ssub.s32 %s11, 1
    %s17 = ssub.s32 %s11, 2
    %s18 = sadd.s32 %s11, 1
    %s19 = ssub.s32 %s11, %s18
    %p20 = scmp.eq.s32.totalorder %s19, 0
    %s22 = sadd.s32 %s21, 1
    %s23 = scalar_select %p20, %s21, %s22
    %p26 = pneg %p20
    %p27 = scmp.eq.s32.totalorder %s11, 1
    %p28 = por %p26, %p27
    %p29 = scmp.ne.s32.totalorder %s21, %s24
    %p30 = scmp.eq.s32.totalorder %s11, 0
    %p31 = por %p29, %p30
    %p32 = scmp.ne.s32.totalorder %s21, %s24
    %p33 = scmp.eq.s32.totalorder %s16, 1
    %p34 = por %p32, %p33
    %p35 = scmp.ne.s32.totalorder %s24, %s25
    %p36 = scmp.eq.s32.totalorder %s16, 0
    %p37 = por %p35, %p36
    %p38 = scmp.ne.s32.totalorder %s24, %s25
    %p39 = scmp.eq.s32.totalorder %s17, 1
    %p40 = por %p38, %p39
    %p42 = scmp.ne.s32.totalorder %s25, %s41
    %p43 = scmp.eq.s32.totalorder %s17, 0
    %p44 = por %p42, %p43
    %s46 = sadd.s32 %s45, 1
    %p49 = scmp.eq.s32.totalorder %s11, 1
    %p50 = scmp.ne.s32.totalorder %s45, %s47
    %p51 = scmp.eq.s32.totalorder %s11, 0
    %p52 = por %p50, %p51
    %p53 = scmp.ne.s32.totalorder %s45, %s47
    %p54 = scmp.eq.s32.totalorder %s16, 1
    %p55 = por %p53, %p54
    %p56 = scmp.ne.s32.totalorder %s47, %s48
    %p57 = scmp.eq.s32.totalorder %s16, 0
    %p58 = por %p56, %p57
    %p59 = scmp.ne.s32.totalorder %s47, %s48
    %p60 = scmp.eq.s32.totalorder %s17, 1
    %p61 = por %p59, %p60
    %p63 = scmp.ne.s32.totalorder %s48, %s62
    %p64 = scmp.eq.s32.totalorder %s17, 0
    %p65 = por %p63, %p64
    %s67 = sadd.s32 %s66, 1
    %p70 = scmp.eq.s32.totalorder %s11, 1
    %p71 = scmp.ne.s32.totalorder %s66, %s68
    %p72 = scmp.eq.s32.totalorder %s11, 0
    %p73 = por %p71, %p72
    %p74 = scmp.ne.s32.totalorder %s66, %s68
    %p75 = scmp.eq.s32.totalorder %s16, 1
    %p76 = por %p74, %p75
    %p77 = scmp.ne.s32.totalorder %s68, %s69
    %p78 = scmp.eq.s32.totalorder %s16, 0
    %p79 = por %p77, %p78
    %p80 = scmp.ne.s32.totalorder %s68, %s69
    %p81 = scmp.eq.s32.totalorder %s17, 1
    %p82 = por %p80, %p81
    %p84 = scmp.ne.s32.totalorder %s69, %s83
    %p85 = scmp.eq.s32.totalorder %s17, 0
    %p86 = por %p84, %p85
    %s88 = sadd.s32 %s87, 1
    %p91 = scmp.eq.s32.totalorder %s11, 1
    %p92 = scmp.ne.s32.totalorder %s87, %s89
    %p93 = scmp.eq.s32.totalorder %s11, 0
    %p94 = por %p92, %p93
    %p95 = scmp.ne.s32.totalorder %s87, %s89
    %p96 = scmp.eq.s32.totalorder %s16, 1
    %p97 = por %p95, %p96
    %p98 = scmp.ne.s32.totalorder %s89, %s90
    %p99 = scmp.eq.s32.totalorder %s16, 0
    %p100 = por %p98, %p99
    %p101 = scmp.ne.s32.totalorder %s89, %s90
    %p102 = scmp.eq.s32.totalorder %s17, 1
    %p103 = por %p101, %p102
    %p105 = scmp.ne.s32.totalorder %s90, %s104
    %p106 = scmp.eq.s32.totalorder %s17, 0
    %p107 = por %p105, %p106
    %s109 = sadd.s32 %s108, 1
    %p112 = scmp.eq.s32.totalorder %s11, 1
    %p113 = scmp.ne.s32.totalorder %s108, %s110
    %p114 = scmp.eq.s32.totalorder %s11, 0
    %p115 = por %p113, %p114
    %p116 = scmp.ne.s32.totalorder %s108, %s110
    %p117 = scmp.eq.s32.totalorder %s16, 1
    %p118 = por %p116, %p117
    %p119 = scmp.ne.s32.totalorder %s110, %s111
    %p120 = scmp.eq.s32.totalorder %s16, 0
    %p121 = por %p119, %p120
    %p122 = scmp.ne.s32.totalorder %s110, %s111
    %p123 = scmp.eq.s32.totalorder %s17, 1
    %p124 = por %p122, %p123
    %p126 = scmp.ne.s32.totalorder %s111, %s125
    %p127 = scmp.eq.s32.totalorder %s17, 0
    %p128 = por %p126, %p127
    %s129 = ssub.s32 %s11, %s18
    %p130 = scmp.eq.s32.totalorder %s129, 0
    %s132 = sadd.s32 %s131, 1
    %s133 = scalar_select %p130, %s131, %s132
    %p136 = pneg %p130
    %p137 = scmp.eq.s32.totalorder %s11, 1
    %p138 = por %p136, %p137
    %p139 = scmp.ne.s32.totalorder %s131, %s134
    %p140 = scmp.eq.s32.totalorder %s11, 0
    %p141 = por %p139, %p140
    %p142 = scmp.ne.s32.totalorder %s131, %s134
    %p143 = scmp.eq.s32.totalorder %s16, 1
    %p144 = por %p142, %p143
    %p145 = scmp.ne.s32.totalorder %s134, %s135
    %p146 = scmp.eq.s32.totalorder %s16, 0
    %p147 = por %p145, %p146
    %p148 = scmp.ne.s32.totalorder %s134, %s135
    %p149 = scmp.eq.s32.totalorder %s17, 1
    %p150 = por %p148, %p149
    %p152 = scmp.ne.s32.totalorder %s135, %s151
    %p153 = scmp.eq.s32.totalorder %s17, 0
    %p154 = por %p152, %p153
    %p155 = scmp.le.s32.totalorder 1, %s11
    %p156 = scmp.lt.s32.totalorder %s11, 3
    %p157 = pnand %p155, %p156
    %p158 = pneg %p157
    // Predicated region
    $region9: #{_lambda_.9} parent=5 // pred_check
      _
    $region10: #{_lambda_.9} parent=5 // pred_check_branch
      %160 = sbr.rel (%p157) target = $region12
    $region11: #{_lambda_.9} parent=5 // pred_region
      %s161 = ssub.s32 %s11, 1
      // Predicated region
      $region13: #{_lambda_.9} parent=11 // pred_check
        %p162 = pneg %p58
      $region14: #{_lambda_.9} parent=11 // pred_check_branch
        %164 = sbr.rel (%p162) target = $region16
      $region15: #{_lambda_.9} parent=11 // pred_region
        _
      $region16: #{_lambda_.9} parent=11 // pred_fallthru
        _
      // Predicated region
      $region17: #{_lambda_.9} parent=11 // pred_check
        %p165 = pneg %p79
      $region18: #{_lambda_.9} parent=11 // pred_check_branch
        %167 = sbr.rel (%p165) target = $region20
      $region19: #{_lambda_.9} parent=11 // pred_region
        _
      $region20: #{_lambda_.9} parent=11 // pred_fallthru
        _
      // Predicated region
      $region21: #{_lambda_.9} parent=11 // pred_check
        %p168 = pneg %p100
      $region22: #{_lambda_.9} parent=11 // pred_check_branch
        %170 = sbr.rel (%p168) target = $region24
      $region23: #{_lambda_.9} parent=11 // pred_region
        _
      $region24: #{_lambda_.9} parent=11 // pred_fallthru
        _
      // Predicated region
      $region25: #{_lambda_.9} parent=11 // pred_check
        %p171 = pneg %p121
      $region26: #{_lambda_.9} parent=11 // pred_check_branch
        %173 = sbr.rel (%p171) target = $region28
      $region27: #{_lambda_.9} parent=11 // pred_region
        _
      $region28: #{_lambda_.9} parent=11 // pred_fallthru
        _
    $region12: #{_lambda_.9} parent=5 // pred_fallthru
      _
    %p174 = scmp.lt.s32.totalorder %s11, 2
    // Predicated region
    $region29: #{_lambda_.9} parent=5 // pred_check
      %p175 = pneg %p174
    $region30: #{_lambda_.9} parent=5 // pred_check_branch
      %177 = sbr.rel (%p175) target = $region32
    $region31: #{_lambda_.9} parent=5 // pred_region
      // Predicated region
      $region33: #{_lambda_.9} parent=31 // pred_check
        %p178 = pneg %p31
      $region34: #{_lambda_.9} parent=31 // pred_check_branch
        %180 = sbr.rel (%p178) target = $region36
      $region35: #{_lambda_.9} parent=31 // pred_region
        %p181 = scmp.lt.s32.totalorder %s11, 1
        %s182 = scalar_select %p181, %s11, 1
        %s183 = smul.addr %s182, 2
        %s184 = smul.addr %s183, 8
        %s185 = scalar_lea.vmem %s0, %s184
      $region36: #{_lambda_.9} parent=31 // pred_fallthru
        _
    $region32: #{_lambda_.9} parent=5 // pred_fallthru
      _
    %p186 = scmp.le.s32.totalorder 1, %s11
    %p187 = scmp.lt.s32.totalorder %s11, 3
    %p188 = pnand %p186, %p187
    %p189 = pneg %p188
    // Predicated region
    $region37: #{_lambda_.9} parent=5 // pred_check
      _
    $region38: #{_lambda_.9} parent=5 // pred_check_branch
      %191 = sbr.rel (%p188) target = $region40
    $region39: #{_lambda_.9} parent=5 // pred_region
      %s192 = ssub.s32 %s11, 1
      %p193 = scmp.lt.s32.totalorder %s16, 1
      %s194 = scalar_select %p193, %s16, 1
      %s195 = smul.addr %s194, 2
      %s196 = smul.addr %s195, 8
      %s197 = scalar_lea.vmem %s0, %s196
      %p198 = pneg %p37
      %p199 = pneg %p34
      %p200 = pneg %p58
      %p201 = pneg %p55
      %p202 = pneg %p79
      %p203 = pneg %p76
      %p204 = pneg %p100
      %p205 = pneg %p97
      %p206 = pneg %p121
      %p207 = pneg %p118
      %p208 = pneg %p147
      %p209 = pneg %p144
      %p210 = scmp.lt.s32.totalorder %s16, 1
      %s211 = scalar_select %p210, %s16, 1
      %s212 = smul.addr %s211, 2
      %s213 = smul.addr %s212, 8
      %s214 = scalar_lea.vmem %s5, %s213
      %p215 = scmp.lt.s32.totalorder %s16, 1
      %s216 = scalar_select %p215, %s16, 1
      %s217 = smul.addr %s216, 2
      %s218 = smul.addr %s217, 8
      %s219 = scalar_lea.vmem %s0, %s218
      %p220 = scmp.lt.s32.totalorder %s16, 1
      %s221 = scalar_select %p220, %s16, 1
      %s222 = smul.addr %s221, 2
      %s223 = smul.addr %s222, 8
      %s224 = scalar_lea.vmem %s5, %s223
      %v225 = vld [vmem:[%s219] sm:$0xff]
      %v226 = vld [vmem:[%s219 + $0x8] sm:$0xff]
      %v227 = vmax.f32 %v225, 0.0
      %v228 = vmax.f32 %v226, 0.0
      %vm229 = vcmask 48128
      %230 = vst.msk [vmem:[#allocation2] sm:$0xff] %vm229, %v227
      %231 = vst.msk [vmem:[#allocation2 + $0x8] sm:$0xff] %vm229, %v228
      %vm232 = vcmask 48132
      %233 = vst.msk [vmem:[#allocation2 + $0xc] sm:$0xf0] %vm232, %v228
      %v234 = vld [vmem:[#allocation2] sm:$0xff]
      %v235 = vld [vmem:[#allocation2 + $0x8] sm:$0xff]
      %v236 = vld [vmem:[#allocation2 + $0x10] sm:$0xf]
      %v237 = vld [vmem:[%s1] sm:$0x3f]
      %s238 = scalar_lea.vmem %s1, 8
      %v239 = vld [vmem:[%s238] sm:$0x3f]
      %vm243 = vcmask 1043456
      %v244 = vrot.slane %v234, 4
      %v245 = vrot.slane %v235, 4
      %v246 = vsel %vm243, %v244, %v245
      %v247 = vrot.slane %v236, 4
      %v248 = vsel %vm243, %v245, %v247
      %v249 = vsel %vm229, %v246, 0
      %v251 = vsel %vm229, %v248, 0
      %vm253 = vcmask 1045504
      %v255 = vsel %vm253, %v239, 0
      %257 = vmatprep.subr.mxu0 0.0
      %258 = vmatpush1.msra.mxu0 0.0
      %259 = vmatprep.subr.mxu0 0.0
      %260 = vmatpush1.msra.mxu0 0.0
      %261 = vmatprep.subr.mxu0 0.0
      %262 = vmatpush1.msra.mxu0 0.0
      %263 = vmatprep.subr.mxu0 0.0
      %264 = vmatpush1.msra.mxu0 0.0
      %265 = vmatprep.subr.mxu0 0.0
      %266 = vmatpush1.msra.mxu0 0.0
      %267 = vmatprep.subr.mxu0 0.0
      %268 = vmatpush1.msra.mxu0 0.0
      %269 = vmatprep.subr.mxu0 0.0
      %270 = vmatpush1.msra.mxu0 0.0
      %271 = vmatprep.subr.mxu0 0.0
      %272 = vmatpush1.msra.mxu0 0.0
      %273 = vmatprep.subr.mxu0 0.0
      %274 = vmatpush1.msra.mxu0 0.0
      %275 = vmatprep.subr.mxu0 0.0
      %276 = vmatpush1.msra.mxu0 0.0
      %277 = vmatprep.subr.mxu0 0.0
      %278 = vmatpush1.msra.mxu0 0.0
      %279 = vmatprep.subr.mxu0 0.0
      %280 = vmatpush1.msra.mxu0 0.0
      %281 = vmatprep.subr.mxu0 0.0
      %282 = vmatpush1.msra.mxu0 0.0
      %283 = vmatprep.subr.mxu0 0.0
      %284 = vmatpush1.msra.mxu0 0.0
      %285 = vmatprep.subr.mxu0 0.0
      %286 = vmatpush1.msra.mxu0 0.0
      %287 = vmatprep.subr.mxu0 0.0
      %288 = vmatpush1.msra.mxu0 %v255
      %289 = vmatprep.subr.mxu0 0.0
      %290 = vmatpush2.msra.mxu0 0.0
      %291 = vmatprep.subr.mxu0 0.0
      %292 = vmatpush2.msra.mxu0 0.0
      %293 = vmatprep.subr.mxu0 0.0
      %294 = vmatpush2.msra.mxu0 0.0
      %295 = vmatprep.subr.mxu0 0.0
      %296 = vmatpush2.msra.mxu0 0.0
      %297 = vmatprep.subr.mxu0 0.0
      %298 = vmatpush2.msra.mxu0 0.0
      %299 = vmatprep.subr.mxu0 0.0
      %300 = vmatpush2.msra.mxu0 0.0
      %301 = vmatprep.subr.mxu0 0.0
      %302 = vmatpush2.msra.mxu0 0.0
      %303 = vmatprep.subr.mxu0 0.0
      %304 = vmatpush2.msra.mxu0 0.0
      %305 = vmatprep.subr.mxu0 0.0
      %306 = vmatpush2.msra.mxu0 0.0
      %307 = vmatprep.subr.mxu0 0.0
      %308 = vmatpush2.msra.mxu0 0.0
      %309 = vmatprep.subr.mxu0 0.0
      %310 = vmatpush2.msra.mxu0 0.0
      %311 = vmatprep.subr.mxu0 0.0
      %312 = vmatpush2.msra.mxu0 0.0
      %313 = vmatprep.subr.mxu0 0.0
      %314 = vmatpush2.msra.mxu0 0.0
      %315 = vmatprep.subr.mxu0 0.0
      %316 = vmatpush2.msra.mxu0 0.0
      %317 = vmatprep.subr.mxu0 0.0
      %318 = vmatpush2.msra.mxu0 0.0
      %319 = vmatprep.subr.mxu0 0.0
      %320 = vmatpush2.msra.mxu0 0.0
      %321 = vmatprep.mubr.f32.mxu0 0.0
      %322 = vmatmul.mubr.f32.gmra.mxu0 %v249
      %v323 = vpop.f32.mrf.mxu0
      %v324 = vadd.f32 0.0, %v323
      %v325 = vpop.f32.mrf.mxu0
      %326 = vmatprep.mubr.f32.mxu0 0.0
      %327 = vmatmul.mubr.f32.gmra.mxu0 %v251
      %v328 = vpop.f32.mrf.mxu0
      %v329 = vadd.f32 0.0, %v328
      %v330 = vpop.f32.mrf.mxu0
      %331 = vdwg.mxu0
      %v332 = vsel %vm229, %v234, 0
      %v334 = vsel %vm229, %v235, 0
      %v337 = vsel %vm253, %v237, 0
      %339 = vmatprep.subr.mxu0 0.0
      %340 = vmatpush1.msra.mxu0 0.0
      %341 = vmatprep.subr.mxu0 0.0
      %342 = vmatpush1.msra.mxu0 0.0
      %343 = vmatprep.subr.mxu0 0.0
      %344 = vmatpush1.msra.mxu0 0.0
      %345 = vmatprep.subr.mxu0 0.0
      %346 = vmatpush1.msra.mxu0 0.0
      %347 = vmatprep.subr.mxu0 0.0
      %348 = vmatpush1.msra.mxu0 0.0
      %349 = vmatprep.subr.mxu0 0.0
      %350 = vmatpush1.msra.mxu0 0.0
      %351 = vmatprep.subr.mxu0 0.0
      %352 = vmatpush1.msra.mxu0 0.0
      %353 = vmatprep.subr.mxu0 0.0
      %354 = vmatpush1.msra.mxu0 0.0
      %355 = vmatprep.subr.mxu0 0.0
      %356 = vmatpush1.msra.mxu0 0.0
      %357 = vmatprep.subr.mxu0 0.0
      %358 = vmatpush1.msra.mxu0 0.0
      %359 = vmatprep.subr.mxu0 0.0
      %360 = vmatpush1.msra.mxu0 0.0
      %361 = vmatprep.subr.mxu0 0.0
      %362 = vmatpush1.msra.mxu0 0.0
      %363 = vmatprep.subr.mxu0 0.0
      %364 = vmatpush1.msra.mxu0 0.0
      %365 = vmatprep.subr.mxu0 0.0
      %366 = vmatpush1.msra.mxu0 0.0
      %367 = vmatprep.subr.mxu0 0.0
      %368 = vmatpush1.msra.mxu0 0.0
      %369 = vmatprep.subr.mxu0 0.0
      %370 = vmatpush1.msra.mxu0 %v337
      %371 = vmatprep.subr.mxu0 0.0
      %372 = vmatpush2.msra.mxu0 0.0
      %373 = vmatprep.subr.mxu0 0.0
      %374 = vmatpush2.msra.mxu0 0.0
      %375 = vmatprep.subr.mxu0 0.0
      %376 = vmatpush2.msra.mxu0 0.0
      %377 = vmatprep.subr.mxu0 0.0
      %378 = vmatpush2.msra.mxu0 0.0
      %379 = vmatprep.subr.mxu0 0.0
      %380 = vmatpush2.msra.mxu0 0.0
      %381 = vmatprep.subr.mxu0 0.0
      %382 = vmatpush2.msra.mxu0 0.0
      %383 = vmatprep.subr.mxu0 0.0
      %384 = vmatpush2.msra.mxu0 0.0
      %385 = vmatprep.subr.mxu0 0.0
      %386 = vmatpush2.msra.mxu0 0.0
      %387 = vmatprep.subr.mxu0 0.0
      %388 = vmatpush2.msra.mxu0 0.0
      %389 = vmatprep.subr.mxu0 0.0
      %390 = vmatpush2.msra.mxu0 0.0
      %391 = vmatprep.subr.mxu0 0.0
      %392 = vmatpush2.msra.mxu0 0.0
      %393 = vmatprep.subr.mxu0 0.0
      %394 = vmatpush2.msra.mxu0 0.0
      %395 = vmatprep.subr.mxu0 0.0
      %396 = vmatpush2.msra.mxu0 0.0
      %397 = vmatprep.subr.mxu0 0.0
      %398 = vmatpush2.msra.mxu0 0.0
      %399 = vmatprep.subr.mxu0 0.0
      %400 = vmatpush2.msra.mxu0 0.0
      %401 = vmatprep.subr.mxu0 0.0
      %402 = vmatpush2.msra.mxu0 0.0
      %403 = vmatprep.mubr.f32.mxu0 0.0
      %404 = vmatmul.mubr.f32.gmra.mxu0 %v332
      %v405 = vpop.f32.mrf.mxu0
      %v406 = vadd.f32 %v324, %v405
      %v407 = vpop.f32.mrf.mxu0
      %408 = vmatprep.mubr.f32.mxu0 0.0
      %409 = vmatmul.mubr.f32.gmra.mxu0 %v334
      %v410 = vpop.f32.mrf.mxu0
      %v411 = vadd.f32 %v329, %v410
      %v412 = vpop.f32.mrf.mxu0
      %413 = vdwg.mxu0
      %v414 = vmax.f32 %v406, 0.0
      %v415 = vmax.f32 %v411, 0.0
      %vm416 = vcmask 64512
      %417 = vst.msk [vmem:[#allocation3] sm:$0xff] %vm416, %v414
      %418 = vst.msk [vmem:[#allocation3 + $0x8] sm:$0xff] %vm416, %v415
      %vm419 = vcmask 64516
      %420 = vst.msk [vmem:[#allocation3 + $0xc] sm:$0xf0] %vm419, %v415
      %v421 = vld [vmem:[#allocation3] sm:$0xff]
      %v422 = vld [vmem:[#allocation3 + $0x8] sm:$0xff]
      %v423 = vld [vmem:[#allocation3 + $0x10] sm:$0xf]
      %v424 = vld [vmem:[%s2] sm:$0xff]
      %s425 = scalar_lea.vmem %s2, 8
      %v426 = vld [vmem:[%s425] sm:$0xff]
      %v430 = vrot.slane %v421, 4
      %v431 = vrot.slane %v422, 4
      %v432 = vsel %vm243, %v430, %v431
      %v433 = vrot.slane %v423, 4
      %v434 = vsel %vm243, %v431, %v433
      %v435 = vsel %vm416, %v432, 0
      %v437 = vsel %vm416, %v434, 0
      %439 = vmatprep.subr.mxu0 0.0
      %440 = vmatpush1.msra.mxu0 0.0
      %441 = vmatprep.subr.mxu0 0.0
      %442 = vmatpush1.msra.mxu0 0.0
      %443 = vmatprep.subr.mxu0 0.0
      %444 = vmatpush1.msra.mxu0 0.0
      %445 = vmatprep.subr.mxu0 0.0
      %446 = vmatpush1.msra.mxu0 0.0
      %447 = vmatprep.subr.mxu0 0.0
      %448 = vmatpush1.msra.mxu0 0.0
      %449 = vmatprep.subr.mxu0 0.0
      %450 = vmatpush1.msra.mxu0 0.0
      %451 = vmatprep.subr.mxu0 0.0
      %452 = vmatpush1.msra.mxu0 0.0
      %453 = vmatprep.subr.mxu0 0.0
      %454 = vmatpush1.msra.mxu0 0.0
      %455 = vmatprep.subr.mxu0 0.0
      %456 = vmatpush1.msra.mxu0 0.0
      %457 = vmatprep.subr.mxu0 0.0
      %458 = vmatpush1.msra.mxu0 0.0
      %459 = vmatprep.subr.mxu0 0.0
      %460 = vmatpush1.msra.mxu0 0.0
      %461 = vmatprep.subr.mxu0 0.0
      %462 = vmatpush1.msra.mxu0 0.0
      %463 = vmatprep.subr.mxu0 0.0
      %464 = vmatpush1.msra.mxu0 0.0
      %465 = vmatprep.subr.mxu0 0.0
      %466 = vmatpush1.msra.mxu0 0.0
      %467 = vmatprep.subr.mxu0 0.0
      %468 = vmatpush1.msra.mxu0 0.0
      %469 = vmatprep.subr.mxu0 0.0
      %470 = vmatpush1.msra.mxu0 %v426
      %471 = vmatprep.subr.mxu0 0.0
      %472 = vmatpush2.msra.mxu0 0.0
      %473 = vmatprep.subr.mxu0 0.0
      %474 = vmatpush2.msra.mxu0 0.0
      %475 = vmatprep.subr.mxu0 0.0
      %476 = vmatpush2.msra.mxu0 0.0
      %477 = vmatprep.subr.mxu0 0.0
      %478 = vmatpush2.msra.mxu0 0.0
      %479 = vmatprep.subr.mxu0 0.0
      %480 = vmatpush2.msra.mxu0 0.0
      %481 = vmatprep.subr.mxu0 0.0
      %482 = vmatpush2.msra.mxu0 0.0
      %483 = vmatprep.subr.mxu0 0.0
      %484 = vmatpush2.msra.mxu0 0.0
      %485 = vmatprep.subr.mxu0 0.0
      %486 = vmatpush2.msra.mxu0 0.0
      %487 = vmatprep.subr.mxu0 0.0
      %488 = vmatpush2.msra.mxu0 0.0
      %489 = vmatprep.subr.mxu0 0.0
      %490 = vmatpush2.msra.mxu0 0.0
      %491 = vmatprep.subr.mxu0 0.0
      %492 = vmatpush2.msra.mxu0 0.0
      %493 = vmatprep.subr.mxu0 0.0
      %494 = vmatpush2.msra.mxu0 0.0
      %495 = vmatprep.subr.mxu0 0.0
      %496 = vmatpush2.msra.mxu0 0.0
      %497 = vmatprep.subr.mxu0 0.0
      %498 = vmatpush2.msra.mxu0 0.0
      %499 = vmatprep.subr.mxu0 0.0
      %500 = vmatpush2.msra.mxu0 0.0
      %501 = vmatprep.subr.mxu0 0.0
      %502 = vmatpush2.msra.mxu0 0.0
      %503 = vmatprep.mubr.f32.mxu0 0.0
      %504 = vmatmul.mubr.f32.gmra.mxu0 %v435
      %v505 = vpop.f32.mrf.mxu0
      %v506 = vadd.f32 0.0, %v505
      %v507 = vpop.f32.mrf.mxu0
      %508 = vmatprep.mubr.f32.mxu0 0.0
      %509 = vmatmul.mubr.f32.gmra.mxu0 %v437
      %v510 = vpop.f32.mrf.mxu0
      %v511 = vadd.f32 0.0, %v510
      %v512 = vpop.f32.mrf.mxu0
      %513 = vdwg.mxu0
      %v514 = vsel %vm416, %v421, 0
      %v516 = vsel %vm416, %v422, 0
      %518 = vmatprep.subr.mxu0 0.0
      %519 = vmatpush1.msra.mxu0 0.0
      %520 = vmatprep.subr.mxu0 0.0
      %521 = vmatpush1.msra.mxu0 0.0
      %522 = vmatprep.subr.mxu0 0.0
      %523 = vmatpush1.msra.mxu0 0.0
      %524 = vmatprep.subr.mxu0 0.0
      %525 = vmatpush1.msra.mxu0 0.0
      %526 = vmatprep.subr.mxu0 0.0
      %527 = vmatpush1.msra.mxu0 0.0
      %528 = vmatprep.subr.mxu0 0.0
      %529 = vmatpush1.msra.mxu0 0.0
      %530 = vmatprep.subr.mxu0 0.0
      %531 = vmatpush1.msra.mxu0 0.0
      %532 = vmatprep.subr.mxu0 0.0
      %533 = vmatpush1.msra.mxu0 0.0
      %534 = vmatprep.subr.mxu0 0.0
      %535 = vmatpush1.msra.mxu0 0.0
      %536 = vmatprep.subr.mxu0 0.0
      %537 = vmatpush1.msra.mxu0 0.0
      %538 = vmatprep.subr.mxu0 0.0
      %539 = vmatpush1.msra.mxu0 0.0
      %540 = vmatprep.subr.mxu0 0.0
      %541 = vmatpush1.msra.mxu0 0.0
      %542 = vmatprep.subr.mxu0 0.0
      %543 = vmatpush1.msra.mxu0 0.0
      %544 = vmatprep.subr.mxu0 0.0
      %545 = vmatpush1.msra.mxu0 0.0
      %546 = vmatprep.subr.mxu0 0.0
      %547 = vmatpush1.msra.mxu0 0.0
      %548 = vmatprep.subr.mxu0 0.0
      %549 = vmatpush1.msra.mxu0 %v424
      %550 = vmatprep.subr.mxu0 0.0
      %551 = vmatpush2.msra.mxu0 0.0
      %552 = vmatprep.subr.mxu0 0.0
      %553 = vmatpush2.msra.mxu0 0.0
      %554 = vmatprep.subr.mxu0 0.0
      %555 = vmatpush2.msra.mxu0 0.0
      %556 = vmatprep.subr.mxu0 0.0
      %557 = vmatpush2.msra.mxu0 0.0
      %558 = vmatprep.subr.mxu0 0.0
      %559 = vmatpush2.msra.mxu0 0.0
      %560 = vmatprep.subr.mxu0 0.0
      %561 = vmatpush2.msra.mxu0 0.0
      %562 = vmatprep.subr.mxu0 0.0
      %563 = vmatpush2.msra.mxu0 0.0
      %564 = vmatprep.subr.mxu0 0.0
      %565 = vmatpush2.msra.mxu0 0.0
      %566 = vmatprep.subr.mxu0 0.0
      %567 = vmatpush2.msra.mxu0 0.0
      %568 = vmatprep.subr.mxu0 0.0
      %569 = vmatpush2.msra.mxu0 0.0
      %570 = vmatprep.subr.mxu0 0.0
      %571 = vmatpush2.msra.mxu0 0.0
      %572 = vmatprep.subr.mxu0 0.0
      %573 = vmatpush2.msra.mxu0 0.0
      %574 = vmatprep.subr.mxu0 0.0
      %575 = vmatpush2.msra.mxu0 0.0
      %576 = vmatprep.subr.mxu0 0.0
      %577 = vmatpush2.msra.mxu0 0.0
      %578 = vmatprep.subr.mxu0 0.0
      %579 = vmatpush2.msra.mxu0 0.0
      %580 = vmatprep.subr.mxu0 0.0
      %581 = vmatpush2.msra.mxu0 0.0
      %582 = vmatprep.mubr.f32.mxu0 0.0
      %583 = vmatmul.mubr.f32.gmra.mxu0 %v514
      %v584 = vpop.f32.mrf.mxu0
      %v585 = vadd.f32 %v506, %v584
      %v586 = vpop.f32.mrf.mxu0
      %587 = vmatprep.mubr.f32.mxu0 0.0
      %588 = vmatmul.mubr.f32.gmra.mxu0 %v516
      %v589 = vpop.f32.mrf.mxu0
      %v590 = vadd.f32 %v511, %v589
      %v591 = vpop.f32.mrf.mxu0
      %592 = vdwg.mxu0
      %v593 = vld [vmem:[%s3] sm:$0x3f]
      %v594 = vld [vmem:[%s4] sm:$0x1]
      %v596 = vlaneseq
      %v597 = vshrl.u32 %v596, 7
      %v598 = vsub.s32 0, %v597
      %v599 = vrot.slane %v594, %v598
      %v602 = vsel %vm229, %v225, 0
      %v605 = vsel %vm229, %v226, 0
      %v608 = vsel %vm253, %v593, 0
      %610 = vmatprep.subr.mxu0 0.0
      %611 = vmatpush1.msra.mxu0 0.0
      %612 = vmatprep.subr.mxu0 0.0
      %613 = vmatpush1.msra.mxu0 0.0
      %614 = vmatprep.subr.mxu0 0.0
      %615 = vmatpush1.msra.mxu0 0.0
      %616 = vmatprep.subr.mxu0 0.0
      %617 = vmatpush1.msra.mxu0 0.0
      %618 = vmatprep.subr.mxu0 0.0
      %619 = vmatpush1.msra.mxu0 0.0
      %620 = vmatprep.subr.mxu0 0.0
      %621 = vmatpush1.msra.mxu0 0.0
      %622 = vmatprep.subr.mxu0 0.0
      %623 = vmatpush1.msra.mxu0 0.0
      %624 = vmatprep.subr.mxu0 0.0
      %625 = vmatpush1.msra.mxu0 0.0
      %626 = vmatprep.subr.mxu0 0.0
      %627 = vmatpush1.msra.mxu0 0.0
      %628 = vmatprep.subr.mxu0 0.0
      %629 = vmatpush1.msra.mxu0 0.0
      %630 = vmatprep.subr.mxu0 0.0
      %631 = vmatpush1.msra.mxu0 0.0
      %632 = vmatprep.subr.mxu0 0.0
      %633 = vmatpush1.msra.mxu0 0.0
      %634 = vmatprep.subr.mxu0 0.0
      %635 = vmatpush1.msra.mxu0 0.0
      %636 = vmatprep.subr.mxu0 0.0
      %637 = vmatpush1.msra.mxu0 0.0
      %638 = vmatprep.subr.mxu0 0.0
      %639 = vmatpush1.msra.mxu0 0.0
      %640 = vmatprep.subr.mxu0 0.0
      %641 = vmatpush1.msra.mxu0 %v608
      %642 = vmatprep.subr.mxu0 0.0
      %643 = vmatpush2.msra.mxu0 0.0
      %644 = vmatprep.subr.mxu0 0.0
      %645 = vmatpush2.msra.mxu0 0.0
      %646 = vmatprep.subr.mxu0 0.0
      %647 = vmatpush2.msra.mxu0 0.0
      %648 = vmatprep.subr.mxu0 0.0
      %649 = vmatpush2.msra.mxu0 0.0
      %650 = vmatprep.subr.mxu0 0.0
      %651 = vmatpush2.msra.mxu0 0.0
      %652 = vmatprep.subr.mxu0 0.0
      %653 = vmatpush2.msra.mxu0 0.0
      %654 = vmatprep.subr.mxu0 0.0
      %655 = vmatpush2.msra.mxu0 0.0
      %656 = vmatprep.subr.mxu0 0.0
      %657 = vmatpush2.msra.mxu0 0.0
      %658 = vmatprep.subr.mxu0 0.0
      %659 = vmatpush2.msra.mxu0 0.0
      %660 = vmatprep.subr.mxu0 0.0
      %661 = vmatpush2.msra.mxu0 0.0
      %662 = vmatprep.subr.mxu0 0.0
      %663 = vmatpush2.msra.mxu0 0.0
      %664 = vmatprep.subr.mxu0 0.0
      %665 = vmatpush2.msra.mxu0 0.0
      %666 = vmatprep.subr.mxu0 0.0
      %667 = vmatpush2.msra.mxu0 0.0
      %668 = vmatprep.subr.mxu0 0.0
      %669 = vmatpush2.msra.mxu0 0.0
      %670 = vmatprep.subr.mxu0 0.0
      %671 = vmatpush2.msra.mxu0 0.0
      %672 = vmatprep.subr.mxu0 0.0
      %673 = vmatpush2.msra.mxu0 0.0
      %674 = vmatprep.mubr.f32.mxu0 0.0
      %675 = vmatmul.mubr.f32.gmra.mxu0 %v602
      %v676 = vpop.f32.mrf.mxu0
      %v677 = vadd.f32 %v599, %v676
      %v678 = vpop.f32.mrf.mxu0
      %679 = vmatprep.mubr.f32.mxu0 0.0
      %680 = vmatmul.mubr.f32.gmra.mxu0 %v605
      %v681 = vpop.f32.mrf.mxu0
      %v682 = vadd.f32 %v599, %v681
      %v683 = vpop.f32.mrf.mxu0
      %684 = vdwg.mxu0
      %v685 = vadd.f32 %v585, %v677
      %v686 = vadd.f32 %v590, %v682
      %v687 = vmax.f32 %v685, 0.0
      %v688 = vmax.f32 %v686, 0.0
      %689 = vst.msk [vmem:[%s224] sm:$0xff] %vm416, %v687
      %690 = vst.msk [vmem:[%s224 + $0x8] sm:$0xff] %vm416, %v688
      %p691 = scmp.lt.s32.totalorder %s16, 1
      %s692 = scalar_select %p691, %s16, 1
      %s693 = smul.addr %s692, 2
      %s694 = smul.addr %s693, 8
      %s695 = scalar_lea.vmem %s5, %s694
      // Predicated region
      $region41: #{_lambda_.9} parent=39 // pred_check
        %p696 = pneg %p144
      $region42: #{_lambda_.9} parent=39 // pred_check_branch
        %698 = sbr.rel (%p696) target = $region44
      $region43: #{_lambda_.9} parent=39 // pred_region
        _
      $region44: #{_lambda_.9} parent=39 // pred_fallthru
        _
    $region40: #{_lambda_.9} parent=5 // pred_fallthru
      _
    %p699 = scmp.le.s32.totalorder 2, %s11
    // Predicated region
    $region45: #{_lambda_.9} parent=5 // pred_check
      %p700 = pneg %p699
    $region46: #{_lambda_.9} parent=5 // pred_check_branch
      %702 = sbr.rel (%p700) target = $region48
    $region47: #{_lambda_.9} parent=5 // pred_region
      %s703 = ssub.s32 %s11, 2
      // Predicated region
      $region49: #{_lambda_.9} parent=47 // pred_check
        %p704 = pneg %p150
      $region50: #{_lambda_.9} parent=47 // pred_check_branch
        %706 = sbr.rel (%p704) target = $region52
      $region51: #{_lambda_.9} parent=47 // pred_region
        %p707 = scmp.lt.s32.totalorder %s17, 1
        %s708 = scalar_select %p707, %s17, 1
        %s709 = smul.addr %s708, 2
        %s710 = smul.addr %s709, 8
        %s711 = scalar_lea.vmem %s5, %s710
      $region52: #{_lambda_.9} parent=47 // pred_fallthru
        _
    $region48: #{_lambda_.9} parent=5 // pred_fallthru
      _
  $region6: #{_lambda_.9} parent=0 // loop_footer
    %s15 = sadd.s32 1, %s11
  $region7: #{_lambda_.9} parent=0 // loop_footer_branch
    %10 = sbr.rel target = $region3
  $region8: #{_lambda_.9} parent=0 // loop_exit
    _

// kernel: _lambda_.10
$region0: #{_lambda_.10}
  #allocation0 [shape = 'u32[]', space=smem, size = 0x4, offset = 0x4, fixed_abs, tag = 'smem constant byte address 0x4 - core index']
  #allocation1 [shape = 'u32[144,128]{1,0:T(1,128)}', space=vmem, size = 0x12000, scoped, tag = 'internal scratch']
  #allocation2 [shape = 'f32[18,8]{1,0:T(8,128)}', space=vmem, size = 0x3000, scoped, tag = 'scratch operand']
  #allocation3 [shape = 'f32[18,8]{1,0:T(8,128)}', space=vmem, size = 0x3000, scoped, tag = 'scratch operand']
  %s0 = inlined_call_operand.vmem [shape: f32[2,16,8], index: 0, kind: input, shape index: {}]
  %s1 = inlined_call_operand.vmem [shape: f32[2,8,8], index: 1, kind: input, shape index: {}]
  %s2 = inlined_call_operand.vmem [shape: f32[2,8,8], index: 2, kind: input, shape index: {}]
  %s3 = inlined_call_operand.vmem [shape: f32[2,16,8], index: 3, kind: output, shape index: {}]
  %s4 = sld [smem:[#allocation0]]
  $region45: #{_lambda_.10} parent=0
    _
  %s6 = ssub.s32 1, %s4
  %s7 = scalar_select 0, %s6, %s4
  loop: start=0, step=1, limit=4
  $region2: #{_lambda_.10} parent=0 // loop_pre_header
    _
  $region3: #{_lambda_.10} parent=0 // loop_header
    %s9 = sphi 0, %s13
    %p10 = scmp.ge.s32.totalorder %s9, 4
    %s19 = sphi 0, %s21
    %s22 = sphi 0, %s19
    %s23 = sphi 0, %s22
    %s39 = sphi 0, %s23
    %s43 = sphi 0, %s43
    %s45 = sphi 0, %s43
    %s46 = sphi 0, %s45
    %s60 = sphi 0, %s46
    %s64 = sphi 0, %s64
    %s66 = sphi 0, %s64
    %s67 = sphi 0, %s66
    %s81 = sphi 0, %s67
    %s87 = sphi 0, %s89
    %s90 = sphi 0, %s87
    %s91 = sphi 0, %s90
    %s107 = sphi 0, %s91
  $region4: #{_lambda_.10} parent=0 // loop_header_branch
    %12 = sbr.rel (%p10) target = $region8
  $region5: #{_lambda_.10} parent=0 // loop_body
    %s14 = ssub.s32 %s9, 1
    %s15 = ssub.s32 %s9, 2
    %s16 = sadd.s32 %s9, 1
    %s17 = ssub.s32 %s9, %s16
    %p18 = scmp.eq.s32.totalorder %s17, 0
    %s20 = sadd.s32 %s19, 1
    %s21 = scalar_select %p18, %s19, %s20
    %p24 = pneg %p18
    %p25 = scmp.eq.s32.totalorder %s9, 1
    %p26 = por %p24, %p25
    %p27 = scmp.ne.s32.totalorder %s19, %s22
    %p28 = scmp.eq.s32.totalorder %s9, 0
    %p29 = por %p27, %p28
    %p30 = scmp.ne.s32.totalorder %s19, %s22
    %p31 = scmp.eq.s32.totalorder %s14, 1
    %p32 = por %p30, %p31
    %p33 = scmp.ne.s32.totalorder %s22, %s23
    %p34 = scmp.eq.s32.totalorder %s14, 0
    %p35 = por %p33, %p34
    %p36 = scmp.ne.s32.totalorder %s22, %s23
    %p37 = scmp.eq.s32.totalorder %s15, 1
    %p38 = por %p36, %p37
    %p40 = scmp.ne.s32.totalorder %s23, %s39
    %p41 = scmp.eq.s32.totalorder %s15, 0
    %p42 = por %p40, %p41
    %s44 = sadd.s32 %s43, 1
    %p47 = scmp.eq.s32.totalorder %s9, 1
    %p48 = scmp.ne.s32.totalorder %s43, %s45
    %p49 = scmp.eq.s32.totalorder %s9, 0
    %p50 = por %p48, %p49
    %p51 = scmp.ne.s32.totalorder %s43, %s45
    %p52 = scmp.eq.s32.totalorder %s14, 1
    %p53 = por %p51, %p52
    %p54 = scmp.ne.s32.totalorder %s45, %s46
    %p55 = scmp.eq.s32.totalorder %s14, 0
    %p56 = por %p54, %p55
    %p57 = scmp.ne.s32.totalorder %s45, %s46
    %p58 = scmp.eq.s32.totalorder %s15, 1
    %p59 = por %p57, %p58
    %p61 = scmp.ne.s32.totalorder %s46, %s60
    %p62 = scmp.eq.s32.totalorder %s15, 0
    %p63 = por %p61, %p62
    %s65 = sadd.s32 %s64, 1
    %p68 = scmp.eq.s32.totalorder %s9, 1
    %p69 = scmp.ne.s32.totalorder %s64, %s66
    %p70 = scmp.eq.s32.totalorder %s9, 0
    %p71 = por %p69, %p70
    %p72 = scmp.ne.s32.totalorder %s64, %s66
    %p73 = scmp.eq.s32.totalorder %s14, 1
    %p74 = por %p72, %p73
    %p75 = scmp.ne.s32.totalorder %s66, %s67
    %p76 = scmp.eq.s32.totalorder %s14, 0
    %p77 = por %p75, %p76
    %p78 = scmp.ne.s32.totalorder %s66, %s67
    %p79 = scmp.eq.s32.totalorder %s15, 1
    %p80 = por %p78, %p79
    %p82 = scmp.ne.s32.totalorder %s67, %s81
    %p83 = scmp.eq.s32.totalorder %s15, 0
    %p84 = por %p82, %p83
    %s85 = ssub.s32 %s9, %s16
    %p86 = scmp.eq.s32.totalorder %s85, 0
    %s88 = sadd.s32 %s87, 1
    %s89 = scalar_select %p86, %s87, %s88
    %p92 = pneg %p86
    %p93 = scmp.eq.s32.totalorder %s9, 1
    %p94 = por %p92, %p93
    %p95 = scmp.ne.s32.totalorder %s87, %s90
    %p96 = scmp.eq.s32.totalorder %s9, 0
    %p97 = por %p95, %p96
    %p98 = scmp.ne.s32.totalorder %s87, %s90
    %p99 = scmp.eq.s32.totalorder %s14, 1
    %p100 = por %p98, %p99
    %p101 = scmp.ne.s32.totalorder %s90, %s91
    %p102 = scmp.eq.s32.totalorder %s14, 0
    %p103 = por %p101, %p102
    %p104 = scmp.ne.s32.totalorder %s90, %s91
    %p105 = scmp.eq.s32.totalorder %s15, 1
    %p106 = por %p104, %p105
    %p108 = scmp.ne.s32.totalorder %s91, %s107
    %p109 = scmp.eq.s32.totalorder %s15, 0
    %p110 = por %p108, %p109
    %p111 = scmp.le.s32.totalorder 1, %s9
    %p112 = scmp.lt.s32.totalorder %s9, 3
    %p113 = pnand %p111, %p112
    %p114 = pneg %p113
    // Predicated region
    $region9: #{_lambda_.10} parent=5 // pred_check
      _
    $region10: #{_lambda_.10} parent=5 // pred_check_branch
      %116 = sbr.rel (%p113) target = $region12
    $region11: #{_lambda_.10} parent=5 // pred_region
      %s117 = ssub.s32 %s9, 1
      // Predicated region
      $region13: #{_lambda_.10} parent=11 // pred_check
        %p118 = pneg %p56
      $region14: #{_lambda_.10} parent=11 // pred_check_branch
        %120 = sbr.rel (%p118) target = $region16
      $region15: #{_lambda_.10} parent=11 // pred_region
        _
      $region16: #{_lambda_.10} parent=11 // pred_fallthru
        _
      // Predicated region
      $region17: #{_lambda_.10} parent=11 // pred_check
        %p121 = pneg %p77
      $region18: #{_lambda_.10} parent=11 // pred_check_branch
        %123 = sbr.rel (%p121) target = $region20
      $region19: #{_lambda_.10} parent=11 // pred_region
        _
      $region20: #{_lambda_.10} parent=11 // pred_fallthru
        _
    $region12: #{_lambda_.10} parent=5 // pred_fallthru
      _
    %p124 = scmp.lt.s32.totalorder %s9, 2
    // Predicated region
    $region21: #{_lambda_.10} parent=5 // pred_check
      %p125 = pneg %p124
    $region22: #{_lambda_.10} parent=5 // pred_check_branch
      %127 = sbr.rel (%p125) target = $region24
    $region23: #{_lambda_.10} parent=5 // pred_region
      // Predicated region
      $region25: #{_lambda_.10} parent=23 // pred_check
        %p128 = pneg %p29
      $region26: #{_lambda_.10} parent=23 // pred_check_branch
        %130 = sbr.rel (%p128) target = $region28
      $region27: #{_lambda_.10} parent=23 // pred_region
        %p131 = scmp.lt.s32.totalorder %s9, 1
        %s132 = scalar_select %p131, %s9, 1
        %s133 = smul.addr %s132, 2
        %s134 = smul.addr %s133, 8
        %s135 = scalar_lea.vmem %s0, %s134
      $region28: #{_lambda_.10} parent=23 // pred_fallthru
        _
    $region24: #{_lambda_.10} parent=5 // pred_fallthru
      _
    %p136 = scmp.le.s32.totalorder 1, %s9
    %p137 = scmp.lt.s32.totalorder %s9, 3
    %p138 = pnand %p136, %p137
    %p139 = pneg %p138
    // Predicated region
    $region29: #{_lambda_.10} parent=5 // pred_check
      _
    $region30: #{_lambda_.10} parent=5 // pred_check_branch
      %141 = sbr.rel (%p138) target = $region32
    $region31: #{_lambda_.10} parent=5 // pred_region
      %s142 = ssub.s32 %s9, 1
      %p143 = scmp.lt.s32.totalorder %s14, 1
      %s144 = scalar_select %p143, %s14, 1
      %s145 = smul.addr %s144, 2
      %s146 = smul.addr %s145, 8
      %s147 = scalar_lea.vmem %s0, %s146
      %p148 = pneg %p35
      %p149 = pneg %p32
      %p150 = pneg %p56
      %p151 = pneg %p53
      %p152 = pneg %p77
      %p153 = pneg %p74
      %p154 = pneg %p103
      %p155 = pneg %p100
      %p156 = scmp.lt.s32.totalorder %s14, 1
      %s157 = scalar_select %p156, %s14, 1
      %s158 = smul.addr %s157, 2
      %s159 = smul.addr %s158, 8
      %s160 = scalar_lea.vmem %s3, %s159
      %p161 = scmp.lt.s32.totalorder %s14, 1
      %s162 = scalar_select %p161, %s14, 1
      %s163 = smul.addr %s162, 2
      %s164 = smul.addr %s163, 8
      %s165 = scalar_lea.vmem %s0, %s164
      %p166 = scmp.lt.s32.totalorder %s14, 1
      %s167 = scalar_select %p166, %s14, 1
      %s168 = smul.addr %s167, 2
      %s169 = smul.addr %s168, 8
      %s170 = scalar_lea.vmem %s3, %s169
      %v171 = vld [vmem:[%s165] sm:$0xff]
      %v172 = vld [vmem:[%s165 + $0x8] sm:$0xff]
      %v173 = vmax.f32 %v171, 0.0
      %v174 = vmax.f32 %v172, 0.0
      %vm175 = vcmask 64512
      %176 = vst.msk [vmem:[#allocation2] sm:$0xff] %vm175, %v173
      %177 = vst.msk [vmem:[#allocation2 + $0x8] sm:$0xff] %vm175, %v174
      %vm178 = vcmask 64518
      %179 = vst.msk [vmem:[#allocation2 + $0xa] sm:$0xc0] %vm178, %v174
      %v180 = vld [vmem:[#allocation2] sm:$0xff]
      %v181 = vld [vmem:[#allocation2 + $0x8] sm:$0xff]
      %v182 = vld [vmem:[#allocation2 + $0x10] sm:$0x3]
      %v183 = vld [vmem:[%s1] sm:$0xff]
      %s184 = scalar_lea.vmem %s1, 8
      %v185 = vld [vmem:[%s184] sm:$0xff]
      %vm189 = vcmask 1045504
      %v190 = vrot.slane %v180, 2
      %v191 = vrot.slane %v181, 2
      %v192 = vsel %vm189, %v190, %v191
      %v193 = vrot.slane %v182, 2
      %v194 = vsel %vm189, %v191, %v193
      %v195 = vsel %vm175, %v192, 0
      %v197 = vsel %vm175, %v194, 0
      %199 = vmatprep.subr.mxu0 0.0
      %200 = vmatpush1.msra.mxu0 0.0
      %201 = vmatprep.subr.mxu0 0.0
      %202 = vmatpush1.msra.mxu0 0.0
      %203 = vmatprep.subr.mxu0 0.0
      %204 = vmatpush1.msra.mxu0 0.0
      %205 = vmatprep.subr.mxu0 0.0
      %206 = vmatpush1.msra.mxu0 0.0
      %207 = vmatprep.subr.mxu0 0.0
      %208 = vmatpush1.msra.mxu0 0.0
      %209 = vmatprep.subr.mxu0 0.0
      %210 = vmatpush1.msra.mxu0 0.0
      %211 = vmatprep.subr.mxu0 0.0
      %212 = vmatpush1.msra.mxu0 0.0
      %213 = vmatprep.subr.mxu0 0.0
      %214 = vmatpush1.msra.mxu0 0.0
      %215 = vmatprep.subr.mxu0 0.0
      %216 = vmatpush1.msra.mxu0 0.0
      %217 = vmatprep.subr.mxu0 0.0
      %218 = vmatpush1.msra.mxu0 0.0
      %219 = vmatprep.subr.mxu0 0.0
      %220 = vmatpush1.msra.mxu0 0.0
      %221 = vmatprep.subr.mxu0 0.0
      %222 = vmatpush1.msra.mxu0 0.0
      %223 = vmatprep.subr.mxu0 0.0
      %224 = vmatpush1.msra.mxu0 0.0
      %225 = vmatprep.subr.mxu0 0.0
      %226 = vmatpush1.msra.mxu0 0.0
      %227 = vmatprep.subr.mxu0 0.0
      %228 = vmatpush1.msra.mxu0 0.0
      %229 = vmatprep.subr.mxu0 0.0
      %230 = vmatpush1.msra.mxu0 %v185
      %231 = vmatprep.subr.mxu0 0.0
      %232 = vmatpush2.msra.mxu0 0.0
      %233 = vmatprep.subr.mxu0 0.0
      %234 = vmatpush2.msra.mxu0 0.0
      %235 = vmatprep.subr.mxu0 0.0
      %236 = vmatpush2.msra.mxu0 0.0
      %237 = vmatprep.subr.mxu0 0.0
      %238 = vmatpush2.msra.mxu0 0.0
      %239 = vmatprep.subr.mxu0 0.0
      %240 = vmatpush2.msra.mxu0 0.0
      %241 = vmatprep.subr.mxu0 0.0
      %242 = vmatpush2.msra.mxu0 0.0
      %243 = vmatprep.subr.mxu0 0.0
      %244 = vmatpush2.msra.mxu0 0.0
      %245 = vmatprep.subr.mxu0 0.0
      %246 = vmatpush2.msra.mxu0 0.0
      %247 = vmatprep.subr.mxu0 0.0
      %248 = vmatpush2.msra.mxu0 0.0
      %249 = vmatprep.subr.mxu0 0.0
      %250 = vmatpush2.msra.mxu0 0.0
      %251 = vmatprep.subr.mxu0 0.0
      %252 = vmatpush2.msra.mxu0 0.0
      %253 = vmatprep.subr.mxu0 0.0
      %254 = vmatpush2.msra.mxu0 0.0
      %255 = vmatprep.subr.mxu0 0.0
      %256 = vmatpush2.msra.mxu0 0.0
      %257 = vmatprep.subr.mxu0 0.0
      %258 = vmatpush2.msra.mxu0 0.0
      %259 = vmatprep.subr.mxu0 0.0
      %260 = vmatpush2.msra.mxu0 0.0
      %261 = vmatprep.subr.mxu0 0.0
      %262 = vmatpush2.msra.mxu0 0.0
      %263 = vmatprep.mubr.f32.mxu0 0.0
      %264 = vmatmul.mubr.f32.gmra.mxu0 %v195
      %v265 = vpop.f32.mrf.mxu0
      %v266 = vadd.f32 0.0, %v265
      %v267 = vpop.f32.mrf.mxu0
      %268 = vmatprep.mubr.f32.mxu0 0.0
      %269 = vmatmul.mubr.f32.gmra.mxu0 %v197
      %v270 = vpop.f32.mrf.mxu0
      %v271 = vadd.f32 0.0, %v270
      %v272 = vpop.f32.mrf.mxu0
      %273 = vdwg.mxu0
      %v274 = vsel %vm175, %v180, 0
      %v276 = vsel %vm175, %v181, 0
      %278 = vmatprep.subr.mxu0 0.0
      %279 = vmatpush1.msra.mxu0 0.0
      %280 = vmatprep.subr.mxu0 0.0
      %281 = vmatpush1.msra.mxu0 0.0
      %282 = vmatprep.subr.mxu0 0.0
      %283 = vmatpush1.msra.mxu0 0.0
      %284 = vmatprep.subr.mxu0 0.0
      %285 = vmatpush1.msra.mxu0 0.0
      %286 = vmatprep.subr.mxu0 0.0
      %287 = vmatpush1.msra.mxu0 0.0
      %288 = vmatprep.subr.mxu0 0.0
      %289 = vmatpush1.msra.mxu0 0.0
      %290 = vmatprep.subr.mxu0 0.0
      %291 = vmatpush1.msra.mxu0 0.0
      %292 = vmatprep.subr.mxu0 0.0
      %293 = vmatpush1.msra.mxu0 0.0
      %294 = vmatprep.subr.mxu0 0.0
      %295 = vmatpush1.msra.mxu0 0.0
      %296 = vmatprep.subr.mxu0 0.0
      %297 = vmatpush1.msra.mxu0 0.0
      %298 = vmatprep.subr.mxu0 0.0
      %299 = vmatpush1.msra.mxu0 0.0
      %300 = vmatprep.subr.mxu0 0.0
      %301 = vmatpush1.msra.mxu0 0.0
      %302 = vmatprep.subr.mxu0 0.0
      %303 = vmatpush1.msra.mxu0 0.0
      %304 = vmatprep.subr.mxu0 0.0
      %305 = vmatpush1.msra.mxu0 0.0
      %306 = vmatprep.subr.mxu0 0.0
      %307 = vmatpush1.msra.mxu0 0.0
      %308 = vmatprep.subr.mxu0 0.0
      %309 = vmatpush1.msra.mxu0 %v183
      %310 = vmatprep.subr.mxu0 0.0
      %311 = vmatpush2.msra.mxu0 0.0
      %312 = vmatprep.subr.mxu0 0.0
      %313 = vmatpush2.msra.mxu0 0.0
      %314 = vmatprep.subr.mxu0 0.0
      %315 = vmatpush2.msra.mxu0 0.0
      %316 = vmatprep.subr.mxu0 0.0
      %317 = vmatpush2.msra.mxu0 0.0
      %318 = vmatprep.subr.mxu0 0.0
      %319 = vmatpush2.msra.mxu0 0.0
      %320 = vmatprep.subr.mxu0 0.0
      %321 = vmatpush2.msra.mxu0 0.0
      %322 = vmatprep.subr.mxu0 0.0
      %323 = vmatpush2.msra.mxu0 0.0
      %324 = vmatprep.subr.mxu0 0.0
      %325 = vmatpush2.msra.mxu0 0.0
      %326 = vmatprep.subr.mxu0 0.0
      %327 = vmatpush2.msra.mxu0 0.0
      %328 = vmatprep.subr.mxu0 0.0
      %329 = vmatpush2.msra.mxu0 0.0
      %330 = vmatprep.subr.mxu0 0.0
      %331 = vmatpush2.msra.mxu0 0.0
      %332 = vmatprep.subr.mxu0 0.0
      %333 = vmatpush2.msra.mxu0 0.0
      %334 = vmatprep.subr.mxu0 0.0
      %335 = vmatpush2.msra.mxu0 0.0
      %336 = vmatprep.subr.mxu0 0.0
      %337 = vmatpush2.msra.mxu0 0.0
      %338 = vmatprep.subr.mxu0 0.0
      %339 = vmatpush2.msra.mxu0 0.0
      %340 = vmatprep.subr.mxu0 0.0
      %341 = vmatpush2.msra.mxu0 0.0
      %342 = vmatprep.mubr.f32.mxu0 0.0
      %343 = vmatmul.mubr.f32.gmra.mxu0 %v274
      %v344 = vpop.f32.mrf.mxu0
      %v345 = vadd.f32 %v266, %v344
      %v346 = vpop.f32.mrf.mxu0
      %347 = vmatprep.mubr.f32.mxu0 0.0
      %348 = vmatmul.mubr.f32.gmra.mxu0 %v276
      %v349 = vpop.f32.mrf.mxu0
      %v350 = vadd.f32 %v271, %v349
      %v351 = vpop.f32.mrf.mxu0
      %352 = vdwg.mxu0
      %v353 = vmax.f32 %v345, 0.0
      %v354 = vmax.f32 %v350, 0.0
      %355 = vst.msk [vmem:[#allocation3] sm:$0xff] %vm175, %v353
      %356 = vst.msk [vmem:[#allocation3 + $0x8] sm:$0xff] %vm175, %v354
      %357 = vst.msk [vmem:[#allocation3 + $0xa] sm:$0xc0] %vm178, %v354
      %v358 = vld [vmem:[#allocation3] sm:$0xff]
      %v359 = vld [vmem:[#allocation3 + $0x8] sm:$0xff]
      %v360 = vld [vmem:[#allocation3 + $0x10] sm:$0x3]
      %v361 = vld [vmem:[%s2] sm:$0xff]
      %s362 = scalar_lea.vmem %s2, 8
      %v363 = vld [vmem:[%s362] sm:$0xff]
      %v367 = vrot.slane %v358, 2
      %v368 = vrot.slane %v359, 2
      %v369 = vsel %vm189, %v367, %v368
      %v370 = vrot.slane %v360, 2
      %v371 = vsel %vm189, %v368, %v370
      %v372 = vsel %vm175, %v369, 0
      %v374 = vsel %vm175, %v371, 0
      %376 = vmatprep.subr.mxu0 0.0
      %377 = vmatpush1.msra.mxu0 0.0
      %378 = vmatprep.subr.mxu0 0.0
      %379 = vmatpush1.msra.mxu0 0.0
      %380 = vmatprep.subr.mxu0 0.0
      %381 = vmatpush1.msra.mxu0 0.0
      %382 = vmatprep.subr.mxu0 0.0
      %383 = vmatpush1.msra.mxu0 0.0
      %384 = vmatprep.subr.mxu0 0.0
      %385 = vmatpush1.msra.mxu0 0.0
      %386 = vmatprep.subr.mxu0 0.0
      %387 = vmatpush1.msra.mxu0 0.0
      %388 = vmatprep.subr.mxu0 0.0
      %389 = vmatpush1.msra.mxu0 0.0
      %390 = vmatprep.subr.mxu0 0.0
      %391 = vmatpush1.msra.mxu0 0.0
      %392 = vmatprep.subr.mxu0 0.0
      %393 = vmatpush1.msra.mxu0 0.0
      %394 = vmatprep.subr.mxu0 0.0
      %395 = vmatpush1.msra.mxu0 0.0
      %396 = vmatprep.subr.mxu0 0.0
      %397 = vmatpush1.msra.mxu0 0.0
      %398 = vmatprep.subr.mxu0 0.0
      %399 = vmatpush1.msra.mxu0 0.0
      %400 = vmatprep.subr.mxu0 0.0
      %401 = vmatpush1.msra.mxu0 0.0
      %402 = vmatprep.subr.mxu0 0.0
      %403 = vmatpush1.msra.mxu0 0.0
      %404 = vmatprep.subr.mxu0 0.0
      %405 = vmatpush1.msra.mxu0 0.0
      %406 = vmatprep.subr.mxu0 0.0
      %407 = vmatpush1.msra.mxu0 %v363
      %408 = vmatprep.subr.mxu0 0.0
      %409 = vmatpush2.msra.mxu0 0.0
      %410 = vmatprep.subr.mxu0 0.0
      %411 = vmatpush2.msra.mxu0 0.0
      %412 = vmatprep.subr.mxu0 0.0
      %413 = vmatpush2.msra.mxu0 0.0
      %414 = vmatprep.subr.mxu0 0.0
      %415 = vmatpush2.msra.mxu0 0.0
      %416 = vmatprep.subr.mxu0 0.0
      %417 = vmatpush2.msra.mxu0 0.0
      %418 = vmatprep.subr.mxu0 0.0
      %419 = vmatpush2.msra.mxu0 0.0
      %420 = vmatprep.subr.mxu0 0.0
      %421 = vmatpush2.msra.mxu0 0.0
      %422 = vmatprep.subr.mxu0 0.0
      %423 = vmatpush2.msra.mxu0 0.0
      %424 = vmatprep.subr.mxu0 0.0
      %425 = vmatpush2.msra.mxu0 0.0
      %426 = vmatprep.subr.mxu0 0.0
      %427 = vmatpush2.msra.mxu0 0.0
      %428 = vmatprep.subr.mxu0 0.0
      %429 = vmatpush2.msra.mxu0 0.0
      %430 = vmatprep.subr.mxu0 0.0
      %431 = vmatpush2.msra.mxu0 0.0
      %432 = vmatprep.subr.mxu0 0.0
      %433 = vmatpush2.msra.mxu0 0.0
      %434 = vmatprep.subr.mxu0 0.0
      %435 = vmatpush2.msra.mxu0 0.0
      %436 = vmatprep.subr.mxu0 0.0
      %437 = vmatpush2.msra.mxu0 0.0
      %438 = vmatprep.subr.mxu0 0.0
      %439 = vmatpush2.msra.mxu0 0.0
      %440 = vmatprep.mubr.f32.mxu0 0.0
      %441 = vmatmul.mubr.f32.gmra.mxu0 %v372
      %v442 = vpop.f32.mrf.mxu0
      %v443 = vadd.f32 0.0, %v442
      %v444 = vpop.f32.mrf.mxu0
      %445 = vmatprep.mubr.f32.mxu0 0.0
      %446 = vmatmul.mubr.f32.gmra.mxu0 %v374
      %v447 = vpop.f32.mrf.mxu0
      %v448 = vadd.f32 0.0, %v447
      %v449 = vpop.f32.mrf.mxu0
      %450 = vdwg.mxu0
      %v451 = vsel %vm175, %v358, 0
      %v453 = vsel %vm175, %v359, 0
      %455 = vmatprep.subr.mxu0 0.0
      %456 = vmatpush1.msra.mxu0 0.0
      %457 = vmatprep.subr.mxu0 0.0
      %458 = vmatpush1.msra.mxu0 0.0
      %459 = vmatprep.subr.mxu0 0.0
      %460 = vmatpush1.msra.mxu0 0.0
      %461 = vmatprep.subr.mxu0 0.0
      %462 = vmatpush1.msra.mxu0 0.0
      %463 = vmatprep.subr.mxu0 0.0
      %464 = vmatpush1.msra.mxu0 0.0
      %465 = vmatprep.subr.mxu0 0.0
      %466 = vmatpush1.msra.mxu0 0.0
      %467 = vmatprep.subr.mxu0 0.0
      %468 = vmatpush1.msra.mxu0 0.0
      %469 = vmatprep.subr.mxu0 0.0
      %470 = vmatpush1.msra.mxu0 0.0
      %471 = vmatprep.subr.mxu0 0.0
      %472 = vmatpush1.msra.mxu0 0.0
      %473 = vmatprep.subr.mxu0 0.0
      %474 = vmatpush1.msra.mxu0 0.0
      %475 = vmatprep.subr.mxu0 0.0
      %476 = vmatpush1.msra.mxu0 0.0
      %477 = vmatprep.subr.mxu0 0.0
      %478 = vmatpush1.msra.mxu0 0.0
      %479 = vmatprep.subr.mxu0 0.0
      %480 = vmatpush1.msra.mxu0 0.0
      %481 = vmatprep.subr.mxu0 0.0
      %482 = vmatpush1.msra.mxu0 0.0
      %483 = vmatprep.subr.mxu0 0.0
      %484 = vmatpush1.msra.mxu0 0.0
      %485 = vmatprep.subr.mxu0 0.0
      %486 = vmatpush1.msra.mxu0 %v361
      %487 = vmatprep.subr.mxu0 0.0
      %488 = vmatpush2.msra.mxu0 0.0
      %489 = vmatprep.subr.mxu0 0.0
      %490 = vmatpush2.msra.mxu0 0.0
      %491 = vmatprep.subr.mxu0 0.0
      %492 = vmatpush2.msra.mxu0 0.0
      %493 = vmatprep.subr.mxu0 0.0
      %494 = vmatpush2.msra.mxu0 0.0
      %495 = vmatprep.subr.mxu0 0.0
      %496 = vmatpush2.msra.mxu0 0.0
      %497 = vmatprep.subr.mxu0 0.0
      %498 = vmatpush2.msra.mxu0 0.0
      %499 = vmatprep.subr.mxu0 0.0
      %500 = vmatpush2.msra.mxu0 0.0
      %501 = vmatprep.subr.mxu0 0.0
      %502 = vmatpush2.msra.mxu0 0.0
      %503 = vmatprep.subr.mxu0 0.0
      %504 = vmatpush2.msra.mxu0 0.0
      %505 = vmatprep.subr.mxu0 0.0
      %506 = vmatpush2.msra.mxu0 0.0
      %507 = vmatprep.subr.mxu0 0.0
      %508 = vmatpush2.msra.mxu0 0.0
      %509 = vmatprep.subr.mxu0 0.0
      %510 = vmatpush2.msra.mxu0 0.0
      %511 = vmatprep.subr.mxu0 0.0
      %512 = vmatpush2.msra.mxu0 0.0
      %513 = vmatprep.subr.mxu0 0.0
      %514 = vmatpush2.msra.mxu0 0.0
      %515 = vmatprep.subr.mxu0 0.0
      %516 = vmatpush2.msra.mxu0 0.0
      %517 = vmatprep.subr.mxu0 0.0
      %518 = vmatpush2.msra.mxu0 0.0
      %519 = vmatprep.mubr.f32.mxu0 0.0
      %520 = vmatmul.mubr.f32.gmra.mxu0 %v451
      %v521 = vpop.f32.mrf.mxu0
      %v522 = vadd.f32 %v443, %v521
      %v523 = vpop.f32.mrf.mxu0
      %524 = vmatprep.mubr.f32.mxu0 0.0
      %525 = vmatmul.mubr.f32.gmra.mxu0 %v453
      %v526 = vpop.f32.mrf.mxu0
      %v527 = vadd.f32 %v448, %v526
      %v528 = vpop.f32.mrf.mxu0
      %529 = vdwg.mxu0
      %v530 = vadd.f32 %v522, %v171
      %v531 = vadd.f32 %v527, %v172
      %v532 = vmax.f32 %v530, 0.0
      %v533 = vmax.f32 %v531, 0.0
      %534 = vst.msk [vmem:[%s170] sm:$0xff] %vm175, %v532
      %535 = vst.msk [vmem:[%s170 + $0x8] sm:$0xff] %vm175, %v533
      %p536 = scmp.lt.s32.totalorder %s14, 1
      %s537 = scalar_select %p536, %s14, 1
      %s538 = smul.addr %s537, 2
      %s539 = smul.addr %s538, 8
      %s540 = scalar_lea.vmem %s3, %s539
      // Predicated region
      $region33: #{_lambda_.10} parent=31 // pred_check
        %p541 = pneg %p100
      $region34: #{_lambda_.10} parent=31 // pred_check_branch
        %543 = sbr.rel (%p541) target = $region36
      $region35: #{_lambda_.10} parent=31 // pred_region
        _
      $region36: #{_lambda_.10} parent=31 // pred_fallthru
        _
    $region32: #{_lambda_.10} parent=5 // pred_fallthru
      _
    %p544 = scmp.le.s32.totalorder 2, %s9
    // Predicated region
    $region37: #{_lambda_.10} parent=5 // pred_check
      %p545 = pneg %p544
    $region38: #{_lambda_.10} parent=5 // pred_check_branch
      %547 = sbr.rel (%p545) target = $region40
    $region39: #{_lambda_.10} parent=5 // pred_region
      %s548 = ssub.s32 %s9, 2
      // Predicated region
      $region41: #{_lambda_.10} parent=39 // pred_check
        %p549 = pneg %p106
      $region42: #{_lambda_.10} parent=39 // pred_check_branch
        %551 = sbr.rel (%p549) target = $region44
      $region43: #{_lambda_.10} parent=39 // pred_region
        %p552 = scmp.lt.s32.totalorder %s15, 1
        %s553 = scalar_select %p552, %s15, 1
        %s554 = smul.addr %s553, 2
        %s555 = smul.addr %s554, 8
        %s556 = scalar_lea.vmem %s3, %s555
      $region44: #{_lambda_.10} parent=39 // pred_fallthru
        _
    $region40: #{_lambda_.10} parent=5 // pred_fallthru
      _
  $region6: #{_lambda_.10} parent=0 // loop_footer
    %s13 = sadd.s32 1, %s9
  $region7: #{_lambda_.10} parent=0 // loop_footer_branch
    %8 = sbr.rel target = $region3
  $region8: #{_lambda_.10} parent=0 // loop_exit
    _

// kernel: _lambda_.11
$region0: #{_lambda_.11}
  #allocation0 [shape = 'u32[]', space=smem, size = 0x4, offset = 0x4, fixed_abs, tag = 'smem constant byte address 0x4 - core index']
  #allocation1 [shape = 'u32[144,128]{1,0:T(1,128)}', space=vmem, size = 0x12000, scoped, tag = 'internal scratch']
  #allocation2 [shape = 'f32[17,8]{1,0:T(8,128)}', space=vmem, size = 0x3000, scoped, tag = 'scratch operand']
  #allocation3 [shape = 'f32[17,4]{1,0:T(8,128)}', space=vmem, size = 0x3000, scoped, tag = 'scratch operand']
  %s0 = inlined_call_operand.vmem [shape: f32[2,16,8], index: 0, kind: input, shape index: {}]
  %s1 = inlined_call_operand.vmem [shape: f32[2,8,4], index: 1, kind: input, shape index: {}]
  %s2 = inlined_call_operand.vmem [shape: f32[2,4,4], index: 2, kind: input, shape index: {}]
  %s3 = inlined_call_operand.vmem [shape: f32[8,4], index: 3, kind: input, shape index: {}]
  %s4 = inlined_call_operand.vmem [shape: f32[1,4], index: 4, kind: input, shape index: {}]
  %s5 = inlined_call_operand.vmem [shape: f32[2,16,4], index: 5, kind: output, shape index: {}]
  %s6 = sld [smem:[#allocation0]]
  $region53: #{_lambda_.11} parent=0
    _
  %s8 = ssub.s32 1, %s6
  %s9 = scalar_select 0, %s8, %s6
  loop: start=0, step=1, limit=4
  $region2: #{_lambda_.11} parent=0 // loop_pre_header
    _
  $region3: #{_lambda_.11} parent=0 // loop_header
    %s11 = sphi 0, %s15
    %p12 = scmp.ge.s32.totalorder %s11, 4
    %s21 = sphi 0, %s23
    %s24 = sphi 0, %s21
    %s25 = sphi 0, %s24
    %s41 = sphi 0, %s25
    %s45 = sphi 0, %s45
    %s47 = sphi 0, %s45
    %s48 = sphi 0, %s47
    %s62 = sphi 0, %s48
    %s66 = sphi 0, %s66
    %s68 = sphi 0, %s66
    %s69 = sphi 0, %s68
    %s83 = sphi 0, %s69
    %s87 = sphi 0, %s87
    %s89 = sphi 0, %s87
    %s90 = sphi 0, %s89
    %s104 = sphi 0, %s90
    %s108 = sphi 0, %s108
    %s110 = sphi 0, %s108
    %s111 = sphi 0, %s110
    %s125 = sphi 0, %s111
    %s131 = sphi 0, %s133
    %s134 = sphi 0, %s131
    %s135 = sphi 0, %s134
    %s151 = sphi 0, %s135
  $region4: #{_lambda_.11} parent=0 // loop_header_branch
    %14 = sbr.rel (%p12) target = $region8
  $region5: #{_lambda_.11} parent=0 // loop_body
    %s16 = ssub.s32 %s11, 1
    %s17 = ssub.s32 %s11, 2
    %s18 = sadd.s32 %s11, 1
    %s19 = ssub.s32 %s11, %s18
    %p20 = scmp.eq.s32.totalorder %s19, 0
    %s22 = sadd.s32 %s21, 1
    %s23 = scalar_select %p20, %s21, %s22
    %p26 = pneg %p20
    %p27 = scmp.eq.s32.totalorder %s11, 1
    %p28 = por %p26, %p27
    %p29 = scmp.ne.s32.totalorder %s21, %s24
    %p30 = scmp.eq.s32.totalorder %s11, 0
    %p31 = por %p29, %p30
    %p32 = scmp.ne.s32.totalorder %s21, %s24
    %p33 = scmp.eq.s32.totalorder %s16, 1
    %p34 = por %p32, %p33
    %p35 = scmp.ne.s32.totalorder %s24, %s25
    %p36 = scmp.eq.s32.totalorder %s16, 0
    %p37 = por %p35, %p36
    %p38 = scmp.ne.s32.totalorder %s24, %s25
    %p39 = scmp.eq.s32.totalorder %s17, 1
    %p40 = por %p38, %p39
    %p42 = scmp.ne.s32.totalorder %s25, %s41
    %p43 = scmp.eq.s32.totalorder %s17, 0
    %p44 = por %p42, %p43
    %s46 = sadd.s32 %s45, 1
    %p49 = scmp.eq.s32.totalorder %s11, 1
    %p50 = scmp.ne.s32.totalorder %s45, %s47
    %p51 = scmp.eq.s32.totalorder %s11, 0
    %p52 = por %p50, %p51
    %p53 = scmp.ne.s32.totalorder %s45, %s47
    %p54 = scmp.eq.s32.totalorder %s16, 1
    %p55 = por %p53, %p54
    %p56 = scmp.ne.s32.totalorder %s47, %s48
    %p57 = scmp.eq.s32.totalorder %s16, 0
    %p58 = por %p56, %p57
    %p59 = scmp.ne.s32.totalorder %s47, %s48
    %p60 = scmp.eq.s32.totalorder %s17, 1
    %p61 = por %p59, %p60
    %p63 = scmp.ne.s32.totalorder %s48, %s62
    %p64 = scmp.eq.s32.totalorder %s17, 0
    %p65 = por %p63, %p64
    %s67 = sadd.s32 %s66, 1
    %p70 = scmp.eq.s32.totalorder %s11, 1
    %p71 = scmp.ne.s32.totalorder %s66, %s68
    %p72 = scmp.eq.s32.totalorder %s11, 0
    %p73 = por %p71, %p72
    %p74 = scmp.ne.s32.totalorder %s66, %s68
    %p75 = scmp.eq.s32.totalorder %s16, 1
    %p76 = por %p74, %p75
    %p77 = scmp.ne.s32.totalorder %s68, %s69
    %p78 = scmp.eq.s32.totalorder %s16, 0
    %p79 = por %p77, %p78
    %p80 = scmp.ne.s32.totalorder %s68, %s69
    %p81 = scmp.eq.s32.totalorder %s17, 1
    %p82 = por %p80, %p81
    %p84 = scmp.ne.s32.totalorder %s69, %s83
    %p85 = scmp.eq.s32.totalorder %s17, 0
    %p86 = por %p84, %p85
    %s88 = sadd.s32 %s87, 1
    %p91 = scmp.eq.s32.totalorder %s11, 1
    %p92 = scmp.ne.s32.totalorder %s87, %s89
    %p93 = scmp.eq.s32.totalorder %s11, 0
    %p94 = por %p92, %p93
    %p95 = scmp.ne.s32.totalorder %s87, %s89
    %p96 = scmp.eq.s32.totalorder %s16, 1
    %p97 = por %p95, %p96
    %p98 = scmp.ne.s32.totalorder %s89, %s90
    %p99 = scmp.eq.s32.totalorder %s16, 0
    %p100 = por %p98, %p99
    %p101 = scmp.ne.s32.totalorder %s89, %s90
    %p102 = scmp.eq.s32.totalorder %s17, 1
    %p103 = por %p101, %p102
    %p105 = scmp.ne.s32.totalorder %s90, %s104
    %p106 = scmp.eq.s32.totalorder %s17, 0
    %p107 = por %p105, %p106
    %s109 = sadd.s32 %s108, 1
    %p112 = scmp.eq.s32.totalorder %s11, 1
    %p113 = scmp.ne.s32.totalorder %s108, %s110
    %p114 = scmp.eq.s32.totalorder %s11, 0
    %p115 = por %p113, %p114
    %p116 = scmp.ne.s32.totalorder %s108, %s110
    %p117 = scmp.eq.s32.totalorder %s16, 1
    %p118 = por %p116, %p117
    %p119 = scmp.ne.s32.totalorder %s110, %s111
    %p120 = scmp.eq.s32.totalorder %s16, 0
    %p121 = por %p119, %p120
    %p122 = scmp.ne.s32.totalorder %s110, %s111
    %p123 = scmp.eq.s32.totalorder %s17, 1
    %p124 = por %p122, %p123
    %p126 = scmp.ne.s32.totalorder %s111, %s125
    %p127 = scmp.eq.s32.totalorder %s17, 0
    %p128 = por %p126, %p127
    %s129 = ssub.s32 %s11, %s18
    %p130 = scmp.eq.s32.totalorder %s129, 0
    %s132 = sadd.s32 %s131, 1
    %s133 = scalar_select %p130, %s131, %s132
    %p136 = pneg %p130
    %p137 = scmp.eq.s32.totalorder %s11, 1
    %p138 = por %p136, %p137
    %p139 = scmp.ne.s32.totalorder %s131, %s134
    %p140 = scmp.eq.s32.totalorder %s11, 0
    %p141 = por %p139, %p140
    %p142 = scmp.ne.s32.totalorder %s131, %s134
    %p143 = scmp.eq.s32.totalorder %s16, 1
    %p144 = por %p142, %p143
    %p145 = scmp.ne.s32.totalorder %s134, %s135
    %p146 = scmp.eq.s32.totalorder %s16, 0
    %p147 = por %p145, %p146
    %p148 = scmp.ne.s32.totalorder %s134, %s135
    %p149 = scmp.eq.s32.totalorder %s17, 1
    %p150 = por %p148, %p149
    %p152 = scmp.ne.s32.totalorder %s135, %s151
    %p153 = scmp.eq.s32.totalorder %s17, 0
    %p154 = por %p152, %p153
    %p155 = scmp.le.s32.totalorder 1, %s11
    %p156 = scmp.lt.s32.totalorder %s11, 3
    %p157 = pnand %p155, %p156
    %p158 = pneg %p157
    // Predicated region
    $region9: #{_lambda_.11} parent=5 // pred_check
      _
    $region10: #{_lambda_.11} parent=5 // pred_check_branch
      %160 = sbr.rel (%p157) target = $region12
    $region11: #{_lambda_.11} parent=5 // pred_region
      %s161 = ssub.s32 %s11, 1
      // Predicated region
      $region13: #{_lambda_.11} parent=11 // pred_check
        %p162 = pneg %p58
      $region14: #{_lambda_.11} parent=11 // pred_check_branch
        %164 = sbr.rel (%p162) target = $region16
      $region15: #{_lambda_.11} parent=11 // pred_region
        _
      $region16: #{_lambda_.11} parent=11 // pred_fallthru
        _
      // Predicated region
      $region17: #{_lambda_.11} parent=11 // pred_check
        %p165 = pneg %p79
      $region18: #{_lambda_.11} parent=11 // pred_check_branch
        %167 = sbr.rel (%p165) target = $region20
      $region19: #{_lambda_.11} parent=11 // pred_region
        _
      $region20: #{_lambda_.11} parent=11 // pred_fallthru
        _
      // Predicated region
      $region21: #{_lambda_.11} parent=11 // pred_check
        %p168 = pneg %p100
      $region22: #{_lambda_.11} parent=11 // pred_check_branch
        %170 = sbr.rel (%p168) target = $region24
      $region23: #{_lambda_.11} parent=11 // pred_region
        _
      $region24: #{_lambda_.11} parent=11 // pred_fallthru
        _
      // Predicated region
      $region25: #{_lambda_.11} parent=11 // pred_check
        %p171 = pneg %p121
      $region26: #{_lambda_.11} parent=11 // pred_check_branch
        %173 = sbr.rel (%p171) target = $region28
      $region27: #{_lambda_.11} parent=11 // pred_region
        _
      $region28: #{_lambda_.11} parent=11 // pred_fallthru
        _
    $region12: #{_lambda_.11} parent=5 // pred_fallthru
      _
    %p174 = scmp.lt.s32.totalorder %s11, 2
    // Predicated region
    $region29: #{_lambda_.11} parent=5 // pred_check
      %p175 = pneg %p174
    $region30: #{_lambda_.11} parent=5 // pred_check_branch
      %177 = sbr.rel (%p175) target = $region32
    $region31: #{_lambda_.11} parent=5 // pred_region
      // Predicated region
      $region33: #{_lambda_.11} parent=31 // pred_check
        %p178 = pneg %p31
      $region34: #{_lambda_.11} parent=31 // pred_check_branch
        %180 = sbr.rel (%p178) target = $region36
      $region35: #{_lambda_.11} parent=31 // pred_region
        %p181 = scmp.lt.s32.totalorder %s11, 1
        %s182 = scalar_select %p181, %s11, 1
        %s183 = smul.addr %s182, 2
        %s184 = smul.addr %s183, 8
        %s185 = scalar_lea.vmem %s0, %s184
      $region36: #{_lambda_.11} parent=31 // pred_fallthru
        _
    $region32: #{_lambda_.11} parent=5 // pred_fallthru
      _
    %p186 = scmp.le.s32.totalorder 1, %s11
    %p187 = scmp.lt.s32.totalorder %s11, 3
    %p188 = pnand %p186, %p187
    %p189 = pneg %p188
    // Predicated region
    $region37: #{_lambda_.11} parent=5 // pred_check
      _
    $region38: #{_lambda_.11} parent=5 // pred_check_branch
      %191 = sbr.rel (%p188) target = $region40
    $region39: #{_lambda_.11} parent=5 // pred_region
      %s192 = ssub.s32 %s11, 1
      %p193 = scmp.lt.s32.totalorder %s16, 1
      %s194 = scalar_select %p193, %s16, 1
      %s195 = smul.addr %s194, 2
      %s196 = smul.addr %s195, 8
      %s197 = scalar_lea.vmem %s0, %s196
      %p198 = pneg %p37
      %p199 = pneg %p34
      %p200 = pneg %p58
      %p201 = pneg %p55
      %p202 = pneg %p79
      %p203 = pneg %p76
      %p204 = pneg %p100
      %p205 = pneg %p97
      %p206 = pneg %p121
      %p207 = pneg %p118
      %p208 = pneg %p147
      %p209 = pneg %p144
      %p210 = scmp.lt.s32.totalorder %s16, 1
      %s211 = scalar_select %p210, %s16, 1
      %s212 = smul.addr %s211, 2
      %s213 = smul.addr %s212, 8
      %s214 = scalar_lea.vmem %s5, %s213
      %p215 = scmp.lt.s32.totalorder %s16, 1
      %s216 = scalar_select %p215, %s16, 1
      %s217 = smul.addr %s216, 2
      %s218 = smul.addr %s217, 8
      %s219 = scalar_lea.vmem %s0, %s218
      %p220 = scmp.lt.s32.totalorder %s16, 1
      %s221 = scalar_select %p220, %s16, 1
      %s222 = smul.addr %s221, 2
      %s223 = smul.addr %s222, 8
      %s224 = scalar_lea.vmem %s5, %s223
      %v225 = vld [vmem:[%s219] sm:$0xff]
      %v226 = vld [vmem:[%s219 + $0x8] sm:$0xff]
      %v227 = vmax.f32 %v225, 0.0
      %v228 = vmax.f32 %v226, 0.0
      %vm229 = vcmask 64512
      %230 = vst.msk [vmem:[#allocation2] sm:$0xff] %vm229, %v227
      %231 = vst.msk [vmem:[#allocation2 + $0x8] sm:$0xff] %vm229, %v228
      %vm232 = vcmask 64519
      %233 = vst.msk [vmem:[#allocation2 + $0x9] sm:$0x80] %vm232, %v228
      %v234 = vld [vmem:[#allocation2] sm:$0xff]
      %v235 = vld [vmem:[#allocation2 + $0x8] sm:$0xff]
      %v236 = vld [vmem:[#allocation2 + $0x10] sm:$0x1]
      %v237 = vld [vmem:[%s1] sm:$0xff]
      %s238 = scalar_lea.vmem %s1, 8
      %v239 = vld [vmem:[%s238] sm:$0xff]
      %vm243 = vcmask 1046528
      %v244 = vrot.slane %v234, 1
      %v245 = vrot.slane %v235, 1
      %v246 = vsel %vm243, %v244, %v245
      %v247 = vrot.slane %v236, 1
      %v248 = vsel %vm243, %v245, %v247
      %v249 = vsel %vm229, %v246, 0
      %v251 = vsel %vm229, %v248, 0
      %253 = vmatprep.subr.mxu0 0.0
      %254 = vmatpush1.msra.mxu0 0.0
      %255 = vmatprep.subr.mxu0 0.0
      %256 = vmatpush1.msra.mxu0 0.0
      %257 = vmatprep.subr.mxu0 0.0
      %258 = vmatpush1.msra.mxu0 0.0
      %259 = vmatprep.subr.mxu0 0.0
      %260 = vmatpush1.msra.mxu0 0.0
      %261 = vmatprep.subr.mxu0 0.0
      %262 = vmatpush1.msra.mxu0 0.0
      %263 = vmatprep.subr.mxu0 0.0
      %264 = vmatpush1.msra.mxu0 0.0
      %265 = vmatprep.subr.mxu0 0.0
      %266 = vmatpush1.msra.mxu0 0.0
      %267 = vmatprep.subr.mxu0 0.0
      %268 = vmatpush1.msra.mxu0 0.0
      %269 = vmatprep.subr.mxu0 0.0
      %270 = vmatpush1.msra.mxu0 0.0
      %271 = vmatprep.subr.mxu0 0.0
      %272 = vmatpush1.msra.mxu0 0.0
      %273 = vmatprep.subr.mxu0 0.0
      %274 = vmatpush1.msra.mxu0 0.0
      %275 = vmatprep.subr.mxu0 0.0
      %276 = vmatpush1.msra.mxu0 0.0
      %277 = vmatprep.subr.mxu0 0.0
      %278 = vmatpush1.msra.mxu0 0.0
      %279 = vmatprep.subr.mxu0 0.0
      %280 = vmatpush1.msra.mxu0 0.0
      %281 = vmatprep.subr.mxu0 0.0
      %282 = vmatpush1.msra.mxu0 0.0
      %283 = vmatprep.subr.mxu0 0.0
      %284 = vmatpush1.msra.mxu0 %v239
      %285 = vmatprep.subr.mxu0 0.0
      %286 = vmatpush2.msra.mxu0 0.0
      %287 = vmatprep.subr.mxu0 0.0
      %288 = vmatpush2.msra.mxu0 0.0
      %289 = vmatprep.subr.mxu0 0.0
      %290 = vmatpush2.msra.mxu0 0.0
      %291 = vmatprep.subr.mxu0 0.0
      %292 = vmatpush2.msra.mxu0 0.0
      %293 = vmatprep.subr.mxu0 0.0
      %294 = vmatpush2.msra.mxu0 0.0
      %295 = vmatprep.subr.mxu0 0.0
      %296 = vmatpush2.msra.mxu0 0.0
      %297 = vmatprep.subr.mxu0 0.0
      %298 = vmatpush2.msra.mxu0 0.0
      %299 = vmatprep.subr.mxu0 0.0
      %300 = vmatpush2.msra.mxu0 0.0
      %301 = vmatprep.subr.mxu0 0.0
      %302 = vmatpush2.msra.mxu0 0.0
      %303 = vmatprep.subr.mxu0 0.0
      %304 = vmatpush2.msra.mxu0 0.0
      %305 = vmatprep.subr.mxu0 0.0
      %306 = vmatpush2.msra.mxu0 0.0
      %307 = vmatprep.subr.mxu0 0.0
      %308 = vmatpush2.msra.mxu0 0.0
      %309 = vmatprep.subr.mxu0 0.0
      %310 = vmatpush2.msra.mxu0 0.0
      %311 = vmatprep.subr.mxu0 0.0
      %312 = vmatpush2.msra.mxu0 0.0
      %313 = vmatprep.subr.mxu0 0.0
      %314 = vmatpush2.msra.mxu0 0.0
      %315 = vmatprep.subr.mxu0 0.0
      %316 = vmatpush2.msra.mxu0 0.0
      %317 = vmatprep.mubr.f32.mxu0 0.0
      %318 = vmatmul.mubr.f32.gmra.mxu0 %v249
      %v319 = vpop.f32.mrf.mxu0
      %v320 = vadd.f32 0.0, %v319
      %v321 = vpop.f32.mrf.mxu0
      %322 = vmatprep.mubr.f32.mxu0 0.0
      %323 = vmatmul.mubr.f32.gmra.mxu0 %v251
      %v324 = vpop.f32.mrf.mxu0
      %v325 = vadd.f32 0.0, %v324
      %v326 = vpop.f32.mrf.mxu0
      %327 = vdwg.mxu0
      %v328 = vsel %vm229, %v234, 0
      %v330 = vsel %vm229, %v235, 0
      %332 = vmatprep.subr.mxu0 0.0
      %333 = vmatpush1.msra.mxu0 0.0
      %334 = vmatprep.subr.mxu0 0.0
      %335 = vmatpush1.msra.mxu0 0.0
      %336 = vmatprep.subr.mxu0 0.0
      %337 = vmatpush1.msra.mxu0 0.0
      %338 = vmatprep.subr.mxu0 0.0
      %339 = vmatpush1.msra.mxu0 0.0
      %340 = vmatprep.subr.mxu0 0.0
      %341 = vmatpush1.msra.mxu0 0.0
      %342 = vmatprep.subr.mxu0 0.0
      %343 = vmatpush1.msra.mxu0 0.0
      %344 = vmatprep.subr.mxu0 0.0
      %345 = vmatpush1.msra.mxu0 0.0
      %346 = vmatprep.subr.mxu0 0.0
      %347 = vmatpush1.msra.mxu0 0.0
      %348 = vmatprep.subr.mxu0 0.0
      %349 = vmatpush1.msra.mxu0 0.0
      %350 = vmatprep.subr.mxu0 0.0
      %351 = vmatpush1.msra.mxu0 0.0
      %352 = vmatprep.subr.mxu0 0.0
      %353 = vmatpush1.msra.mxu0 0.0
      %354 = vmatprep.subr.mxu0 0.0
      %355 = vmatpush1.msra.mxu0 0.0
      %356 = vmatprep.subr.mxu0 0.0
      %357 = vmatpush1.msra.mxu0 0.0
      %358 = vmatprep.subr.mxu0 0.0
      %359 = vmatpush1.msra.mxu0 0.0
      %360 = vmatprep.subr.mxu0 0.0
      %361 = vmatpush1.msra.mxu0 0.0
      %362 = vmatprep.subr.mxu0 0.0
      %363 = vmatpush1.msra.mxu0 %v237
      %364 = vmatprep.subr.mxu0 0.0
      %365 = vmatpush2.msra.mxu0 0.0
      %366 = vmatprep.subr.mxu0 0.0
      %367 = vmatpush2.msra.mxu0 0.0
      %368 = vmatprep.subr.mxu0 0.0
      %369 = vmatpush2.msra.mxu0 0.0
      %370 = vmatprep.subr.mxu0 0.0
      %371 = vmatpush2.msra.mxu0 0.0
      %372 = vmatprep.subr.mxu0 0.0
      %373 = vmatpush2.msra.mxu0 0.0
      %374 = vmatprep.subr.mxu0 0.0
      %375 = vmatpush2.msra.mxu0 0.0
      %376 = vmatprep.subr.mxu0 0.0
      %377 = vmatpush2.msra.mxu0 0.0
      %378 = vmatprep.subr.mxu0 0.0
      %379 = vmatpush2.msra.mxu0 0.0
      %380 = vmatprep.subr.mxu0 0.0
      %381 = vmatpush2.msra.mxu0 0.0
      %382 = vmatprep.subr.mxu0 0.0
      %383 = vmatpush2.msra.mxu0 0.0
      %384 = vmatprep.subr.mxu0 0.0
      %385 = vmatpush2.msra.mxu0 0.0
      %386 = vmatprep.subr.mxu0 0.0
      %387 = vmatpush2.msra.mxu0 0.0
      %388 = vmatprep.subr.mxu0 0.0
      %389 = vmatpush2.msra.mxu0 0.0
      %390 = vmatprep.subr.mxu0 0.0
      %391 = vmatpush2.msra.mxu0 0.0
      %392 = vmatprep.subr.mxu0 0.0
      %393 = vmatpush2.msra.mxu0 0.0
      %394 = vmatprep.subr.mxu0 0.0
      %395 = vmatpush2.msra.mxu0 0.0
      %396 = vmatprep.mubr.f32.mxu0 0.0
      %397 = vmatmul.mubr.f32.gmra.mxu0 %v328
      %v398 = vpop.f32.mrf.mxu0
      %v399 = vadd.f32 %v320, %v398
      %v400 = vpop.f32.mrf.mxu0
      %401 = vmatprep.mubr.f32.mxu0 0.0
      %402 = vmatmul.mubr.f32.gmra.mxu0 %v330
      %v403 = vpop.f32.mrf.mxu0
      %v404 = vadd.f32 %v325, %v403
      %v405 = vpop.f32.mrf.mxu0
      %406 = vdwg.mxu0
      %v407 = vmax.f32 %v399, 0.0
      %v408 = vmax.f32 %v404, 0.0
      %vm409 = vcmask 31744
      %410 = vst.msk [vmem:[#allocation3] sm:$0xff] %vm409, %v407
      %411 = vst.msk [vmem:[#allocation3 + $0x8] sm:$0xff] %vm409, %v408
      %vm412 = vcmask 31751
      %413 = vst.msk [vmem:[#allocation3 + $0x9] sm:$0x80] %vm412, %v408
      %v414 = vld [vmem:[#allocation3] sm:$0xff]
      %v415 = vld [vmem:[#allocation3 + $0x8] sm:$0xff]
      %v416 = vld [vmem:[#allocation3 + $0x10] sm:$0x1]
      %v417 = vld [vmem:[%s2] sm:$0xf]
      %s418 = scalar_lea.vmem %s2, 4
      %v419 = vld [vmem:[%s418] sm:$0xf]
      %v423 = vrot.slane %v414, 1
      %v424 = vrot.slane %v415, 1
      %v425 = vsel %vm243, %v423, %v424
      %v426 = vrot.slane %v416, 1
      %v427 = vsel %vm243, %v424, %v426
      %v428 = vsel %vm409, %v425, 0
      %v430 = vsel %vm409, %v427, 0
      %vm432 = vcmask 1043456
      %v434 = vsel %vm432, %v419, 0
      %436 = vmatprep.subr.mxu0 0.0
      %437 = vmatpush1.msra.mxu0 0.0
      %438 = vmatprep.subr.mxu0 0.0
      %439 = vmatpush1.msra.mxu0 0.0
      %440 = vmatprep.subr.mxu0 0.0
      %441 = vmatpush1.msra.mxu0 0.0
      %442 = vmatprep.subr.mxu0 0.0
      %443 = vmatpush1.msra.mxu0 0.0
      %444 = vmatprep.subr.mxu0 0.0
      %445 = vmatpush1.msra.mxu0 0.0
      %446 = vmatprep.subr.mxu0 0.0
      %447 = vmatpush1.msra.mxu0 0.0
      %448 = vmatprep.subr.mxu0 0.0
      %449 = vmatpush1.msra.mxu0 0.0
      %450 = vmatprep.subr.mxu0 0.0
      %451 = vmatpush1.msra.mxu0 0.0
      %452 = vmatprep.subr.mxu0 0.0
      %453 = vmatpush1.msra.mxu0 0.0
      %454 = vmatprep.subr.mxu0 0.0
      %455 = vmatpush1.msra.mxu0 0.0
      %456 = vmatprep.subr.mxu0 0.0
      %457 = vmatpush1.msra.mxu0 0.0
      %458 = vmatprep.subr.mxu0 0.0
      %459 = vmatpush1.msra.mxu0 0.0
      %460 = vmatprep.subr.mxu0 0.0
      %461 = vmatpush1.msra.mxu0 0.0
      %462 = vmatprep.subr.mxu0 0.0
      %463 = vmatpush1.msra.mxu0 0.0
      %464 = vmatprep.subr.mxu0 0.0
      %465 = vmatpush1.msra.mxu0 0.0
      %466 = vmatprep.subr.mxu0 0.0
      %467 = vmatpush1.msra.mxu0 %v434
      %468 = vmatprep.subr.mxu0 0.0
      %469 = vmatpush2.msra.mxu0 0.0
      %470 = vmatprep.subr.mxu0 0.0
      %471 = vmatpush2.msra.mxu0 0.0
      %472 = vmatprep.subr.mxu0 0.0
      %473 = vmatpush2.msra.mxu0 0.0
      %474 = vmatprep.subr.mxu0 0.0
      %475 = vmatpush2.msra.mxu0 0.0
      %476 = vmatprep.subr.mxu0 0.0
      %477 = vmatpush2.msra.mxu0 0.0
      %478 = vmatprep.subr.mxu0 0.0
      %479 = vmatpush2.msra.mxu0 0.0
      %480 = vmatprep.subr.mxu0 0.0
      %481 = vmatpush2.msra.mxu0 0.0
      %482 = vmatprep.subr.mxu0 0.0
      %483 = vmatpush2.msra.mxu0 0.0
      %484 = vmatprep.subr.mxu0 0.0
      %485 = vmatpush2.msra.mxu0 0.0
      %486 = vmatprep.subr.mxu0 0.0
      %487 = vmatpush2.msra.mxu0 0.0
      %488 = vmatprep.subr.mxu0 0.0
      %489 = vmatpush2.msra.mxu0 0.0
      %490 = vmatprep.subr.mxu0 0.0
      %491 = vmatpush2.msra.mxu0 0.0
      %492 = vmatprep.subr.mxu0 0.0
      %493 = vmatpush2.msra.mxu0 0.0
      %494 = vmatprep.subr.mxu0 0.0
      %495 = vmatpush2.msra.mxu0 0.0
      %496 = vmatprep.subr.mxu0 0.0
      %497 = vmatpush2.msra.mxu0 0.0
      %498 = vmatprep.subr.mxu0 0.0
      %499 = vmatpush2.msra.mxu0 0.0
      %500 = vmatprep.mubr.f32.mxu0 0.0
      %501 = vmatmul.mubr.f32.gmra.mxu0 %v428
      %v502 = vpop.f32.mrf.mxu0
      %v503 = vadd.f32 0.0, %v502
      %v504 = vpop.f32.mrf.mxu0
      %505 = vmatprep.mubr.f32.mxu0 0.0
      %506 = vmatmul.mubr.f32.gmra.mxu0 %v430
      %v507 = vpop.f32.mrf.mxu0
      %v508 = vadd.f32 0.0, %v507
      %v509 = vpop.f32.mrf.mxu0
      %510 = vdwg.mxu0
      %v511 = vsel %vm409, %v414, 0
      %v513 = vsel %vm409, %v415, 0
      %v516 = vsel %vm432, %v417, 0
      %518 = vmatprep.subr.mxu0 0.0
      %519 = vmatpush1.msra.mxu0 0.0
      %520 = vmatprep.subr.mxu0 0.0
      %521 = vmatpush1.msra.mxu0 0.0
      %522 = vmatprep.subr.mxu0 0.0
      %523 = vmatpush1.msra.mxu0 0.0
      %524 = vmatprep.subr.mxu0 0.0
      %525 = vmatpush1.msra.mxu0 0.0
      %526 = vmatprep.subr.mxu0 0.0
      %527 = vmatpush1.msra.mxu0 0.0
      %528 = vmatprep.subr.mxu0 0.0
      %529 = vmatpush1.msra.mxu0 0.0
      %530 = vmatprep.subr.mxu0 0.0
      %531 = vmatpush1.msra.mxu0 0.0
      %532 = vmatprep.subr.mxu0 0.0
      %533 = vmatpush1.msra.mxu0 0.0
      %534 = vmatprep.subr.mxu0 0.0
      %535 = vmatpush1.msra.mxu0 0.0
      %536 = vmatprep.subr.mxu0 0.0
      %537 = vmatpush1.msra.mxu0 0.0
      %538 = vmatprep.subr.mxu0 0.0
      %539 = vmatpush1.msra.mxu0 0.0
      %540 = vmatprep.subr.mxu0 0.0
      %541 = vmatpush1.msra.mxu0 0.0
      %542 = vmatprep.subr.mxu0 0.0
      %543 = vmatpush1.msra.mxu0 0.0
      %544 = vmatprep.subr.mxu0 0.0
      %545 = vmatpush1.msra.mxu0 0.0
      %546 = vmatprep.subr.mxu0 0.0
      %547 = vmatpush1.msra.mxu0 0.0
      %548 = vmatprep.subr.mxu0 0.0
      %549 = vmatpush1.msra.mxu0 %v516
      %550 = vmatprep.subr.mxu0 0.0
      %551 = vmatpush2.msra.mxu0 0.0
      %552 = vmatprep.subr.mxu0 0.0
      %553 = vmatpush2.msra.mxu0 0.0
      %554 = vmatprep.subr.mxu0 0.0
      %555 = vmatpush2.msra.mxu0 0.0
      %556 = vmatprep.subr.mxu0 0.0
      %557 = vmatpush2.msra.mxu0 0.0
      %558 = vmatprep.subr.mxu0 0.0
      %559 = vmatpush2.msra.mxu0 0.0
      %560 = vmatprep.subr.mxu0 0.0
      %561 = vmatpush2.msra.mxu0 0.0
      %562 = vmatprep.subr.mxu0 0.0
      %563 = vmatpush2.msra.mxu0 0.0
      %564 = vmatprep.subr.mxu0 0.0
      %565 = vmatpush2.msra.mxu0 0.0
      %566 = vmatprep.subr.mxu0 0.0
      %567 = vmatpush2.msra.mxu0 0.0
      %568 = vmatprep.subr.mxu0 0.0
      %569 = vmatpush2.msra.mxu0 0.0
      %570 = vmatprep.subr.mxu0 0.0
      %571 = vmatpush2.msra.mxu0 0.0
      %572 = vmatprep.subr.mxu0 0.0
      %573 = vmatpush2.msra.mxu0 0.0
      %574 = vmatprep.subr.mxu0 0.0
      %575 = vmatpush2.msra.mxu0 0.0
      %576 = vmatprep.subr.mxu0 0.0
      %577 = vmatpush2.msra.mxu0 0.0
      %578 = vmatprep.subr.mxu0 0.0
      %579 = vmatpush2.msra.mxu0 0.0
      %580 = vmatprep.subr.mxu0 0.0
      %581 = vmatpush2.msra.mxu0 0.0
      %582 = vmatprep.mubr.f32.mxu0 0.0
      %583 = vmatmul.mubr.f32.gmra.mxu0 %v511
      %v584 = vpop.f32.mrf.mxu0
      %v585 = vadd.f32 %v503, %v584
      %v586 = vpop.f32.mrf.mxu0
      %587 = vmatprep.mubr.f32.mxu0 0.0
      %588 = vmatmul.mubr.f32.gmra.mxu0 %v513
      %v589 = vpop.f32.mrf.mxu0
      %v590 = vadd.f32 %v508, %v589
      %v591 = vpop.f32.mrf.mxu0
      %592 = vdwg.mxu0
      %v593 = vld [vmem:[%s3] sm:$0xff]
      %v594 = vld [vmem:[%s4] sm:$0x1]
      %v596 = vlaneseq
      %v597 = vshrl.u32 %v596, 7
      %v598 = vsub.s32 0, %v597
      %v599 = vrot.slane %v594, %v598
      %v602 = vsel %vm229, %v225, 0
      %v605 = vsel %vm229, %v226, 0
      %607 = vmatprep.subr.mxu0 0.0
      %608 = vmatpush1.msra.mxu0 0.0
      %609 = vmatprep.subr.mxu0 0.0
      %610 = vmatpush1.msra.mxu0 0.0
      %611 = vmatprep.subr.mxu0 0.0
      %612 = vmatpush1.msra.mxu0 0.0
      %613 = vmatprep.subr.mxu0 0.0
      %614 = vmatpush1.msra.mxu0 0.0
      %615 = vmatprep.subr.mxu0 0.0
      %616 = vmatpush1.msra.mxu0 0.0
      %617 = vmatprep.subr.mxu0 0.0
      %618 = vmatpush1.msra.mxu0 0.0
      %619 = vmatprep.subr.mxu0 0.0
      %620 = vmatpush1.msra.mxu0 0.0
      %621 = vmatprep.subr.mxu0 0.0
      %622 = vmatpush1.msra.mxu0 0.0
      %623 = vmatprep.subr.mxu0 0.0
      %624 = vmatpush1.msra.mxu0 0.0
      %625 = vmatprep.subr.mxu0 0.0
      %626 = vmatpush1.msra.mxu0 0.0
      %627 = vmatprep.subr.mxu0 0.0
      %628 = vmatpush1.msra.mxu0 0.0
      %629 = vmatprep.subr.mxu0 0.0
      %630 = vmatpush1.msra.mxu0 0.0
      %631 = vmatprep.subr.mxu0 0.0
      %632 = vmatpush1.msra.mxu0 0.0
      %633 = vmatprep.subr.mxu0 0.0
      %634 = vmatpush1.msra.mxu0 0.0
      %635 = vmatprep.subr.mxu0 0.0
      %636 = vmatpush1.msra.mxu0 0.0
      %637 = vmatprep.subr.mxu0 0.0
      %638 = vmatpush1.msra.mxu0 %v593
      %639 = vmatprep.subr.mxu0 0.0
      %640 = vmatpush2.msra.mxu0 0.0
      %641 = vmatprep.subr.mxu0 0.0
      %642 = vmatpush2.msra.mxu0 0.0
      %643 = vmatprep.subr.mxu0 0.0
      %644 = vmatpush2.msra.mxu0 0.0
      %645 = vmatprep.subr.mxu0 0.0
      %646 = vmatpush2.msra.mxu0 0.0
      %647 = vmatprep.subr.mxu0 0.0
      %648 = vmatpush2.msra.mxu0 0.0
      %649 = vmatprep.subr.mxu0 0.0
      %650 = vmatpush2.msra.mxu0 0.0
      %651 = vmatprep.subr.mxu0 0.0
      %652 = vmatpush2.msra.mxu0 0.0
      %653 = vmatprep.subr.mxu0 0.0
      %654 = vmatpush2.msra.mxu0 0.0
      %655 = vmatprep.subr.mxu0 0.0
      %656 = vmatpush2.msra.mxu0 0.0
      %657 = vmatprep.subr.mxu0 0.0
      %658 = vmatpush2.msra.mxu0 0.0
      %659 = vmatprep.subr.mxu0 0.0
      %660 = vmatpush2.msra.mxu0 0.0
      %661 = vmatprep.subr.mxu0 0.0
      %662 = vmatpush2.msra.mxu0 0.0
      %663 = vmatprep.subr.mxu0 0.0
      %664 = vmatpush2.msra.mxu0 0.0
      %665 = vmatprep.subr.mxu0 0.0
      %666 = vmatpush2.msra.mxu0 0.0
      %667 = vmatprep.subr.mxu0 0.0
      %668 = vmatpush2.msra.mxu0 0.0
      %669 = vmatprep.subr.mxu0 0.0
      %670 = vmatpush2.msra.mxu0 0.0
      %671 = vmatprep.mubr.f32.mxu0 0.0
      %672 = vmatmul.mubr.f32.gmra.mxu0 %v602
      %v673 = vpop.f32.mrf.mxu0
      %v674 = vadd.f32 %v599, %v673
      %v675 = vpop.f32.mrf.mxu0
      %676 = vmatprep.mubr.f32.mxu0 0.0
      %677 = vmatmul.mubr.f32.gmra.mxu0 %v605
      %v678 = vpop.f32.mrf.mxu0
      %v679 = vadd.f32 %v599, %v678
      %v680 = vpop.f32.mrf.mxu0
      %681 = vdwg.mxu0
      %v682 = vadd.f32 %v585, %v674
      %v683 = vadd.f32 %v590, %v679
      %v684 = vmax.f32 %v682, 0.0
      %v685 = vmax.f32 %v683, 0.0
      %686 = vst.msk [vmem:[%s224] sm:$0xff] %vm409, %v684
      %687 = vst.msk [vmem:[%s224 + $0x8] sm:$0xff] %vm409, %v685
      %p688 = scmp.lt.s32.totalorder %s16, 1
      %s689 = scalar_select %p688, %s16, 1
      %s690 = smul.addr %s689, 2
      %s691 = smul.addr %s690, 8
      %s692 = scalar_lea.vmem %s5, %s691
      // Predicated region
      $region41: #{_lambda_.11} parent=39 // pred_check
        %p693 = pneg %p144
      $region42: #{_lambda_.11} parent=39 // pred_check_branch
        %695 = sbr.rel (%p693) target = $region44
      $region43: #{_lambda_.11} parent=39 // pred_region
        _
      $region44: #{_lambda_.11} parent=39 // pred_fallthru
        _
    $region40: #{_lambda_.11} parent=5 // pred_fallthru
      _
    %p696 = scmp.le.s32.totalorder 2, %s11
    // Predicated region
    $region45: #{_lambda_.11} parent=5 // pred_check
      %p697 = pneg %p696
    $region46: #{_lambda_.11} parent=5 // pred_check_branch
      %699 = sbr.rel (%p697) target = $region48
    $region47: #{_lambda_.11} parent=5 // pred_region
      %s700 = ssub.s32 %s11, 2
      // Predicated region
      $region49: #{_lambda_.11} parent=47 // pred_check
        %p701 = pneg %p150
      $region50: #{_lambda_.11} parent=47 // pred_check_branch
        %703 = sbr.rel (%p701) target = $region52
      $region51: #{_lambda_.11} parent=47 // pred_region
        %p704 = scmp.lt.s32.totalorder %s17, 1
        %s705 = scalar_select %p704, %s17, 1
        %s706 = smul.addr %s705, 2
        %s707 = smul.addr %s706, 8
        %s708 = scalar_lea.vmem %s5, %s707
      $region52: #{_lambda_.11} parent=47 // pred_fallthru
        _
    $region48: #{_lambda_.11} parent=5 // pred_fallthru
      _
  $region6: #{_lambda_.11} parent=0 // loop_footer
    %s15 = sadd.s32 1, %s11
  $region7: #{_lambda_.11} parent=0 // loop_footer_branch
    %10 = sbr.rel target = $region3
  $region8: #{_lambda_.11} parent=0 // loop_exit
    _

</llo_original>
